<compile_context>
chip_gen: v7x
topology: tpu7x:2x2x1
jax: 0.10.0
libtpu: 0.0.40
codegen_flags: <defaults>
</compile_context>

<pallas_src>
import math
import functools

import numpy as np

import jax
import jax.numpy as jnp
from jax.experimental import pallas as pl
from jax.experimental.pallas import tpu as pltpu


def _round_up(x, m):
    return (x + m - 1) // m * m


def _sine_embed_kernel(y_ref, x_ref, inv_ref, phase_ref, o_ref, *,
                       num_pos_feats, combine_cat):
    """Lane-dense sine embedding.

    y_ref/x_ref : (Bt, 1, HW) f32   cumulative (optionally normalized) embeds
    inv_ref     : (F, 1)      f32   1 / dim_t            (resident constant)
    phase_ref   : (F, 1)      f32   0 (even ch) / pi/2 (odd ch)
    o_ref       : (Bt, C, HW) f32   C = 2F ('cat') or F ('sum')
    """
    F = num_pos_feats
    inv = inv_ref[...]        # (F, 1)
    ph = phase_ref[...]       # (F, 1)
    bt = y_ref.shape[0]
    for b in range(bt):       # static unroll; bt is small
        y_b = y_ref[b]        # (1, HW)
        x_b = x_ref[b]        # (1, HW)
        # even channel -> sin(e / dim_t), odd channel -> cos(e / dim_t)
        # using cos(x) == sin(x + pi/2); halves EUP work vs sin+cos+select.
        pos_y = jnp.sin(y_b * inv + ph)            # (F, HW)
        pos_x = jnp.sin(x_b * inv + ph)            # (F, HW)
        if combine_cat:
            o_ref[b, 0:F, :] = pos_y               # direct slab writes,
            o_ref[b, F:2 * F, :] = pos_x           # no concatenate copy
        else:
            o_ref[b, :, :] = pos_y + pos_x


def _pick_batch_tile(B, C, HW):
    """Largest divisor of B whose double-buffered block fits a VMEM budget,
    while keeping >= 2 grid steps when B > 1 (v7x has 2 TensorCores)."""
    budget = 12 << 20                                   # per live block set
    per_elem = (C + 2) * max(HW, 128) * 4
    max_bt = max(1, budget // (2 * per_elem))
    cap = min(max_bt, B if B == 1 else max(1, B // 2))
    bt = 1
    for d in range(1, B + 1):
        if B % d == 0 and d <= cap:
            bt = d
    return bt


def _vmem_limit_bytes(Bt, C, F, HW):
    """Raise the scoped VMEM limit only when the default might be tight."""
    lane = 128
    out_b = Bt * _round_up(C, 8) * _round_up(HW, lane) * 4
    in_b = 2 * Bt * _round_up(HW, lane) * 4 + 2 * _round_up(F, 8) * lane * 4
    need = 2 * (out_b + in_b)                            # double-buffered
    if need <= (8 << 20):
        return None                                      # defaults suffice
    return int(min(max(need + (4 << 20), 32 << 20), 48 << 20))


class PositionEmbeddingFixedSine2D:
    """JAX/Pallas port of PositionEmbeddingFixedSine_2D (no learnable params)."""

    def __init__(self, num_pos_feats=64, temperature=10000, normalize=False,
                 scale=None):
        if num_pos_feats % 2 == 0:
            self.num_pos_feats = num_pos_feats
            self.combine_cat = True           # 'cat'
        else:
            self.num_pos_feats = num_pos_feats * 2
            self.combine_cat = False          # 'sum'
        self.temperature = temperature
        self.normalize = normalize
        if scale is not None and normalize is False:
            raise ValueError('normalize should be True if scale is passed')
        if scale is None:
            scale = 2 * math.pi
        self.scale = scale

        # Trace-time constants: dim_t reciprocal and the even/odd phase.
        F = self.num_pos_feats
        f = np.arange(F)
        inv = np.asarray(temperature, dtype=np.float64) ** (-(2.0 * (f // 2) / F))
        ph = np.where(f % 2 == 0, 0.0, np.pi / 2.0)
        self._inv_dim_t = jnp.asarray(inv, dtype=jnp.float32).reshape(F, 1)
        self._phase = jnp.asarray(ph, dtype=jnp.float32).reshape(F, 1)

    def _embeds(self, H, W, mask, batch_size):
        """y/x cumulative embeds, flattened to (B, 1, H*W).  O(B*H*W) work."""
        eps = 1e-6
        if mask is None:
            # Fast path: all positions valid -> cumsums are pure index ramps.
            B = int(batch_size)
            y = jnp.broadcast_to(
                jnp.arange(1, H + 1, dtype=jnp.float32)[:, None], (H, W))
            x = jnp.broadcast_to(
                jnp.arange(1, W + 1, dtype=jnp.float32)[None, :], (H, W))
            if self.normalize:
                y = y / (float(H) + eps) * self.scale
                x = x / (float(W) + eps) * self.scale
            y = jnp.broadcast_to(y[None], (B, H, W))
            x = jnp.broadcast_to(x[None], (B, H, W))
        else:
            B = mask.shape[0]
            not_mask = (mask == 0).astype(jnp.float32)
            y = jnp.cumsum(not_mask, axis=1)
            x = jnp.cumsum(not_mask, axis=2)
            if self.normalize:
                y = y / (y[:, -1:, :] + eps) * self.scale
                x = x / (x[:, :, -1:] + eps) * self.scale
        HW = H * W
        return B, y.reshape(B, 1, HW), x.reshape(B, 1, HW)

    def __call__(self, num_positions_h, num_positions_w, mask=None,
                 batch_size=1):
        H, W = int(num_positions_h), int(num_positions_w)
        HW = H * W
        F = self.num_pos_feats
        C = 2 * F if self.combine_cat else F

        B, y_emb, x_emb = self._embeds(H, W, mask, batch_size)
        Bt = _pick_batch_tile(B, C, HW)

        kernel = functools.partial(
            _sine_embed_kernel, num_pos_feats=F, combine_cat=self.combine_cat)

        out_flat = pl.pallas_call(
            kernel,
            out_shape=jax.ShapeDtypeStruct((B, C, HW), jnp.float32),
            grid_spec=pltpu.PrefetchScalarGridSpec(
                num_scalar_prefetch=0,
                grid=(B // Bt,),
                in_specs=[
                    pl.BlockSpec((Bt, 1, HW), lambda g: (g, 0, 0)),
                    pl.BlockSpec((Bt, 1, HW), lambda g: (g, 0, 0)),
                    pl.BlockSpec((F, 1), lambda g: (0, 0)),   # resident const
                    pl.BlockSpec((F, 1), lambda g: (0, 0)),   # resident const
                ],
                out_specs=pl.BlockSpec((Bt, C, HW), lambda g: (g, 0, 0)),
            ),
            compiler_params=pltpu.CompilerParams(
                dimension_semantics=("parallel",),
                vmem_limit_bytes=_vmem_limit_bytes(Bt, C, F, HW),
            ),
        )(y_emb, x_emb, self._inv_dim_t, self._phase)

        # Free, contiguous reshape back to NCHW.
        return out_flat.reshape(B, C, H, W)


def _reference(mask, num_pos_feats, temperature, normalize, scale, combine_cat):
    """Pure-JAX mirror of the PyTorch forward (logical not on mask)."""
    not_mask = (mask == 0).astype(jnp.float32)
    y_embed = jnp.cumsum(not_mask, axis=1)
    x_embed = jnp.cumsum(not_mask, axis=2)
    if normalize:
        eps = 1e-6
        y_embed = y_embed / (y_embed[:, -1:, :] + eps) * scale
        x_embed = x_embed / (x_embed[:, :, -1:] + eps) * scale
    dim_t = jnp.arange(num_pos_feats, dtype=jnp.float32)
    dim_t = temperature ** (2 * (dim_t // 2) / num_pos_feats)
    pos_x = x_embed[..., None] / dim_t
    pos_y = y_embed[..., None] / dim_t
    B, H, W = mask.shape
    pos_x = jnp.stack((jnp.sin(pos_x[..., 0::2]), jnp.cos(pos_x[..., 1::2])),
                      axis=4).reshape(B, H, W, -1)
    pos_y = jnp.stack((jnp.sin(pos_y[..., 0::2]), jnp.cos(pos_y[..., 1::2])),
                      axis=4).reshape(B, H, W, -1)
    if combine_cat:
        pos = jnp.concatenate((pos_y, pos_x), axis=3).transpose(0, 3, 1, 2)
    else:
        pos = (pos_y + pos_x).transpose(0, 3, 1, 2)
    return pos


if __name__ == "__main__":
    key = jax.random.PRNGKey(0)
    B, H, W = 2, 16, 16

    # --- Test 1: 'cat' mode (even num_pos_feats), no normalize, with mask ---
    num_pos_feats = 64                     # C = 128
    mask = (jax.random.uniform(key, (B, H, W)) < 0.2).astype(jnp.int32)

    mod = PositionEmbeddingFixedSine2D(num_pos_feats=num_pos_feats,
                                       temperature=10000, normalize=False)
    pos = jax.block_until_ready(mod(H, W, mask=mask, batch_size=B))
    ref = _reference(mask, mod.num_pos_feats, mod.temperature, mod.normalize,
                     mod.scale, mod.combine_cat)
    assert pos.shape == (B, 2 * num_pos_feats, H, W), pos.shape
    err = jnp.max(jnp.abs(pos - ref))
    if not jnp.allclose(pos, ref, atol=1e-4, rtol=1e-4):
        raise AssertionError(f"'cat' mode mismatch vs reference (max err {err})")

    # --- Test 2: 'sum' mode (odd num_pos_feats), normalize=True, mask=None ---
    mod2 = PositionEmbeddingFixedSine2D(num_pos_feats=31, temperature=10000,
                                        normalize=True)            # F = C = 62
    pos2 = jax.block_until_ready(mod2(H, W, mask=None, batch_size=B))
    zero_mask = jnp.zeros((B, H, W), dtype=jnp.int32)
    ref2 = _reference(zero_mask, mod2.num_pos_feats, mod2.temperature,
                      mod2.normalize, mod2.scale, mod2.combine_cat)
    assert pos2.shape == (B, 62, H, W), pos2.shape
    err2 = jnp.max(jnp.abs(pos2 - ref2))
    if not jnp.allclose(pos2, ref2, atol=1e-4, rtol=1e-4):
        raise AssertionError(f"'sum' mode mismatch vs reference (max err {err2})")

    print("KERNEL_OK")
</pallas_src>

<mosaic_0001>
module attributes {stable_mosaic.version = 11 : i64} {
  func.func @_sine_embed_kernel(%arg0: i32, %arg1: memref<1x1x256xf32, #tpu.memory_space<vmem>>, %arg2: memref<1x1x256xf32, #tpu.memory_space<vmem>>, %arg3: memref<64x1xf32, #tpu.memory_space<vmem>>, %arg4: memref<64x1xf32, #tpu.memory_space<vmem>>, %arg5: memref<1x128x256xf32, #tpu.memory_space<vmem>>) attributes {dimension_semantics = [#tpu.dimension_semantics<parallel>], iteration_bounds = array<i64: 2>, scalar_prefetch = 0 : i64, scratch_operands = 0 : i64, tpu.core_type = #tpu.core_type<tc>, window_params = [{transform_indices = @transform_0, window_bounds = array<i64: 1, 1, 256>}, {transform_indices = @transform_1, window_bounds = array<i64: 1, 1, 256>}, {pipeline_mode = #tpu.pipeline_mode<synchronous>, transform_indices = @transform_2, window_bounds = array<i64: 64, 1>}, {pipeline_mode = #tpu.pipeline_mode<synchronous>, transform_indices = @transform_3, window_bounds = array<i64: 64, 1>}, {transform_indices = @transform_4, window_bounds = array<i64: 1, 128, 256>}]} {
    %c0 = arith.constant 0 : index
    %c0_0 = arith.constant 0 : index
    %0 = vector.load %arg3[%c0, %c0_0] : memref<64x1xf32, #tpu.memory_space<vmem>>, vector<64x1xf32>
    %c0_1 = arith.constant 0 : index
    %c0_2 = arith.constant 0 : index
    %1 = vector.load %arg4[%c0_1, %c0_2] : memref<64x1xf32, #tpu.memory_space<vmem>>, vector<64x1xf32>
    %c0_3 = arith.constant 0 : index
    %c0_4 = arith.constant 0 : index
    %c0_5 = arith.constant 0 : index
    %2 = vector.load %arg1[%c0_3, %c0_4, %c0_5] : memref<1x1x256xf32, #tpu.memory_space<vmem>>, vector<1x1x256xf32>
    %3 = vector.shape_cast %2 : vector<1x1x256xf32> to vector<1x256xf32>
    %c0_6 = arith.constant 0 : index
    %c0_7 = arith.constant 0 : index
    %c0_8 = arith.constant 0 : index
    %4 = vector.load %arg2[%c0_6, %c0_7, %c0_8] : memref<1x1x256xf32, #tpu.memory_space<vmem>>, vector<1x1x256xf32>
    %5 = vector.shape_cast %4 : vector<1x1x256xf32> to vector<1x256xf32>
    %6 = vector.broadcast %3 : vector<1x256xf32> to vector<64x256xf32>
    %7 = vector.broadcast %0 : vector<64x1xf32> to vector<64x256xf32>
    %8 = arith.mulf %6, %7 : vector<64x256xf32>
    %9 = vector.broadcast %1 : vector<64x1xf32> to vector<64x256xf32>
    %10 = arith.addf %8, %9 : vector<64x256xf32>
    %11 = math.sin %10 : vector<64x256xf32>
    %12 = vector.broadcast %5 : vector<1x256xf32> to vector<64x256xf32>
    %13 = vector.broadcast %0 : vector<64x1xf32> to vector<64x256xf32>
    %14 = arith.mulf %12, %13 : vector<64x256xf32>
    %15 = vector.broadcast %1 : vector<64x1xf32> to vector<64x256xf32>
    %16 = arith.addf %14, %15 : vector<64x256xf32>
    %17 = math.sin %16 : vector<64x256xf32>
    %c0_9 = arith.constant 0 : index
    %c0_10 = arith.constant 0 : index
    %c0_11 = arith.constant 0 : index
    %18 = vector.load %arg5[%c0_9, %c0_10, %c0_11] : memref<1x128x256xf32, #tpu.memory_space<vmem>>, vector<1x64x256xf32>
    %19 = vector.shape_cast %18 : vector<1x64x256xf32> to vector<64x256xf32>
    %20 = vector.shape_cast %11 : vector<64x256xf32> to vector<1x64x256xf32>
    tpu.vector_store %arg5[%c0_9, %c0_10, %c0_11], %20 {strides = array<i32>} : memref<1x128x256xf32, #tpu.memory_space<vmem>>, vector<1x64x256xf32>,
    %c0_12 = arith.constant 0 : index
    %c64 = arith.constant 64 : index
    %c0_13 = arith.constant 0 : index
    %21 = vector.load %arg5[%c0_12, %c64, %c0_13] : memref<1x128x256xf32, #tpu.memory_space<vmem>>, vector<1x64x256xf32>
    %22 = vector.shape_cast %21 : vector<1x64x256xf32> to vector<64x256xf32>
    %23 = vector.shape_cast %17 : vector<64x256xf32> to vector<1x64x256xf32>
    tpu.vector_store %arg5[%c0_12, %c64, %c0_13], %23 {strides = array<i32>} : memref<1x128x256xf32, #tpu.memory_space<vmem>>, vector<1x64x256xf32>,
    return
  }
  func.func @transform_0(%arg0: i32) -> (i32, i32, i32) {
    %c0_i32 = arith.constant 0 : i32
    %c0_i32_0 = arith.constant 0 : i32
    %c0_i32_1 = arith.constant 0 : i32
    return %arg0, %c0_i32, %c0_i32_0 : i32, i32, i32
  }
  func.func @transform_1(%arg0: i32) -> (i32, i32, i32) {
    %c0_i32 = arith.constant 0 : i32
    %c0_i32_0 = arith.constant 0 : i32
    %c0_i32_1 = arith.constant 0 : i32
    return %arg0, %c0_i32, %c0_i32_0 : i32, i32, i32
  }
  func.func @transform_2(%arg0: i32) -> (i32, i32) {
    %c0_i32 = arith.constant 0 : i32
    %c0_i32_0 = arith.constant 0 : i32
    %c0_i32_1 = arith.constant 0 : i32
    return %c0_i32, %c0_i32_0 : i32, i32
  }
  func.func @transform_3(%arg0: i32) -> (i32, i32) {
    %c0_i32 = arith.constant 0 : i32
    %c0_i32_0 = arith.constant 0 : i32
    %c0_i32_1 = arith.constant 0 : i32
    return %c0_i32, %c0_i32_0 : i32, i32
  }
  func.func @transform_4(%arg0: i32) -> (i32, i32, i32) {
    %c0_i32 = arith.constant 0 : i32
    %c0_i32_0 = arith.constant 0 : i32
    %c0_i32_1 = arith.constant 0 : i32
    return %arg0, %c0_i32, %c0_i32_0 : i32, i32, i32
  }
}

</mosaic_0001>

<llo_original>
// kernel: tpu_custom_call.1
$region0: #{tpu_custom_call.1}
  #allocation0 [shape = 'u32[]', space=smem, size = 0x4, offset = 0x4, fixed_abs, tag = 'smem constant byte address 0x4 - core index']
  #allocation1 [shape = 'u32[144,128]{1,0:T(1,128)}', space=vmem, size = 0x12000, scoped, tag = 'internal scratch']
  %s0 = inlined_call_operand.vmem [shape: f32[2,1,256], index: 0, kind: input, shape index: {}]
  %s1 = inlined_call_operand.vmem [shape: f32[2,1,256], index: 1, kind: input, shape index: {}]
  %s2 = inlined_call_operand.vmem [shape: f32[64,1], index: 2, kind: input, shape index: {}]
  %s3 = inlined_call_operand.vmem [shape: f32[64,1], index: 3, kind: input, shape index: {}]
  %s4 = inlined_call_operand.hbm [shape: f32[2,128,256], index: 4, kind: output, shape index: {}]
  %s5 = sld [smem:[#allocation0]]
  $region49: #{tpu_custom_call.1} parent=0
    _
  %s7 = ssub.s32 1, %s5
  %s8 = scalar_select 0, %s7, %s5
  $region1: #{tpu_custom_call.1} parent=0
    #allocation2 [shape = 'u8[262144]{0}', space=vmem, size = 0x40000, scoped, tag = 'output window, operand 0']
    #allocation3 [shape = 's32[2]{0}', space=sflag, size = 0x8, scoped, tag = 'scoped memory for tpu_custom_call.1']
    %9 = vsyncpa [#allocation3], 0
    %s10 = scalar_lea.sflag [#allocation3], 1
    %11 = vsyncpa %s10, 0
    loop: start=0, step=1, limit=4
    $region2: #{tpu_custom_call.1} parent=1 // loop_pre_header
      _
    $region3: #{tpu_custom_call.1} parent=1 // loop_header
      %s13 = sphi 0, %s17
      %p14 = scmp.ge.s32.totalorder %s13, 4
      %s23 = sphi 0, %s25
      %s26 = sphi 0, %s23
      %s27 = sphi 0, %s26
      %s43 = sphi 0, %s27
      %s49 = sphi 0, %s51
      %s52 = sphi 0, %s49
      %s53 = sphi 0, %s52
      %s69 = sphi 0, %s53
      %s73 = sphi 0, %s73
      %s75 = sphi 0, %s73
      %s76 = sphi 0, %s75
      %s90 = sphi 0, %s76
      %s94 = sphi 0, %s94
      %s96 = sphi 0, %s94
      %s97 = sphi 0, %s96
      %s111 = sphi 0, %s97
      %s117 = sphi 0, %s119
      %s120 = sphi 0, %s117
      %s121 = sphi 0, %s120
      %s137 = sphi 0, %s121
    $region4: #{tpu_custom_call.1} parent=1 // loop_header_branch
      %16 = sbr.rel (%p14) target = $region8
    $region5: #{tpu_custom_call.1} parent=1 // loop_body
      %s18 = ssub.s32 %s13, 1
      %s19 = ssub.s32 %s13, 2
      %s20 = sadd.s32 %s13, 1
      %s21 = ssub.s32 %s13, %s20
      %p22 = scmp.eq.s32.totalorder %s21, 0
      %s24 = sadd.s32 %s23, 1
      %s25 = scalar_select %p22, %s23, %s24
      %p28 = pneg %p22
      %p29 = scmp.eq.s32.totalorder %s13, 1
      %p30 = por %p28, %p29
      %p31 = scmp.ne.s32.totalorder %s23, %s26
      %p32 = scmp.eq.s32.totalorder %s13, 0
      %p33 = por %p31, %p32
      %p34 = scmp.ne.s32.totalorder %s23, %s26
      %p35 = scmp.eq.s32.totalorder %s18, 1
      %p36 = por %p34, %p35
      %p37 = scmp.ne.s32.totalorder %s26, %s27
      %p38 = scmp.eq.s32.totalorder %s18, 0
      %p39 = por %p37, %p38
      %p40 = scmp.ne.s32.totalorder %s26, %s27
      %p41 = scmp.eq.s32.totalorder %s19, 1
      %p42 = por %p40, %p41
      %p44 = scmp.ne.s32.totalorder %s27, %s43
      %p45 = scmp.eq.s32.totalorder %s19, 0
      %p46 = por %p44, %p45
      %s47 = ssub.s32 %s13, %s20
      %p48 = scmp.eq.s32.totalorder %s47, 0
      %s50 = sadd.s32 %s49, 1
      %s51 = scalar_select %p48, %s49, %s50
      %p54 = pneg %p48
      %p55 = scmp.eq.s32.totalorder %s13, 1
      %p56 = por %p54, %p55
      %p57 = scmp.ne.s32.totalorder %s49, %s52
      %p58 = scmp.eq.s32.totalorder %s13, 0
      %p59 = por %p57, %p58
      %p60 = scmp.ne.s32.totalorder %s49, %s52
      %p61 = scmp.eq.s32.totalorder %s18, 1
      %p62 = por %p60, %p61
      %p63 = scmp.ne.s32.totalorder %s52, %s53
      %p64 = scmp.eq.s32.totalorder %s18, 0
      %p65 = por %p63, %p64
      %p66 = scmp.ne.s32.totalorder %s52, %s53
      %p67 = scmp.eq.s32.totalorder %s19, 1
      %p68 = por %p66, %p67
      %p70 = scmp.ne.s32.totalorder %s53, %s69
      %p71 = scmp.eq.s32.totalorder %s19, 0
      %p72 = por %p70, %p71
      %s74 = sadd.s32 %s73, 1
      %p77 = scmp.eq.s32.totalorder %s13, 1
      %p78 = scmp.ne.s32.totalorder %s73, %s75
      %p79 = scmp.eq.s32.totalorder %s13, 0
      %p80 = por %p78, %p79
      %p81 = scmp.ne.s32.totalorder %s73, %s75
      %p82 = scmp.eq.s32.totalorder %s18, 1
      %p83 = por %p81, %p82
      %p84 = scmp.ne.s32.totalorder %s75, %s76
      %p85 = scmp.eq.s32.totalorder %s18, 0
      %p86 = por %p84, %p85
      %p87 = scmp.ne.s32.totalorder %s75, %s76
      %p88 = scmp.eq.s32.totalorder %s19, 1
      %p89 = por %p87, %p88
      %p91 = scmp.ne.s32.totalorder %s76, %s90
      %p92 = scmp.eq.s32.totalorder %s19, 0
      %p93 = por %p91, %p92
      %s95 = sadd.s32 %s94, 1
      %p98 = scmp.eq.s32.totalorder %s13, 1
      %p99 = scmp.ne.s32.totalorder %s94, %s96
      %p100 = scmp.eq.s32.totalorder %s13, 0
      %p101 = por %p99, %p100
      %p102 = scmp.ne.s32.totalorder %s94, %s96
      %p103 = scmp.eq.s32.totalorder %s18, 1
      %p104 = por %p102, %p103
      %p105 = scmp.ne.s32.totalorder %s96, %s97
      %p106 = scmp.eq.s32.totalorder %s18, 0
      %p107 = por %p105, %p106
      %p108 = scmp.ne.s32.totalorder %s96, %s97
      %p109 = scmp.eq.s32.totalorder %s19, 1
      %p110 = por %p108, %p109
      %p112 = scmp.ne.s32.totalorder %s97, %s111
      %p113 = scmp.eq.s32.totalorder %s19, 0
      %p114 = por %p112, %p113
      %s115 = ssub.s32 %s13, %s20
      %p116 = scmp.eq.s32.totalorder %s115, 0
      %s118 = sadd.s32 %s117, 1
      %s119 = scalar_select %p116, %s117, %s118
      %p122 = pneg %p116
      %p123 = scmp.eq.s32.totalorder %s13, 1
      %p124 = por %p122, %p123
      %p125 = scmp.ne.s32.totalorder %s117, %s120
      %p126 = scmp.eq.s32.totalorder %s13, 0
      %p127 = por %p125, %p126
      %p128 = scmp.ne.s32.totalorder %s117, %s120
      %p129 = scmp.eq.s32.totalorder %s18, 1
      %p130 = por %p128, %p129
      %p131 = scmp.ne.s32.totalorder %s120, %s121
      %p132 = scmp.eq.s32.totalorder %s18, 0
      %p133 = por %p131, %p132
      %p134 = scmp.ne.s32.totalorder %s120, %s121
      %p135 = scmp.eq.s32.totalorder %s19, 1
      %p136 = por %p134, %p135
      %p138 = scmp.ne.s32.totalorder %s121, %s137
      %p139 = scmp.eq.s32.totalorder %s19, 0
      %p140 = por %p138, %p139
      %p141 = scmp.le.s32.totalorder 1, %s13
      %p142 = scmp.lt.s32.totalorder %s13, 3
      %p143 = pnand %p141, %p142
      %p144 = pneg %p143
      // Predicated region
      $region9: #{tpu_custom_call.1} parent=5 // pred_check
        _
      $region10: #{tpu_custom_call.1} parent=5 // pred_check_branch
        %146 = sbr.rel (%p143) target = $region12
      $region11: #{tpu_custom_call.1} parent=5 // pred_region
        %s147 = ssub.s32 %s13, 1
        // Predicated region
        $region13: #{tpu_custom_call.1} parent=11 // pred_check
          %p148 = pneg %p86
        $region14: #{tpu_custom_call.1} parent=11 // pred_check_branch
          %150 = sbr.rel (%p148) target = $region16
        $region15: #{tpu_custom_call.1} parent=11 // pred_region
          _
        $region16: #{tpu_custom_call.1} parent=11 // pred_fallthru
          _
        // Predicated region
        $region17: #{tpu_custom_call.1} parent=11 // pred_check
          %p151 = pneg %p107
        $region18: #{tpu_custom_call.1} parent=11 // pred_check_branch
          %153 = sbr.rel (%p151) target = $region20
        $region19: #{tpu_custom_call.1} parent=11 // pred_region
          _
        $region20: #{tpu_custom_call.1} parent=11 // pred_fallthru
          _
      $region12: #{tpu_custom_call.1} parent=5 // pred_fallthru
        _
      %p154 = scmp.lt.s32.totalorder %s13, 2
      // Predicated region
      $region21: #{tpu_custom_call.1} parent=5 // pred_check
        %p155 = pneg %p154
      $region22: #{tpu_custom_call.1} parent=5 // pred_check_branch
        %157 = sbr.rel (%p155) target = $region24
      $region23: #{tpu_custom_call.1} parent=5 // pred_region
        // Predicated region
        $region25: #{tpu_custom_call.1} parent=23 // pred_check
          %p158 = pneg %p33
        $region26: #{tpu_custom_call.1} parent=23 // pred_check_branch
          %160 = sbr.rel (%p158) target = $region28
        $region27: #{tpu_custom_call.1} parent=23 // pred_region
          %p161 = scmp.lt.s32.totalorder %s13, 1
          %s162 = scalar_select %p161, %s13, 1
          %s163 = smul.addr %s162, 2
          %s164 = scalar_lea.vmem %s0, %s163
        $region28: #{tpu_custom_call.1} parent=23 // pred_fallthru
          _
        // Predicated region
        $region29: #{tpu_custom_call.1} parent=23 // pred_check
          %p165 = pneg %p59
        $region30: #{tpu_custom_call.1} parent=23 // pred_check_branch
          %167 = sbr.rel (%p165) target = $region32
        $region31: #{tpu_custom_call.1} parent=23 // pred_region
          %p168 = scmp.lt.s32.totalorder %s13, 1
          %s169 = scalar_select %p168, %s13, 1
          %s170 = smul.addr %s169, 2
          %s171 = scalar_lea.vmem %s1, %s170
        $region32: #{tpu_custom_call.1} parent=23 // pred_fallthru
          _
      $region24: #{tpu_custom_call.1} parent=5 // pred_fallthru
        _
      %p172 = scmp.le.s32.totalorder 1, %s13
      %p173 = scmp.lt.s32.totalorder %s13, 3
      %p174 = pnand %p172, %p173
      %p175 = pneg %p174
      // Predicated region
      $region33: #{tpu_custom_call.1} parent=5 // pred_check
        _
      $region34: #{tpu_custom_call.1} parent=5 // pred_check_branch
        %177 = sbr.rel (%p174) target = $region36
      $region35: #{tpu_custom_call.1} parent=5 // pred_region
        %s178 = ssub.s32 %s13, 1
        %p179 = scmp.lt.s32.totalorder %s18, 1
        %s180 = scalar_select %p179, %s18, 1
        %s181 = smul.addr %s180, 2
        %s182 = scalar_lea.vmem %s0, %s181
        %p183 = pneg %p39
        %p184 = pneg %p36
        %p185 = scmp.lt.s32.totalorder %s18, 1
        %s186 = scalar_select %p185, %s18, 1
        %s187 = smul.addr %s186, 2
        %s188 = scalar_lea.vmem %s1, %s187
        %p189 = pneg %p65
        %p190 = pneg %p62
        %p191 = pneg %p86
        %p192 = pneg %p83
        %p193 = pneg %p107
        %p194 = pneg %p104
        %p195 = pneg %p133
        %p196 = pneg %p130
        %s197 = sand.u32 %s120, 1
        %s198 = scalar_lea.sflag [#allocation3], %s197
        %s199 = sand.u32 %s120, 1
        %s200 = smul.addr %s199, 256
        %s201 = scalar_lea.vmem [#allocation2], %s200
        %p202 = scmp.lt.s32.totalorder %s18, 1
        %s203 = scalar_select %p202, %s18, 1
        %s204 = smul.addr %s203, 2
        %s205 = scalar_lea.vmem %s0, %s204
        %p206 = scmp.lt.s32.totalorder %s18, 1
        %s207 = scalar_select %p206, %s18, 1
        %s208 = smul.addr %s207, 2
        %s209 = scalar_lea.vmem %s1, %s208
        %v210 = vld [vmem:[%s2] sm:$0xff]
        %v211 = vld [vmem:[%s2 + $0x8] sm:$0xff]
        %v212 = vld [vmem:[%s2 + $0x10] sm:$0xff]
        %v213 = vld [vmem:[%s2 + $0x18] sm:$0xff]
        %v214 = vld [vmem:[%s2 + $0x20] sm:$0xff]
        %v215 = vld [vmem:[%s2 + $0x28] sm:$0xff]
        %v216 = vld [vmem:[%s2 + $0x30] sm:$0xff]
        %v217 = vld [vmem:[%s2 + $0x38] sm:$0xff]
        %v218 = vld [vmem:[%s3] sm:$0xff]
        %v219 = vld [vmem:[%s3 + $0x8] sm:$0xff]
        %v220 = vld [vmem:[%s3 + $0x10] sm:$0xff]
        %v221 = vld [vmem:[%s3 + $0x18] sm:$0xff]
        %v222 = vld [vmem:[%s3 + $0x20] sm:$0xff]
        %v223 = vld [vmem:[%s3 + $0x28] sm:$0xff]
        %v224 = vld [vmem:[%s3 + $0x30] sm:$0xff]
        %v225 = vld [vmem:[%s3 + $0x38] sm:$0xff]
        %v226 = vld [vmem:[%s205] sm:$0x3]
        %v227 = vld [vmem:[%s209] sm:$0x3]
        %v229 = vlaneseq
        %v230 = vshrl.u32 %v229, 7
        %v231 = vsub.s32 0, %v230
        %v232 = vrot.slane %v226, %v231
        %v233 = vlaneseq
        %v234 = vshrl.u32 %v233, 7
        %v235 = vsub.s32 1, %v234
        %v236 = vrot.slane %v226, %v235
        %240 = vset.pattern.permute.xlu0 0
        %241 = vperm.xlu0 %240, %v210
        %v242 = vpop.permute.xlu0 %241
        %245 = vset.pattern.permute.xlu0 0
        %246 = vperm.xlu0 %245, %v211
        %v247 = vpop.permute.xlu0 %246
        %250 = vset.pattern.permute.xlu0 0
        %251 = vperm.xlu0 %250, %v212
        %v252 = vpop.permute.xlu0 %251
        %255 = vset.pattern.permute.xlu0 0
        %256 = vperm.xlu0 %255, %v213
        %v257 = vpop.permute.xlu0 %256
        %260 = vset.pattern.permute.xlu0 0
        %261 = vperm.xlu0 %260, %v214
        %v262 = vpop.permute.xlu0 %261
        %265 = vset.pattern.permute.xlu0 0
        %266 = vperm.xlu0 %265, %v215
        %v267 = vpop.permute.xlu0 %266
        %270 = vset.pattern.permute.xlu0 0
        %271 = vperm.xlu0 %270, %v216
        %v272 = vpop.permute.xlu0 %271
        %275 = vset.pattern.permute.xlu0 0
        %276 = vperm.xlu0 %275, %v217
        %v277 = vpop.permute.xlu0 %276
        %v279 = vmul.f32 %v232, %v242
        %v280 = vmul.f32 %v236, %v242
        %v281 = vmul.f32 %v232, %v247
        %v282 = vmul.f32 %v236, %v247
        %v283 = vmul.f32 %v232, %v252
        %v284 = vmul.f32 %v236, %v252
        %v285 = vmul.f32 %v232, %v257
        %v286 = vmul.f32 %v236, %v257
        %v287 = vmul.f32 %v232, %v262
        %v288 = vmul.f32 %v236, %v262
        %v289 = vmul.f32 %v232, %v267
        %v290 = vmul.f32 %v236, %v267
        %v291 = vmul.f32 %v232, %v272
        %v292 = vmul.f32 %v236, %v272
        %v293 = vmul.f32 %v232, %v277
        %v294 = vmul.f32 %v236, %v277
        %296 = vset.pattern.permute.xlu0 0
        %297 = vperm.xlu0 %296, %v218
        %v298 = vpop.permute.xlu0 %297
        %301 = vset.pattern.permute.xlu0 0
        %302 = vperm.xlu0 %301, %v219
        %v303 = vpop.permute.xlu0 %302
        %306 = vset.pattern.permute.xlu0 0
        %307 = vperm.xlu0 %306, %v220
        %v308 = vpop.permute.xlu0 %307
        %311 = vset.pattern.permute.xlu0 0
        %312 = vperm.xlu0 %311, %v221
        %v313 = vpop.permute.xlu0 %312
        %316 = vset.pattern.permute.xlu0 0
        %317 = vperm.xlu0 %316, %v222
        %v318 = vpop.permute.xlu0 %317
        %321 = vset.pattern.permute.xlu0 0
        %322 = vperm.xlu0 %321, %v223
        %v323 = vpop.permute.xlu0 %322
        %326 = vset.pattern.permute.xlu0 0
        %327 = vperm.xlu0 %326, %v224
        %v328 = vpop.permute.xlu0 %327
        %331 = vset.pattern.permute.xlu0 0
        %332 = vperm.xlu0 %331, %v225
        %v333 = vpop.permute.xlu0 %332
        %v335 = vadd.f32 %v279, %v298
        %v336 = vadd.f32 %v280, %v298
        %v337 = vadd.f32 %v281, %v303
        %v338 = vadd.f32 %v282, %v303
        %v339 = vadd.f32 %v283, %v308
        %v340 = vadd.f32 %v284, %v308
        %v341 = vadd.f32 %v285, %v313
        %v342 = vadd.f32 %v286, %v313
        %v343 = vadd.f32 %v287, %v318
        %v344 = vadd.f32 %v288, %v318
        %v345 = vadd.f32 %v289, %v323
        %v346 = vadd.f32 %v290, %v323
        %v347 = vadd.f32 %v291, %v328
        %v348 = vadd.f32 %v292, %v328
        %v349 = vadd.f32 %v293, %v333
        %v350 = vadd.f32 %v294, %v333
        %v351 = vand.u32 2147483647, %v335
        %vm352 = vcmp.le.f32.partialorder %v351, 0.7853982
        %vm353 = vcmp.lt.s32.totalorder %v335, 0
        %v354 = vand.u32 %v335, 2139095040
        %v355 = vshrl.u32 %v354, 23
        %v356 = vsub.s32 %v355, 127
        %v357 = vand.u32 2147483647, %v335
        %v358 = vand.u32 %v357, 8388607
        %v359 = vor.u32 %v358, 8388608
        %v360 = vsub.s32 0, %v359
        %v361 = vadd.s32 %v356, 1
        %vm362 = vcmp.gt.s32.totalorder %v361, 0
        %v363 = vsel %vm362, %v361, 0
        %v364 = vshrl.u32 %v363, 5
        %v365 = vand.u32 %v363, 31
        %v366 = vsub.s32 32, %v365
        %v367 = vshrl.u32 683565275, %v366
        %v368 = vshll.u32 683565275, %v365
        %v369 = vshrl.u32 2475754826, %v366
        %v370 = vor.u32 %v368, %v369
        %v371 = vshll.u32 2475754826, %v365
        %v372 = vshrl.u32 2131351028, %v366
        %v373 = vor.u32 %v371, %v372
        %v374 = vshll.u32 2131351028, %v365
        %v375 = vshrl.u32 2102212464, %v366
        %v376 = vor.u32 %v374, %v375
        %v377 = vshll.u32 2102212464, %v365
        %v378 = vshrl.u32 920167782, %v366
        %v379 = vor.u32 %v377, %v378
        %v380 = vshll.u32 920167782, %v365
        %v381 = vshrl.u32 1326507024, %v366
        %v382 = vor.u32 %v380, %v381
        %vm383 = vcmp.lt.s32.totalorder %v364, 1
        %vm384 = vcmp.lt.s32.totalorder %v364, 2
        %vm385 = vcmp.lt.s32.totalorder %v364, 3
        %vm386 = vcmp.lt.s32.totalorder %v364, 4
        %v387 = vsel %vm383, %v367, %v370
        %v388 = vsel %vm386, %v376, 2102212464
        %v389 = vsel %vm385, %v373, %v388
        %v390 = vsel %vm384, %v387, %v389
        %v391 = vsel %vm383, %v370, %v373
        %v392 = vsel %vm386, %v379, 920167782
        %v393 = vsel %vm385, %v376, %v392
        %v394 = vsel %vm384, %v391, %v393
        %v395 = vsel %vm383, %v373, %v376
        %v396 = vsel %vm386, %v382, 1326507024
        %v397 = vsel %vm385, %v379, %v396
        %v398 = vsel %vm384, %v395, %v397
        %v399 = vshll.u32 %v359, 8
        %v400 = vmul.u32.u64.compose %v399, %v398
        %v401 = vextract.low.u32 %v400
        %v402 = vextract.high.u32 %v400
        %v403 = vmul.u32.u64.compose %v399, %v394
        %v404 = vextract.low.u32 %v403
        %v405 = vextract.high.u32 %v403
        %v406 = vmul.u32 %v399, %v390
        %v407 = vadd.s32 %v402, %v404
        %vm408 = vc.u32 %v402, %v404
        %v409 = vadd.s32 %v405, 1
        %v410 = vsel %vm408, %v409, %v405
        %v411 = vadd.s32 %v406, %v410
        %v412 = vadd.s32 %v411, 536870912
        %v413 = vshrl.u32 %v412, 30
        %v414 = vshll.u32 %v413, 30
        %v415 = vsub.s32 %v411, %v414
        %vm416 = vcmp.lt.s32.totalorder %v415, 0
        %v417 = vsub.s32 0, %v415
        %v418 = vsel %vm416, %v417, %v415
        %v419 = vclz %v418
        %v420 = vsub.s32 %v419, 2
        %vm421 = vcmp.gt.s32.totalorder 0, %v420
        %v422 = vsel %vm421, 0, %v420
        %v423 = vsub.s32 32, %v422
        %v424 = vshll.u32 %v415, %v422
        %v425 = vshrl.u32 %v407, %v423
        %v426 = vor.u32 %v424, %v425
        %v427 = vsub.s32 4294967266, %v422
        %v428 = vadd.s32 %v427, 127
        %v429 = vshll.u32 %v428, 23
        %v430 = vor.u32 4788187, %v429
        %v431 = vand.u32 2147483647, %v430
        %v433 = vcvt.s32.f32 %v426
        %v434 = vmul.f32 %v433, %v431
        %v435 = vxor.u32 %v434, 2147483648
        %v436 = vsel %vm353, %v435, %v434
        %v437 = vsub.s32 4, %v413
        %v438 = vsel %vm353, %v437, %v413
        %v439 = vsel %vm352, %v335, %v436
        %v440 = vsel %vm352, 0, %v438
        %v441 = vcosq.f32.pop %v439
        %v442 = vsinq.f32.pop %v439
        %vm443 = vweird.f32 %v335
        %v444 = vadd.s32 %v440, 3
        %v445 = vand.u32 %v444, 3
        %vm446 = vcmp.lt.s32.totalorder %v445, 2
        %vm447 = vcmp.eq.s32.totalorder %v445, 0
        %v448 = vxor.u32 %v442, 2147483648
        %v449 = vsel %vm447, %v441, %v448
        %vm450 = vcmp.eq.s32.totalorder %v445, 2
        %v451 = vxor.u32 %v441, 2147483648
        %v452 = vsel %vm450, %v451, %v442
        %v453 = vsel %vm446, %v449, %v452
        %v454 = vsel %vm443, nan, %v453
        %v455 = vand.u32 2147483647, %v336
        %vm456 = vcmp.le.f32.partialorder %v455, 0.7853982
        %vm457 = vcmp.lt.s32.totalorder %v336, 0
        %v458 = vand.u32 %v336, 2139095040
        %v459 = vshrl.u32 %v458, 23
        %v460 = vsub.s32 %v459, 127
        %v461 = vand.u32 2147483647, %v336
        %v462 = vand.u32 %v461, 8388607
        %v463 = vor.u32 %v462, 8388608
        %v464 = vsub.s32 0, %v463
        %v465 = vadd.s32 %v460, 1
        %vm466 = vcmp.gt.s32.totalorder %v465, 0
        %v467 = vsel %vm466, %v465, 0
        %v468 = vshrl.u32 %v467, 5
        %v469 = vand.u32 %v467, 31
        %v470 = vsub.s32 32, %v469
        %v471 = vshrl.u32 683565275, %v470
        %v472 = vshll.u32 683565275, %v469
        %v473 = vshrl.u32 2475754826, %v470
        %v474 = vor.u32 %v472, %v473
        %v475 = vshll.u32 2475754826, %v469
        %v476 = vshrl.u32 2131351028, %v470
        %v477 = vor.u32 %v475, %v476
        %v478 = vshll.u32 2131351028, %v469
        %v479 = vshrl.u32 2102212464, %v470
        %v480 = vor.u32 %v478, %v479
        %v481 = vshll.u32 2102212464, %v469
        %v482 = vshrl.u32 920167782, %v470
        %v483 = vor.u32 %v481, %v482
        %v484 = vshll.u32 920167782, %v469
        %v485 = vshrl.u32 1326507024, %v470
        %v486 = vor.u32 %v484, %v485
        %vm487 = vcmp.lt.s32.totalorder %v468, 1
        %vm488 = vcmp.lt.s32.totalorder %v468, 2
        %vm489 = vcmp.lt.s32.totalorder %v468, 3
        %vm490 = vcmp.lt.s32.totalorder %v468, 4
        %v491 = vsel %vm487, %v471, %v474
        %v492 = vsel %vm490, %v480, 2102212464
        %v493 = vsel %vm489, %v477, %v492
        %v494 = vsel %vm488, %v491, %v493
        %v495 = vsel %vm487, %v474, %v477
        %v496 = vsel %vm490, %v483, 920167782
        %v497 = vsel %vm489, %v480, %v496
        %v498 = vsel %vm488, %v495, %v497
        %v499 = vsel %vm487, %v477, %v480
        %v500 = vsel %vm490, %v486, 1326507024
        %v501 = vsel %vm489, %v483, %v500
        %v502 = vsel %vm488, %v499, %v501
        %v503 = vshll.u32 %v463, 8
        %v504 = vmul.u32.u64.compose %v503, %v502
        %v505 = vextract.low.u32 %v504
        %v506 = vextract.high.u32 %v504
        %v507 = vmul.u32.u64.compose %v503, %v498
        %v508 = vextract.low.u32 %v507
        %v509 = vextract.high.u32 %v507
        %v510 = vmul.u32 %v503, %v494
        %v511 = vadd.s32 %v506, %v508
        %vm512 = vc.u32 %v506, %v508
        %v513 = vadd.s32 %v509, 1
        %v514 = vsel %vm512, %v513, %v509
        %v515 = vadd.s32 %v510, %v514
        %v516 = vadd.s32 %v515, 536870912
        %v517 = vshrl.u32 %v516, 30
        %v518 = vshll.u32 %v517, 30
        %v519 = vsub.s32 %v515, %v518
        %vm520 = vcmp.lt.s32.totalorder %v519, 0
        %v521 = vsub.s32 0, %v519
        %v522 = vsel %vm520, %v521, %v519
        %v523 = vclz %v522
        %v524 = vsub.s32 %v523, 2
        %vm525 = vcmp.gt.s32.totalorder 0, %v524
        %v526 = vsel %vm525, 0, %v524
        %v527 = vsub.s32 32, %v526
        %v528 = vshll.u32 %v519, %v526
        %v529 = vshrl.u32 %v511, %v527
        %v530 = vor.u32 %v528, %v529
        %v531 = vsub.s32 4294967266, %v526
        %v532 = vadd.s32 %v531, 127
        %v533 = vshll.u32 %v532, 23
        %v534 = vor.u32 4788187, %v533
        %v535 = vand.u32 2147483647, %v534
        %v537 = vcvt.s32.f32 %v530
        %v538 = vmul.f32 %v537, %v535
        %v539 = vxor.u32 %v538, 2147483648
        %v540 = vsel %vm457, %v539, %v538
        %v541 = vsub.s32 4, %v517
        %v542 = vsel %vm457, %v541, %v517
        %v543 = vsel %vm456, %v336, %v540
        %v544 = vsel %vm456, 0, %v542
        %v545 = vcosq.f32.pop %v543
        %v546 = vsinq.f32.pop %v543
        %vm547 = vweird.f32 %v336
        %v548 = vadd.s32 %v544, 3
        %v549 = vand.u32 %v548, 3
        %vm550 = vcmp.lt.s32.totalorder %v549, 2
        %vm551 = vcmp.eq.s32.totalorder %v549, 0
        %v552 = vxor.u32 %v546, 2147483648
        %v553 = vsel %vm551, %v545, %v552
        %vm554 = vcmp.eq.s32.totalorder %v549, 2
        %v555 = vxor.u32 %v545, 2147483648
        %v556 = vsel %vm554, %v555, %v546
        %v557 = vsel %vm550, %v553, %v556
        %v558 = vsel %vm547, nan, %v557
        %v559 = vand.u32 2147483647, %v337
        %vm560 = vcmp.le.f32.partialorder %v559, 0.7853982
        %vm561 = vcmp.lt.s32.totalorder %v337, 0
        %v562 = vand.u32 %v337, 2139095040
        %v563 = vshrl.u32 %v562, 23
        %v564 = vsub.s32 %v563, 127
        %v565 = vand.u32 2147483647, %v337
        %v566 = vand.u32 %v565, 8388607
        %v567 = vor.u32 %v566, 8388608
        %v568 = vsub.s32 0, %v567
        %v569 = vadd.s32 %v564, 1
        %vm570 = vcmp.gt.s32.totalorder %v569, 0
        %v571 = vsel %vm570, %v569, 0
        %v572 = vshrl.u32 %v571, 5
        %v573 = vand.u32 %v571, 31
        %v574 = vsub.s32 32, %v573
        %v575 = vshrl.u32 683565275, %v574
        %v576 = vshll.u32 683565275, %v573
        %v577 = vshrl.u32 2475754826, %v574
        %v578 = vor.u32 %v576, %v577
        %v579 = vshll.u32 2475754826, %v573
        %v580 = vshrl.u32 2131351028, %v574
        %v581 = vor.u32 %v579, %v580
        %v582 = vshll.u32 2131351028, %v573
        %v583 = vshrl.u32 2102212464, %v574
        %v584 = vor.u32 %v582, %v583
        %v585 = vshll.u32 2102212464, %v573
        %v586 = vshrl.u32 920167782, %v574
        %v587 = vor.u32 %v585, %v586
        %v588 = vshll.u32 920167782, %v573
        %v589 = vshrl.u32 1326507024, %v574
        %v590 = vor.u32 %v588, %v589
        %vm591 = vcmp.lt.s32.totalorder %v572, 1
        %vm592 = vcmp.lt.s32.totalorder %v572, 2
        %vm593 = vcmp.lt.s32.totalorder %v572, 3
        %vm594 = vcmp.lt.s32.totalorder %v572, 4
        %v595 = vsel %vm591, %v575, %v578
        %v596 = vsel %vm594, %v584, 2102212464
        %v597 = vsel %vm593, %v581, %v596
        %v598 = vsel %vm592, %v595, %v597
        %v599 = vsel %vm591, %v578, %v581
        %v600 = vsel %vm594, %v587, 920167782
        %v601 = vsel %vm593, %v584, %v600
        %v602 = vsel %vm592, %v599, %v601
        %v603 = vsel %vm591, %v581, %v584
        %v604 = vsel %vm594, %v590, 1326507024
        %v605 = vsel %vm593, %v587, %v604
        %v606 = vsel %vm592, %v603, %v605
        %v607 = vshll.u32 %v567, 8
        %v608 = vmul.u32.u64.compose %v607, %v606
        %v609 = vextract.low.u32 %v608
        %v610 = vextract.high.u32 %v608
        %v611 = vmul.u32.u64.compose %v607, %v602
        %v612 = vextract.low.u32 %v611
        %v613 = vextract.high.u32 %v611
        %v614 = vmul.u32 %v607, %v598
        %v615 = vadd.s32 %v610, %v612
        %vm616 = vc.u32 %v610, %v612
        %v617 = vadd.s32 %v613, 1
        %v618 = vsel %vm616, %v617, %v613
        %v619 = vadd.s32 %v614, %v618
        %v620 = vadd.s32 %v619, 536870912
        %v621 = vshrl.u32 %v620, 30
        %v622 = vshll.u32 %v621, 30
        %v623 = vsub.s32 %v619, %v622
        %vm624 = vcmp.lt.s32.totalorder %v623, 0
        %v625 = vsub.s32 0, %v623
        %v626 = vsel %vm624, %v625, %v623
        %v627 = vclz %v626
        %v628 = vsub.s32 %v627, 2
        %vm629 = vcmp.gt.s32.totalorder 0, %v628
        %v630 = vsel %vm629, 0, %v628
        %v631 = vsub.s32 32, %v630
        %v632 = vshll.u32 %v623, %v630
        %v633 = vshrl.u32 %v615, %v631
        %v634 = vor.u32 %v632, %v633
        %v635 = vsub.s32 4294967266, %v630
        %v636 = vadd.s32 %v635, 127
        %v637 = vshll.u32 %v636, 23
        %v638 = vor.u32 4788187, %v637
        %v639 = vand.u32 2147483647, %v638
        %v641 = vcvt.s32.f32 %v634
        %v642 = vmul.f32 %v641, %v639
        %v643 = vxor.u32 %v642, 2147483648
        %v644 = vsel %vm561, %v643, %v642
        %v645 = vsub.s32 4, %v621
        %v646 = vsel %vm561, %v645, %v621
        %v647 = vsel %vm560, %v337, %v644
        %v648 = vsel %vm560, 0, %v646
        %v649 = vcosq.f32.pop %v647
        %v650 = vsinq.f32.pop %v647
        %vm651 = vweird.f32 %v337
        %v652 = vadd.s32 %v648, 3
        %v653 = vand.u32 %v652, 3
        %vm654 = vcmp.lt.s32.totalorder %v653, 2
        %vm655 = vcmp.eq.s32.totalorder %v653, 0
        %v656 = vxor.u32 %v650, 2147483648
        %v657 = vsel %vm655, %v649, %v656
        %vm658 = vcmp.eq.s32.totalorder %v653, 2
        %v659 = vxor.u32 %v649, 2147483648
        %v660 = vsel %vm658, %v659, %v650
        %v661 = vsel %vm654, %v657, %v660
        %v662 = vsel %vm651, nan, %v661
        %v663 = vand.u32 2147483647, %v338
        %vm664 = vcmp.le.f32.partialorder %v663, 0.7853982
        %vm665 = vcmp.lt.s32.totalorder %v338, 0
        %v666 = vand.u32 %v338, 2139095040
        %v667 = vshrl.u32 %v666, 23
        %v668 = vsub.s32 %v667, 127
        %v669 = vand.u32 2147483647, %v338
        %v670 = vand.u32 %v669, 8388607
        %v671 = vor.u32 %v670, 8388608
        %v672 = vsub.s32 0, %v671
        %v673 = vadd.s32 %v668, 1
        %vm674 = vcmp.gt.s32.totalorder %v673, 0
        %v675 = vsel %vm674, %v673, 0
        %v676 = vshrl.u32 %v675, 5
        %v677 = vand.u32 %v675, 31
        %v678 = vsub.s32 32, %v677
        %v679 = vshrl.u32 683565275, %v678
        %v680 = vshll.u32 683565275, %v677
        %v681 = vshrl.u32 2475754826, %v678
        %v682 = vor.u32 %v680, %v681
        %v683 = vshll.u32 2475754826, %v677
        %v684 = vshrl.u32 2131351028, %v678
        %v685 = vor.u32 %v683, %v684
        %v686 = vshll.u32 2131351028, %v677
        %v687 = vshrl.u32 2102212464, %v678
        %v688 = vor.u32 %v686, %v687
        %v689 = vshll.u32 2102212464, %v677
        %v690 = vshrl.u32 920167782, %v678
        %v691 = vor.u32 %v689, %v690
        %v692 = vshll.u32 920167782, %v677
        %v693 = vshrl.u32 1326507024, %v678
        %v694 = vor.u32 %v692, %v693
        %vm695 = vcmp.lt.s32.totalorder %v676, 1
        %vm696 = vcmp.lt.s32.totalorder %v676, 2
        %vm697 = vcmp.lt.s32.totalorder %v676, 3
        %vm698 = vcmp.lt.s32.totalorder %v676, 4
        %v699 = vsel %vm695, %v679, %v682
        %v700 = vsel %vm698, %v688, 2102212464
        %v701 = vsel %vm697, %v685, %v700
        %v702 = vsel %vm696, %v699, %v701
        %v703 = vsel %vm695, %v682, %v685
        %v704 = vsel %vm698, %v691, 920167782
        %v705 = vsel %vm697, %v688, %v704
        %v706 = vsel %vm696, %v703, %v705
        %v707 = vsel %vm695, %v685, %v688
        %v708 = vsel %vm698, %v694, 1326507024
        %v709 = vsel %vm697, %v691, %v708
        %v710 = vsel %vm696, %v707, %v709
        %v711 = vshll.u32 %v671, 8
        %v712 = vmul.u32.u64.compose %v711, %v710
        %v713 = vextract.low.u32 %v712
        %v714 = vextract.high.u32 %v712
        %v715 = vmul.u32.u64.compose %v711, %v706
        %v716 = vextract.low.u32 %v715
        %v717 = vextract.high.u32 %v715
        %v718 = vmul.u32 %v711, %v702
        %v719 = vadd.s32 %v714, %v716
        %vm720 = vc.u32 %v714, %v716
        %v721 = vadd.s32 %v717, 1
        %v722 = vsel %vm720, %v721, %v717
        %v723 = vadd.s32 %v718, %v722
        %v724 = vadd.s32 %v723, 536870912
        %v725 = vshrl.u32 %v724, 30
        %v726 = vshll.u32 %v725, 30
        %v727 = vsub.s32 %v723, %v726
        %vm728 = vcmp.lt.s32.totalorder %v727, 0
        %v729 = vsub.s32 0, %v727
        %v730 = vsel %vm728, %v729, %v727
        %v731 = vclz %v730
        %v732 = vsub.s32 %v731, 2
        %vm733 = vcmp.gt.s32.totalorder 0, %v732
        %v734 = vsel %vm733, 0, %v732
        %v735 = vsub.s32 32, %v734
        %v736 = vshll.u32 %v727, %v734
        %v737 = vshrl.u32 %v719, %v735
        %v738 = vor.u32 %v736, %v737
        %v739 = vsub.s32 4294967266, %v734
        %v740 = vadd.s32 %v739, 127
        %v741 = vshll.u32 %v740, 23
        %v742 = vor.u32 4788187, %v741
        %v743 = vand.u32 2147483647, %v742
        %v745 = vcvt.s32.f32 %v738
        %v746 = vmul.f32 %v745, %v743
        %v747 = vxor.u32 %v746, 2147483648
        %v748 = vsel %vm665, %v747, %v746
        %v749 = vsub.s32 4, %v725
        %v750 = vsel %vm665, %v749, %v725
        %v751 = vsel %vm664, %v338, %v748
        %v752 = vsel %vm664, 0, %v750
        %v753 = vcosq.f32.pop %v751
        %v754 = vsinq.f32.pop %v751
        %vm755 = vweird.f32 %v338
        %v756 = vadd.s32 %v752, 3
        %v757 = vand.u32 %v756, 3
        %vm758 = vcmp.lt.s32.totalorder %v757, 2
        %vm759 = vcmp.eq.s32.totalorder %v757, 0
        %v760 = vxor.u32 %v754, 2147483648
        %v761 = vsel %vm759, %v753, %v760
        %vm762 = vcmp.eq.s32.totalorder %v757, 2
        %v763 = vxor.u32 %v753, 2147483648
        %v764 = vsel %vm762, %v763, %v754
        %v765 = vsel %vm758, %v761, %v764
        %v766 = vsel %vm755, nan, %v765
        %v767 = vand.u32 2147483647, %v339
        %vm768 = vcmp.le.f32.partialorder %v767, 0.7853982
        %vm769 = vcmp.lt.s32.totalorder %v339, 0
        %v770 = vand.u32 %v339, 2139095040
        %v771 = vshrl.u32 %v770, 23
        %v772 = vsub.s32 %v771, 127
        %v773 = vand.u32 2147483647, %v339
        %v774 = vand.u32 %v773, 8388607
        %v775 = vor.u32 %v774, 8388608
        %v776 = vsub.s32 0, %v775
        %v777 = vadd.s32 %v772, 1
        %vm778 = vcmp.gt.s32.totalorder %v777, 0
        %v779 = vsel %vm778, %v777, 0
        %v780 = vshrl.u32 %v779, 5
        %v781 = vand.u32 %v779, 31
        %v782 = vsub.s32 32, %v781
        %v783 = vshrl.u32 683565275, %v782
        %v784 = vshll.u32 683565275, %v781
        %v785 = vshrl.u32 2475754826, %v782
        %v786 = vor.u32 %v784, %v785
        %v787 = vshll.u32 2475754826, %v781
        %v788 = vshrl.u32 2131351028, %v782
        %v789 = vor.u32 %v787, %v788
        %v790 = vshll.u32 2131351028, %v781
        %v791 = vshrl.u32 2102212464, %v782
        %v792 = vor.u32 %v790, %v791
        %v793 = vshll.u32 2102212464, %v781
        %v794 = vshrl.u32 920167782, %v782
        %v795 = vor.u32 %v793, %v794
        %v796 = vshll.u32 920167782, %v781
        %v797 = vshrl.u32 1326507024, %v782
        %v798 = vor.u32 %v796, %v797
        %vm799 = vcmp.lt.s32.totalorder %v780, 1
        %vm800 = vcmp.lt.s32.totalorder %v780, 2
        %vm801 = vcmp.lt.s32.totalorder %v780, 3
        %vm802 = vcmp.lt.s32.totalorder %v780, 4
        %v803 = vsel %vm799, %v783, %v786
        %v804 = vsel %vm802, %v792, 2102212464
        %v805 = vsel %vm801, %v789, %v804
        %v806 = vsel %vm800, %v803, %v805
        %v807 = vsel %vm799, %v786, %v789
        %v808 = vsel %vm802, %v795, 920167782
        %v809 = vsel %vm801, %v792, %v808
        %v810 = vsel %vm800, %v807, %v809
        %v811 = vsel %vm799, %v789, %v792
        %v812 = vsel %vm802, %v798, 1326507024
        %v813 = vsel %vm801, %v795, %v812
        %v814 = vsel %vm800, %v811, %v813
        %v815 = vshll.u32 %v775, 8
        %v816 = vmul.u32.u64.compose %v815, %v814
        %v817 = vextract.low.u32 %v816
        %v818 = vextract.high.u32 %v816
        %v819 = vmul.u32.u64.compose %v815, %v810
        %v820 = vextract.low.u32 %v819
        %v821 = vextract.high.u32 %v819
        %v822 = vmul.u32 %v815, %v806
        %v823 = vadd.s32 %v818, %v820
        %vm824 = vc.u32 %v818, %v820
        %v825 = vadd.s32 %v821, 1
        %v826 = vsel %vm824, %v825, %v821
        %v827 = vadd.s32 %v822, %v826
        %v828 = vadd.s32 %v827, 536870912
        %v829 = vshrl.u32 %v828, 30
        %v830 = vshll.u32 %v829, 30
        %v831 = vsub.s32 %v827, %v830
        %vm832 = vcmp.lt.s32.totalorder %v831, 0
        %v833 = vsub.s32 0, %v831
        %v834 = vsel %vm832, %v833, %v831
        %v835 = vclz %v834
        %v836 = vsub.s32 %v835, 2
        %vm837 = vcmp.gt.s32.totalorder 0, %v836
        %v838 = vsel %vm837, 0, %v836
        %v839 = vsub.s32 32, %v838
        %v840 = vshll.u32 %v831, %v838
        %v841 = vshrl.u32 %v823, %v839
        %v842 = vor.u32 %v840, %v841
        %v843 = vsub.s32 4294967266, %v838
        %v844 = vadd.s32 %v843, 127
        %v845 = vshll.u32 %v844, 23
        %v846 = vor.u32 4788187, %v845
        %v847 = vand.u32 2147483647, %v846
        %v849 = vcvt.s32.f32 %v842
        %v850 = vmul.f32 %v849, %v847
        %v851 = vxor.u32 %v850, 2147483648
        %v852 = vsel %vm769, %v851, %v850
        %v853 = vsub.s32 4, %v829
        %v854 = vsel %vm769, %v853, %v829
        %v855 = vsel %vm768, %v339, %v852
        %v856 = vsel %vm768, 0, %v854
        %v857 = vcosq.f32.pop %v855
        %v858 = vsinq.f32.pop %v855
        %vm859 = vweird.f32 %v339
        %v860 = vadd.s32 %v856, 3
        %v861 = vand.u32 %v860, 3
        %vm862 = vcmp.lt.s32.totalorder %v861, 2
        %vm863 = vcmp.eq.s32.totalorder %v861, 0
        %v864 = vxor.u32 %v858, 2147483648
        %v865 = vsel %vm863, %v857, %v864
        %vm866 = vcmp.eq.s32.totalorder %v861, 2
        %v867 = vxor.u32 %v857, 2147483648
        %v868 = vsel %vm866, %v867, %v858
        %v869 = vsel %vm862, %v865, %v868
        %v870 = vsel %vm859, nan, %v869
        %v871 = vand.u32 2147483647, %v340
        %vm872 = vcmp.le.f32.partialorder %v871, 0.7853982
        %vm873 = vcmp.lt.s32.totalorder %v340, 0
        %v874 = vand.u32 %v340, 2139095040
        %v875 = vshrl.u32 %v874, 23
        %v876 = vsub.s32 %v875, 127
        %v877 = vand.u32 2147483647, %v340
        %v878 = vand.u32 %v877, 8388607
        %v879 = vor.u32 %v878, 8388608
        %v880 = vsub.s32 0, %v879
        %v881 = vadd.s32 %v876, 1
        %vm882 = vcmp.gt.s32.totalorder %v881, 0
        %v883 = vsel %vm882, %v881, 0
        %v884 = vshrl.u32 %v883, 5
        %v885 = vand.u32 %v883, 31
        %v886 = vsub.s32 32, %v885
        %v887 = vshrl.u32 683565275, %v886
        %v888 = vshll.u32 683565275, %v885
        %v889 = vshrl.u32 2475754826, %v886
        %v890 = vor.u32 %v888, %v889
        %v891 = vshll.u32 2475754826, %v885
        %v892 = vshrl.u32 2131351028, %v886
        %v893 = vor.u32 %v891, %v892
        %v894 = vshll.u32 2131351028, %v885
        %v895 = vshrl.u32 2102212464, %v886
        %v896 = vor.u32 %v894, %v895
        %v897 = vshll.u32 2102212464, %v885
        %v898 = vshrl.u32 920167782, %v886
        %v899 = vor.u32 %v897, %v898
        %v900 = vshll.u32 920167782, %v885
        %v901 = vshrl.u32 1326507024, %v886
        %v902 = vor.u32 %v900, %v901
        %vm903 = vcmp.lt.s32.totalorder %v884, 1
        %vm904 = vcmp.lt.s32.totalorder %v884, 2
        %vm905 = vcmp.lt.s32.totalorder %v884, 3
        %vm906 = vcmp.lt.s32.totalorder %v884, 4
        %v907 = vsel %vm903, %v887, %v890
        %v908 = vsel %vm906, %v896, 2102212464
        %v909 = vsel %vm905, %v893, %v908
        %v910 = vsel %vm904, %v907, %v909
        %v911 = vsel %vm903, %v890, %v893
        %v912 = vsel %vm906, %v899, 920167782
        %v913 = vsel %vm905, %v896, %v912
        %v914 = vsel %vm904, %v911, %v913
        %v915 = vsel %vm903, %v893, %v896
        %v916 = vsel %vm906, %v902, 1326507024
        %v917 = vsel %vm905, %v899, %v916
        %v918 = vsel %vm904, %v915, %v917
        %v919 = vshll.u32 %v879, 8
        %v920 = vmul.u32.u64.compose %v919, %v918
        %v921 = vextract.low.u32 %v920
        %v922 = vextract.high.u32 %v920
        %v923 = vmul.u32.u64.compose %v919, %v914
        %v924 = vextract.low.u32 %v923
        %v925 = vextract.high.u32 %v923
        %v926 = vmul.u32 %v919, %v910
        %v927 = vadd.s32 %v922, %v924
        %vm928 = vc.u32 %v922, %v924
        %v929 = vadd.s32 %v925, 1
        %v930 = vsel %vm928, %v929, %v925
        %v931 = vadd.s32 %v926, %v930
        %v932 = vadd.s32 %v931, 536870912
        %v933 = vshrl.u32 %v932, 30
        %v934 = vshll.u32 %v933, 30
        %v935 = vsub.s32 %v931, %v934
        %vm936 = vcmp.lt.s32.totalorder %v935, 0
        %v937 = vsub.s32 0, %v935
        %v938 = vsel %vm936, %v937, %v935
        %v939 = vclz %v938
        %v940 = vsub.s32 %v939, 2
        %vm941 = vcmp.gt.s32.totalorder 0, %v940
        %v942 = vsel %vm941, 0, %v940
        %v943 = vsub.s32 32, %v942
        %v944 = vshll.u32 %v935, %v942
        %v945 = vshrl.u32 %v927, %v943
        %v946 = vor.u32 %v944, %v945
        %v947 = vsub.s32 4294967266, %v942
        %v948 = vadd.s32 %v947, 127
        %v949 = vshll.u32 %v948, 23
        %v950 = vor.u32 4788187, %v949
        %v951 = vand.u32 2147483647, %v950
        %v953 = vcvt.s32.f32 %v946
        %v954 = vmul.f32 %v953, %v951
        %v955 = vxor.u32 %v954, 2147483648
        %v956 = vsel %vm873, %v955, %v954
        %v957 = vsub.s32 4, %v933
        %v958 = vsel %vm873, %v957, %v933
        %v959 = vsel %vm872, %v340, %v956
        %v960 = vsel %vm872, 0, %v958
        %v961 = vcosq.f32.pop %v959
        %v962 = vsinq.f32.pop %v959
        %vm963 = vweird.f32 %v340
        %v964 = vadd.s32 %v960, 3
        %v965 = vand.u32 %v964, 3
        %vm966 = vcmp.lt.s32.totalorder %v965, 2
        %vm967 = vcmp.eq.s32.totalorder %v965, 0
        %v968 = vxor.u32 %v962, 2147483648
        %v969 = vsel %vm967, %v961, %v968
        %vm970 = vcmp.eq.s32.totalorder %v965, 2
        %v971 = vxor.u32 %v961, 2147483648
        %v972 = vsel %vm970, %v971, %v962
        %v973 = vsel %vm966, %v969, %v972
        %v974 = vsel %vm963, nan, %v973
        %v975 = vand.u32 2147483647, %v341
        %vm976 = vcmp.le.f32.partialorder %v975, 0.7853982
        %vm977 = vcmp.lt.s32.totalorder %v341, 0
        %v978 = vand.u32 %v341, 2139095040
        %v979 = vshrl.u32 %v978, 23
        %v980 = vsub.s32 %v979, 127
        %v981 = vand.u32 2147483647, %v341
        %v982 = vand.u32 %v981, 8388607
        %v983 = vor.u32 %v982, 8388608
        %v984 = vsub.s32 0, %v983
        %v985 = vadd.s32 %v980, 1
        %vm986 = vcmp.gt.s32.totalorder %v985, 0
        %v987 = vsel %vm986, %v985, 0
        %v988 = vshrl.u32 %v987, 5
        %v989 = vand.u32 %v987, 31
        %v990 = vsub.s32 32, %v989
        %v991 = vshrl.u32 683565275, %v990
        %v992 = vshll.u32 683565275, %v989
        %v993 = vshrl.u32 2475754826, %v990
        %v994 = vor.u32 %v992, %v993
        %v995 = vshll.u32 2475754826, %v989
        %v996 = vshrl.u32 2131351028, %v990
        %v997 = vor.u32 %v995, %v996
        %v998 = vshll.u32 2131351028, %v989
        %v999 = vshrl.u32 2102212464, %v990
        %v1000 = vor.u32 %v998, %v999
        %v1001 = vshll.u32 2102212464, %v989
        %v1002 = vshrl.u32 920167782, %v990
        %v1003 = vor.u32 %v1001, %v1002
        %v1004 = vshll.u32 920167782, %v989
        %v1005 = vshrl.u32 1326507024, %v990
        %v1006 = vor.u32 %v1004, %v1005
        %vm1007 = vcmp.lt.s32.totalorder %v988, 1
        %vm1008 = vcmp.lt.s32.totalorder %v988, 2
        %vm1009 = vcmp.lt.s32.totalorder %v988, 3
        %vm1010 = vcmp.lt.s32.totalorder %v988, 4
        %v1011 = vsel %vm1007, %v991, %v994
        %v1012 = vsel %vm1010, %v1000, 2102212464
        %v1013 = vsel %vm1009, %v997, %v1012
        %v1014 = vsel %vm1008, %v1011, %v1013
        %v1015 = vsel %vm1007, %v994, %v997
        %v1016 = vsel %vm1010, %v1003, 920167782
        %v1017 = vsel %vm1009, %v1000, %v1016
        %v1018 = vsel %vm1008, %v1015, %v1017
        %v1019 = vsel %vm1007, %v997, %v1000
        %v1020 = vsel %vm1010, %v1006, 1326507024
        %v1021 = vsel %vm1009, %v1003, %v1020
        %v1022 = vsel %vm1008, %v1019, %v1021
        %v1023 = vshll.u32 %v983, 8
        %v1024 = vmul.u32.u64.compose %v1023, %v1022
        %v1025 = vextract.low.u32 %v1024
        %v1026 = vextract.high.u32 %v1024
        %v1027 = vmul.u32.u64.compose %v1023, %v1018
        %v1028 = vextract.low.u32 %v1027
        %v1029 = vextract.high.u32 %v1027
        %v1030 = vmul.u32 %v1023, %v1014
        %v1031 = vadd.s32 %v1026, %v1028
        %vm1032 = vc.u32 %v1026, %v1028
        %v1033 = vadd.s32 %v1029, 1
        %v1034 = vsel %vm1032, %v1033, %v1029
        %v1035 = vadd.s32 %v1030, %v1034
        %v1036 = vadd.s32 %v1035, 536870912
        %v1037 = vshrl.u32 %v1036, 30
        %v1038 = vshll.u32 %v1037, 30
        %v1039 = vsub.s32 %v1035, %v1038
        %vm1040 = vcmp.lt.s32.totalorder %v1039, 0
        %v1041 = vsub.s32 0, %v1039
        %v1042 = vsel %vm1040, %v1041, %v1039
        %v1043 = vclz %v1042
        %v1044 = vsub.s32 %v1043, 2
        %vm1045 = vcmp.gt.s32.totalorder 0, %v1044
        %v1046 = vsel %vm1045, 0, %v1044
        %v1047 = vsub.s32 32, %v1046
        %v1048 = vshll.u32 %v1039, %v1046
        %v1049 = vshrl.u32 %v1031, %v1047
        %v1050 = vor.u32 %v1048, %v1049
        %v1051 = vsub.s32 4294967266, %v1046
        %v1052 = vadd.s32 %v1051, 127
        %v1053 = vshll.u32 %v1052, 23
        %v1054 = vor.u32 4788187, %v1053
        %v1055 = vand.u32 2147483647, %v1054
        %v1057 = vcvt.s32.f32 %v1050
        %v1058 = vmul.f32 %v1057, %v1055
        %v1059 = vxor.u32 %v1058, 2147483648
        %v1060 = vsel %vm977, %v1059, %v1058
        %v1061 = vsub.s32 4, %v1037
        %v1062 = vsel %vm977, %v1061, %v1037
        %v1063 = vsel %vm976, %v341, %v1060
        %v1064 = vsel %vm976, 0, %v1062
        %v1065 = vcosq.f32.pop %v1063
        %v1066 = vsinq.f32.pop %v1063
        %vm1067 = vweird.f32 %v341
        %v1068 = vadd.s32 %v1064, 3
        %v1069 = vand.u32 %v1068, 3
        %vm1070 = vcmp.lt.s32.totalorder %v1069, 2
        %vm1071 = vcmp.eq.s32.totalorder %v1069, 0
        %v1072 = vxor.u32 %v1066, 2147483648
        %v1073 = vsel %vm1071, %v1065, %v1072
        %vm1074 = vcmp.eq.s32.totalorder %v1069, 2
        %v1075 = vxor.u32 %v1065, 2147483648
        %v1076 = vsel %vm1074, %v1075, %v1066
        %v1077 = vsel %vm1070, %v1073, %v1076
        %v1078 = vsel %vm1067, nan, %v1077
        %v1079 = vand.u32 2147483647, %v342
        %vm1080 = vcmp.le.f32.partialorder %v1079, 0.7853982
        %vm1081 = vcmp.lt.s32.totalorder %v342, 0
        %v1082 = vand.u32 %v342, 2139095040
        %v1083 = vshrl.u32 %v1082, 23
        %v1084 = vsub.s32 %v1083, 127
        %v1085 = vand.u32 2147483647, %v342
        %v1086 = vand.u32 %v1085, 8388607
        %v1087 = vor.u32 %v1086, 8388608
        %v1088 = vsub.s32 0, %v1087
        %v1089 = vadd.s32 %v1084, 1
        %vm1090 = vcmp.gt.s32.totalorder %v1089, 0
        %v1091 = vsel %vm1090, %v1089, 0
        %v1092 = vshrl.u32 %v1091, 5
        %v1093 = vand.u32 %v1091, 31
        %v1094 = vsub.s32 32, %v1093
        %v1095 = vshrl.u32 683565275, %v1094
        %v1096 = vshll.u32 683565275, %v1093
        %v1097 = vshrl.u32 2475754826, %v1094
        %v1098 = vor.u32 %v1096, %v1097
        %v1099 = vshll.u32 2475754826, %v1093
        %v1100 = vshrl.u32 2131351028, %v1094
        %v1101 = vor.u32 %v1099, %v1100
        %v1102 = vshll.u32 2131351028, %v1093
        %v1103 = vshrl.u32 2102212464, %v1094
        %v1104 = vor.u32 %v1102, %v1103
        %v1105 = vshll.u32 2102212464, %v1093
        %v1106 = vshrl.u32 920167782, %v1094
        %v1107 = vor.u32 %v1105, %v1106
        %v1108 = vshll.u32 920167782, %v1093
        %v1109 = vshrl.u32 1326507024, %v1094
        %v1110 = vor.u32 %v1108, %v1109
        %vm1111 = vcmp.lt.s32.totalorder %v1092, 1
        %vm1112 = vcmp.lt.s32.totalorder %v1092, 2
        %vm1113 = vcmp.lt.s32.totalorder %v1092, 3
        %vm1114 = vcmp.lt.s32.totalorder %v1092, 4
        %v1115 = vsel %vm1111, %v1095, %v1098
        %v1116 = vsel %vm1114, %v1104, 2102212464
        %v1117 = vsel %vm1113, %v1101, %v1116
        %v1118 = vsel %vm1112, %v1115, %v1117
        %v1119 = vsel %vm1111, %v1098, %v1101
        %v1120 = vsel %vm1114, %v1107, 920167782
        %v1121 = vsel %vm1113, %v1104, %v1120
        %v1122 = vsel %vm1112, %v1119, %v1121
        %v1123 = vsel %vm1111, %v1101, %v1104
        %v1124 = vsel %vm1114, %v1110, 1326507024
        %v1125 = vsel %vm1113, %v1107, %v1124
        %v1126 = vsel %vm1112, %v1123, %v1125
        %v1127 = vshll.u32 %v1087, 8
        %v1128 = vmul.u32.u64.compose %v1127, %v1126
        %v1129 = vextract.low.u32 %v1128
        %v1130 = vextract.high.u32 %v1128
        %v1131 = vmul.u32.u64.compose %v1127, %v1122
        %v1132 = vextract.low.u32 %v1131
        %v1133 = vextract.high.u32 %v1131
        %v1134 = vmul.u32 %v1127, %v1118
        %v1135 = vadd.s32 %v1130, %v1132
        %vm1136 = vc.u32 %v1130, %v1132
        %v1137 = vadd.s32 %v1133, 1
        %v1138 = vsel %vm1136, %v1137, %v1133
        %v1139 = vadd.s32 %v1134, %v1138
        %v1140 = vadd.s32 %v1139, 536870912
        %v1141 = vshrl.u32 %v1140, 30
        %v1142 = vshll.u32 %v1141, 30
        %v1143 = vsub.s32 %v1139, %v1142
        %vm1144 = vcmp.lt.s32.totalorder %v1143, 0
        %v1145 = vsub.s32 0, %v1143
        %v1146 = vsel %vm1144, %v1145, %v1143
        %v1147 = vclz %v1146
        %v1148 = vsub.s32 %v1147, 2
        %vm1149 = vcmp.gt.s32.totalorder 0, %v1148
        %v1150 = vsel %vm1149, 0, %v1148
        %v1151 = vsub.s32 32, %v1150
        %v1152 = vshll.u32 %v1143, %v1150
        %v1153 = vshrl.u32 %v1135, %v1151
        %v1154 = vor.u32 %v1152, %v1153
        %v1155 = vsub.s32 4294967266, %v1150
        %v1156 = vadd.s32 %v1155, 127
        %v1157 = vshll.u32 %v1156, 23
        %v1158 = vor.u32 4788187, %v1157
        %v1159 = vand.u32 2147483647, %v1158
        %v1161 = vcvt.s32.f32 %v1154
        %v1162 = vmul.f32 %v1161, %v1159
        %v1163 = vxor.u32 %v1162, 2147483648
        %v1164 = vsel %vm1081, %v1163, %v1162
        %v1165 = vsub.s32 4, %v1141
        %v1166 = vsel %vm1081, %v1165, %v1141
        %v1167 = vsel %vm1080, %v342, %v1164
        %v1168 = vsel %vm1080, 0, %v1166
        %v1169 = vcosq.f32.pop %v1167
        %v1170 = vsinq.f32.pop %v1167
        %vm1171 = vweird.f32 %v342
        %v1172 = vadd.s32 %v1168, 3
        %v1173 = vand.u32 %v1172, 3
        %vm1174 = vcmp.lt.s32.totalorder %v1173, 2
        %vm1175 = vcmp.eq.s32.totalorder %v1173, 0
        %v1176 = vxor.u32 %v1170, 2147483648
        %v1177 = vsel %vm1175, %v1169, %v1176
        %vm1178 = vcmp.eq.s32.totalorder %v1173, 2
        %v1179 = vxor.u32 %v1169, 2147483648
        %v1180 = vsel %vm1178, %v1179, %v1170
        %v1181 = vsel %vm1174, %v1177, %v1180
        %v1182 = vsel %vm1171, nan, %v1181
        %v1183 = vand.u32 2147483647, %v343
        %vm1184 = vcmp.le.f32.partialorder %v1183, 0.7853982
        %vm1185 = vcmp.lt.s32.totalorder %v343, 0
        %v1186 = vand.u32 %v343, 2139095040
        %v1187 = vshrl.u32 %v1186, 23
        %v1188 = vsub.s32 %v1187, 127
        %v1189 = vand.u32 2147483647, %v343
        %v1190 = vand.u32 %v1189, 8388607
        %v1191 = vor.u32 %v1190, 8388608
        %v1192 = vsub.s32 0, %v1191
        %v1193 = vadd.s32 %v1188, 1
        %vm1194 = vcmp.gt.s32.totalorder %v1193, 0
        %v1195 = vsel %vm1194, %v1193, 0
        %v1196 = vshrl.u32 %v1195, 5
        %v1197 = vand.u32 %v1195, 31
        %v1198 = vsub.s32 32, %v1197
        %v1199 = vshrl.u32 683565275, %v1198
        %v1200 = vshll.u32 683565275, %v1197
        %v1201 = vshrl.u32 2475754826, %v1198
        %v1202 = vor.u32 %v1200, %v1201
        %v1203 = vshll.u32 2475754826, %v1197
        %v1204 = vshrl.u32 2131351028, %v1198
        %v1205 = vor.u32 %v1203, %v1204
        %v1206 = vshll.u32 2131351028, %v1197
        %v1207 = vshrl.u32 2102212464, %v1198
        %v1208 = vor.u32 %v1206, %v1207
        %v1209 = vshll.u32 2102212464, %v1197
        %v1210 = vshrl.u32 920167782, %v1198
        %v1211 = vor.u32 %v1209, %v1210
        %v1212 = vshll.u32 920167782, %v1197
        %v1213 = vshrl.u32 1326507024, %v1198
        %v1214 = vor.u32 %v1212, %v1213
        %vm1215 = vcmp.lt.s32.totalorder %v1196, 1
        %vm1216 = vcmp.lt.s32.totalorder %v1196, 2
        %vm1217 = vcmp.lt.s32.totalorder %v1196, 3
        %vm1218 = vcmp.lt.s32.totalorder %v1196, 4
        %v1219 = vsel %vm1215, %v1199, %v1202
        %v1220 = vsel %vm1218, %v1208, 2102212464
        %v1221 = vsel %vm1217, %v1205, %v1220
        %v1222 = vsel %vm1216, %v1219, %v1221
        %v1223 = vsel %vm1215, %v1202, %v1205
        %v1224 = vsel %vm1218, %v1211, 920167782
        %v1225 = vsel %vm1217, %v1208, %v1224
        %v1226 = vsel %vm1216, %v1223, %v1225
        %v1227 = vsel %vm1215, %v1205, %v1208
        %v1228 = vsel %vm1218, %v1214, 1326507024
        %v1229 = vsel %vm1217, %v1211, %v1228
        %v1230 = vsel %vm1216, %v1227, %v1229
        %v1231 = vshll.u32 %v1191, 8
        %v1232 = vmul.u32.u64.compose %v1231, %v1230
        %v1233 = vextract.low.u32 %v1232
        %v1234 = vextract.high.u32 %v1232
        %v1235 = vmul.u32.u64.compose %v1231, %v1226
        %v1236 = vextract.low.u32 %v1235
        %v1237 = vextract.high.u32 %v1235
        %v1238 = vmul.u32 %v1231, %v1222
        %v1239 = vadd.s32 %v1234, %v1236
        %vm1240 = vc.u32 %v1234, %v1236
        %v1241 = vadd.s32 %v1237, 1
        %v1242 = vsel %vm1240, %v1241, %v1237
        %v1243 = vadd.s32 %v1238, %v1242
        %v1244 = vadd.s32 %v1243, 536870912
        %v1245 = vshrl.u32 %v1244, 30
        %v1246 = vshll.u32 %v1245, 30
        %v1247 = vsub.s32 %v1243, %v1246
        %vm1248 = vcmp.lt.s32.totalorder %v1247, 0
        %v1249 = vsub.s32 0, %v1247
        %v1250 = vsel %vm1248, %v1249, %v1247
        %v1251 = vclz %v1250
        %v1252 = vsub.s32 %v1251, 2
        %vm1253 = vcmp.gt.s32.totalorder 0, %v1252
        %v1254 = vsel %vm1253, 0, %v1252
        %v1255 = vsub.s32 32, %v1254
        %v1256 = vshll.u32 %v1247, %v1254
        %v1257 = vshrl.u32 %v1239, %v1255
        %v1258 = vor.u32 %v1256, %v1257
        %v1259 = vsub.s32 4294967266, %v1254
        %v1260 = vadd.s32 %v1259, 127
        %v1261 = vshll.u32 %v1260, 23
        %v1262 = vor.u32 4788187, %v1261
        %v1263 = vand.u32 2147483647, %v1262
        %v1265 = vcvt.s32.f32 %v1258
        %v1266 = vmul.f32 %v1265, %v1263
        %v1267 = vxor.u32 %v1266, 2147483648
        %v1268 = vsel %vm1185, %v1267, %v1266
        %v1269 = vsub.s32 4, %v1245
        %v1270 = vsel %vm1185, %v1269, %v1245
        %v1271 = vsel %vm1184, %v343, %v1268
        %v1272 = vsel %vm1184, 0, %v1270
        %v1273 = vcosq.f32.pop %v1271
        %v1274 = vsinq.f32.pop %v1271
        %vm1275 = vweird.f32 %v343
        %v1276 = vadd.s32 %v1272, 3
        %v1277 = vand.u32 %v1276, 3
        %vm1278 = vcmp.lt.s32.totalorder %v1277, 2
        %vm1279 = vcmp.eq.s32.totalorder %v1277, 0
        %v1280 = vxor.u32 %v1274, 2147483648
        %v1281 = vsel %vm1279, %v1273, %v1280
        %vm1282 = vcmp.eq.s32.totalorder %v1277, 2
        %v1283 = vxor.u32 %v1273, 2147483648
        %v1284 = vsel %vm1282, %v1283, %v1274
        %v1285 = vsel %vm1278, %v1281, %v1284
        %v1286 = vsel %vm1275, nan, %v1285
        %v1287 = vand.u32 2147483647, %v344
        %vm1288 = vcmp.le.f32.partialorder %v1287, 0.7853982
        %vm1289 = vcmp.lt.s32.totalorder %v344, 0
        %v1290 = vand.u32 %v344, 2139095040
        %v1291 = vshrl.u32 %v1290, 23
        %v1292 = vsub.s32 %v1291, 127
        %v1293 = vand.u32 2147483647, %v344
        %v1294 = vand.u32 %v1293, 8388607
        %v1295 = vor.u32 %v1294, 8388608
        %v1296 = vsub.s32 0, %v1295
        %v1297 = vadd.s32 %v1292, 1
        %vm1298 = vcmp.gt.s32.totalorder %v1297, 0
        %v1299 = vsel %vm1298, %v1297, 0
        %v1300 = vshrl.u32 %v1299, 5
        %v1301 = vand.u32 %v1299, 31
        %v1302 = vsub.s32 32, %v1301
        %v1303 = vshrl.u32 683565275, %v1302
        %v1304 = vshll.u32 683565275, %v1301
        %v1305 = vshrl.u32 2475754826, %v1302
        %v1306 = vor.u32 %v1304, %v1305
        %v1307 = vshll.u32 2475754826, %v1301
        %v1308 = vshrl.u32 2131351028, %v1302
        %v1309 = vor.u32 %v1307, %v1308
        %v1310 = vshll.u32 2131351028, %v1301
        %v1311 = vshrl.u32 2102212464, %v1302
        %v1312 = vor.u32 %v1310, %v1311
        %v1313 = vshll.u32 2102212464, %v1301
        %v1314 = vshrl.u32 920167782, %v1302
        %v1315 = vor.u32 %v1313, %v1314
        %v1316 = vshll.u32 920167782, %v1301
        %v1317 = vshrl.u32 1326507024, %v1302
        %v1318 = vor.u32 %v1316, %v1317
        %vm1319 = vcmp.lt.s32.totalorder %v1300, 1
        %vm1320 = vcmp.lt.s32.totalorder %v1300, 2
        %vm1321 = vcmp.lt.s32.totalorder %v1300, 3
        %vm1322 = vcmp.lt.s32.totalorder %v1300, 4
        %v1323 = vsel %vm1319, %v1303, %v1306
        %v1324 = vsel %vm1322, %v1312, 2102212464
        %v1325 = vsel %vm1321, %v1309, %v1324
        %v1326 = vsel %vm1320, %v1323, %v1325
        %v1327 = vsel %vm1319, %v1306, %v1309
        %v1328 = vsel %vm1322, %v1315, 920167782
        %v1329 = vsel %vm1321, %v1312, %v1328
        %v1330 = vsel %vm1320, %v1327, %v1329
        %v1331 = vsel %vm1319, %v1309, %v1312
        %v1332 = vsel %vm1322, %v1318, 1326507024
        %v1333 = vsel %vm1321, %v1315, %v1332
        %v1334 = vsel %vm1320, %v1331, %v1333
        %v1335 = vshll.u32 %v1295, 8
        %v1336 = vmul.u32.u64.compose %v1335, %v1334
        %v1337 = vextract.low.u32 %v1336
        %v1338 = vextract.high.u32 %v1336
        %v1339 = vmul.u32.u64.compose %v1335, %v1330
        %v1340 = vextract.low.u32 %v1339
        %v1341 = vextract.high.u32 %v1339
        %v1342 = vmul.u32 %v1335, %v1326
        %v1343 = vadd.s32 %v1338, %v1340
        %vm1344 = vc.u32 %v1338, %v1340
        %v1345 = vadd.s32 %v1341, 1
        %v1346 = vsel %vm1344, %v1345, %v1341
        %v1347 = vadd.s32 %v1342, %v1346
        %v1348 = vadd.s32 %v1347, 536870912
        %v1349 = vshrl.u32 %v1348, 30
        %v1350 = vshll.u32 %v1349, 30
        %v1351 = vsub.s32 %v1347, %v1350
        %vm1352 = vcmp.lt.s32.totalorder %v1351, 0
        %v1353 = vsub.s32 0, %v1351
        %v1354 = vsel %vm1352, %v1353, %v1351
        %v1355 = vclz %v1354
        %v1356 = vsub.s32 %v1355, 2
        %vm1357 = vcmp.gt.s32.totalorder 0, %v1356
        %v1358 = vsel %vm1357, 0, %v1356
        %v1359 = vsub.s32 32, %v1358
        %v1360 = vshll.u32 %v1351, %v1358
        %v1361 = vshrl.u32 %v1343, %v1359
        %v1362 = vor.u32 %v1360, %v1361
        %v1363 = vsub.s32 4294967266, %v1358
        %v1364 = vadd.s32 %v1363, 127
        %v1365 = vshll.u32 %v1364, 23
        %v1366 = vor.u32 4788187, %v1365
        %v1367 = vand.u32 2147483647, %v1366
        %v1369 = vcvt.s32.f32 %v1362
        %v1370 = vmul.f32 %v1369, %v1367
        %v1371 = vxor.u32 %v1370, 2147483648
        %v1372 = vsel %vm1289, %v1371, %v1370
        %v1373 = vsub.s32 4, %v1349
        %v1374 = vsel %vm1289, %v1373, %v1349
        %v1375 = vsel %vm1288, %v344, %v1372
        %v1376 = vsel %vm1288, 0, %v1374
        %v1377 = vcosq.f32.pop %v1375
        %v1378 = vsinq.f32.pop %v1375
        %vm1379 = vweird.f32 %v344
        %v1380 = vadd.s32 %v1376, 3
        %v1381 = vand.u32 %v1380, 3
        %vm1382 = vcmp.lt.s32.totalorder %v1381, 2
        %vm1383 = vcmp.eq.s32.totalorder %v1381, 0
        %v1384 = vxor.u32 %v1378, 2147483648
        %v1385 = vsel %vm1383, %v1377, %v1384
        %vm1386 = vcmp.eq.s32.totalorder %v1381, 2
        %v1387 = vxor.u32 %v1377, 2147483648
        %v1388 = vsel %vm1386, %v1387, %v1378
        %v1389 = vsel %vm1382, %v1385, %v1388
        %v1390 = vsel %vm1379, nan, %v1389
        %v1391 = vand.u32 2147483647, %v345
        %vm1392 = vcmp.le.f32.partialorder %v1391, 0.7853982
        %vm1393 = vcmp.lt.s32.totalorder %v345, 0
        %v1394 = vand.u32 %v345, 2139095040
        %v1395 = vshrl.u32 %v1394, 23
        %v1396 = vsub.s32 %v1395, 127
        %v1397 = vand.u32 2147483647, %v345
        %v1398 = vand.u32 %v1397, 8388607
        %v1399 = vor.u32 %v1398, 8388608
        %v1400 = vsub.s32 0, %v1399
        %v1401 = vadd.s32 %v1396, 1
        %vm1402 = vcmp.gt.s32.totalorder %v1401, 0
        %v1403 = vsel %vm1402, %v1401, 0
        %v1404 = vshrl.u32 %v1403, 5
        %v1405 = vand.u32 %v1403, 31
        %v1406 = vsub.s32 32, %v1405
        %v1407 = vshrl.u32 683565275, %v1406
        %v1408 = vshll.u32 683565275, %v1405
        %v1409 = vshrl.u32 2475754826, %v1406
        %v1410 = vor.u32 %v1408, %v1409
        %v1411 = vshll.u32 2475754826, %v1405
        %v1412 = vshrl.u32 2131351028, %v1406
        %v1413 = vor.u32 %v1411, %v1412
        %v1414 = vshll.u32 2131351028, %v1405
        %v1415 = vshrl.u32 2102212464, %v1406
        %v1416 = vor.u32 %v1414, %v1415
        %v1417 = vshll.u32 2102212464, %v1405
        %v1418 = vshrl.u32 920167782, %v1406
        %v1419 = vor.u32 %v1417, %v1418
        %v1420 = vshll.u32 920167782, %v1405
        %v1421 = vshrl.u32 1326507024, %v1406
        %v1422 = vor.u32 %v1420, %v1421
        %vm1423 = vcmp.lt.s32.totalorder %v1404, 1
        %vm1424 = vcmp.lt.s32.totalorder %v1404, 2
        %vm1425 = vcmp.lt.s32.totalorder %v1404, 3
        %vm1426 = vcmp.lt.s32.totalorder %v1404, 4
        %v1427 = vsel %vm1423, %v1407, %v1410
        %v1428 = vsel %vm1426, %v1416, 2102212464
        %v1429 = vsel %vm1425, %v1413, %v1428
        %v1430 = vsel %vm1424, %v1427, %v1429
        %v1431 = vsel %vm1423, %v1410, %v1413
        %v1432 = vsel %vm1426, %v1419, 920167782
        %v1433 = vsel %vm1425, %v1416, %v1432
        %v1434 = vsel %vm1424, %v1431, %v1433
        %v1435 = vsel %vm1423, %v1413, %v1416
        %v1436 = vsel %vm1426, %v1422, 1326507024
        %v1437 = vsel %vm1425, %v1419, %v1436
        %v1438 = vsel %vm1424, %v1435, %v1437
        %v1439 = vshll.u32 %v1399, 8
        %v1440 = vmul.u32.u64.compose %v1439, %v1438
        %v1441 = vextract.low.u32 %v1440
        %v1442 = vextract.high.u32 %v1440
        %v1443 = vmul.u32.u64.compose %v1439, %v1434
        %v1444 = vextract.low.u32 %v1443
        %v1445 = vextract.high.u32 %v1443
        %v1446 = vmul.u32 %v1439, %v1430
        %v1447 = vadd.s32 %v1442, %v1444
        %vm1448 = vc.u32 %v1442, %v1444
        %v1449 = vadd.s32 %v1445, 1
        %v1450 = vsel %vm1448, %v1449, %v1445
        %v1451 = vadd.s32 %v1446, %v1450
        %v1452 = vadd.s32 %v1451, 536870912
        %v1453 = vshrl.u32 %v1452, 30
        %v1454 = vshll.u32 %v1453, 30
        %v1455 = vsub.s32 %v1451, %v1454
        %vm1456 = vcmp.lt.s32.totalorder %v1455, 0
        %v1457 = vsub.s32 0, %v1455
        %v1458 = vsel %vm1456, %v1457, %v1455
        %v1459 = vclz %v1458
        %v1460 = vsub.s32 %v1459, 2
        %vm1461 = vcmp.gt.s32.totalorder 0, %v1460
        %v1462 = vsel %vm1461, 0, %v1460
        %v1463 = vsub.s32 32, %v1462
        %v1464 = vshll.u32 %v1455, %v1462
        %v1465 = vshrl.u32 %v1447, %v1463
        %v1466 = vor.u32 %v1464, %v1465
        %v1467 = vsub.s32 4294967266, %v1462
        %v1468 = vadd.s32 %v1467, 127
        %v1469 = vshll.u32 %v1468, 23
        %v1470 = vor.u32 4788187, %v1469
        %v1471 = vand.u32 2147483647, %v1470
        %v1473 = vcvt.s32.f32 %v1466
        %v1474 = vmul.f32 %v1473, %v1471
        %v1475 = vxor.u32 %v1474, 2147483648
        %v1476 = vsel %vm1393, %v1475, %v1474
        %v1477 = vsub.s32 4, %v1453
        %v1478 = vsel %vm1393, %v1477, %v1453
        %v1479 = vsel %vm1392, %v345, %v1476
        %v1480 = vsel %vm1392, 0, %v1478
        %v1481 = vcosq.f32.pop %v1479
        %v1482 = vsinq.f32.pop %v1479
        %vm1483 = vweird.f32 %v345
        %v1484 = vadd.s32 %v1480, 3
        %v1485 = vand.u32 %v1484, 3
        %vm1486 = vcmp.lt.s32.totalorder %v1485, 2
        %vm1487 = vcmp.eq.s32.totalorder %v1485, 0
        %v1488 = vxor.u32 %v1482, 2147483648
        %v1489 = vsel %vm1487, %v1481, %v1488
        %vm1490 = vcmp.eq.s32.totalorder %v1485, 2
        %v1491 = vxor.u32 %v1481, 2147483648
        %v1492 = vsel %vm1490, %v1491, %v1482
        %v1493 = vsel %vm1486, %v1489, %v1492
        %v1494 = vsel %vm1483, nan, %v1493
        %v1495 = vand.u32 2147483647, %v346
        %vm1496 = vcmp.le.f32.partialorder %v1495, 0.7853982
        %vm1497 = vcmp.lt.s32.totalorder %v346, 0
        %v1498 = vand.u32 %v346, 2139095040
        %v1499 = vshrl.u32 %v1498, 23
        %v1500 = vsub.s32 %v1499, 127
        %v1501 = vand.u32 2147483647, %v346
        %v1502 = vand.u32 %v1501, 8388607
        %v1503 = vor.u32 %v1502, 8388608
        %v1504 = vsub.s32 0, %v1503
        %v1505 = vadd.s32 %v1500, 1
        %vm1506 = vcmp.gt.s32.totalorder %v1505, 0
        %v1507 = vsel %vm1506, %v1505, 0
        %v1508 = vshrl.u32 %v1507, 5
        %v1509 = vand.u32 %v1507, 31
        %v1510 = vsub.s32 32, %v1509
        %v1511 = vshrl.u32 683565275, %v1510
        %v1512 = vshll.u32 683565275, %v1509
        %v1513 = vshrl.u32 2475754826, %v1510
        %v1514 = vor.u32 %v1512, %v1513
        %v1515 = vshll.u32 2475754826, %v1509
        %v1516 = vshrl.u32 2131351028, %v1510
        %v1517 = vor.u32 %v1515, %v1516
        %v1518 = vshll.u32 2131351028, %v1509
        %v1519 = vshrl.u32 2102212464, %v1510
        %v1520 = vor.u32 %v1518, %v1519
        %v1521 = vshll.u32 2102212464, %v1509
        %v1522 = vshrl.u32 920167782, %v1510
        %v1523 = vor.u32 %v1521, %v1522
        %v1524 = vshll.u32 920167782, %v1509
        %v1525 = vshrl.u32 1326507024, %v1510
        %v1526 = vor.u32 %v1524, %v1525
        %vm1527 = vcmp.lt.s32.totalorder %v1508, 1
        %vm1528 = vcmp.lt.s32.totalorder %v1508, 2
        %vm1529 = vcmp.lt.s32.totalorder %v1508, 3
        %vm1530 = vcmp.lt.s32.totalorder %v1508, 4
        %v1531 = vsel %vm1527, %v1511, %v1514
        %v1532 = vsel %vm1530, %v1520, 2102212464
        %v1533 = vsel %vm1529, %v1517, %v1532
        %v1534 = vsel %vm1528, %v1531, %v1533
        %v1535 = vsel %vm1527, %v1514, %v1517
        %v1536 = vsel %vm1530, %v1523, 920167782
        %v1537 = vsel %vm1529, %v1520, %v1536
        %v1538 = vsel %vm1528, %v1535, %v1537
        %v1539 = vsel %vm1527, %v1517, %v1520
        %v1540 = vsel %vm1530, %v1526, 1326507024
        %v1541 = vsel %vm1529, %v1523, %v1540
        %v1542 = vsel %vm1528, %v1539, %v1541
        %v1543 = vshll.u32 %v1503, 8
        %v1544 = vmul.u32.u64.compose %v1543, %v1542
        %v1545 = vextract.low.u32 %v1544
        %v1546 = vextract.high.u32 %v1544
        %v1547 = vmul.u32.u64.compose %v1543, %v1538
        %v1548 = vextract.low.u32 %v1547
        %v1549 = vextract.high.u32 %v1547
        %v1550 = vmul.u32 %v1543, %v1534
        %v1551 = vadd.s32 %v1546, %v1548
        %vm1552 = vc.u32 %v1546, %v1548
        %v1553 = vadd.s32 %v1549, 1
        %v1554 = vsel %vm1552, %v1553, %v1549
        %v1555 = vadd.s32 %v1550, %v1554
        %v1556 = vadd.s32 %v1555, 536870912
        %v1557 = vshrl.u32 %v1556, 30
        %v1558 = vshll.u32 %v1557, 30
        %v1559 = vsub.s32 %v1555, %v1558
        %vm1560 = vcmp.lt.s32.totalorder %v1559, 0
        %v1561 = vsub.s32 0, %v1559
        %v1562 = vsel %vm1560, %v1561, %v1559
        %v1563 = vclz %v1562
        %v1564 = vsub.s32 %v1563, 2
        %vm1565 = vcmp.gt.s32.totalorder 0, %v1564
        %v1566 = vsel %vm1565, 0, %v1564
        %v1567 = vsub.s32 32, %v1566
        %v1568 = vshll.u32 %v1559, %v1566
        %v1569 = vshrl.u32 %v1551, %v1567
        %v1570 = vor.u32 %v1568, %v1569
        %v1571 = vsub.s32 4294967266, %v1566
        %v1572 = vadd.s32 %v1571, 127
        %v1573 = vshll.u32 %v1572, 23
        %v1574 = vor.u32 4788187, %v1573
        %v1575 = vand.u32 2147483647, %v1574
        %v1577 = vcvt.s32.f32 %v1570
        %v1578 = vmul.f32 %v1577, %v1575
        %v1579 = vxor.u32 %v1578, 2147483648
        %v1580 = vsel %vm1497, %v1579, %v1578
        %v1581 = vsub.s32 4, %v1557
        %v1582 = vsel %vm1497, %v1581, %v1557
        %v1583 = vsel %vm1496, %v346, %v1580
        %v1584 = vsel %vm1496, 0, %v1582
        %v1585 = vcosq.f32.pop %v1583
        %v1586 = vsinq.f32.pop %v1583
        %vm1587 = vweird.f32 %v346
        %v1588 = vadd.s32 %v1584, 3
        %v1589 = vand.u32 %v1588, 3
        %vm1590 = vcmp.lt.s32.totalorder %v1589, 2
        %vm1591 = vcmp.eq.s32.totalorder %v1589, 0
        %v1592 = vxor.u32 %v1586, 2147483648
        %v1593 = vsel %vm1591, %v1585, %v1592
        %vm1594 = vcmp.eq.s32.totalorder %v1589, 2
        %v1595 = vxor.u32 %v1585, 2147483648
        %v1596 = vsel %vm1594, %v1595, %v1586
        %v1597 = vsel %vm1590, %v1593, %v1596
        %v1598 = vsel %vm1587, nan, %v1597
        %v1599 = vand.u32 2147483647, %v347
        %vm1600 = vcmp.le.f32.partialorder %v1599, 0.7853982
        %vm1601 = vcmp.lt.s32.totalorder %v347, 0
        %v1602 = vand.u32 %v347, 2139095040
        %v1603 = vshrl.u32 %v1602, 23
        %v1604 = vsub.s32 %v1603, 127
        %v1605 = vand.u32 2147483647, %v347
        %v1606 = vand.u32 %v1605, 8388607
        %v1607 = vor.u32 %v1606, 8388608
        %v1608 = vsub.s32 0, %v1607
        %v1609 = vadd.s32 %v1604, 1
        %vm1610 = vcmp.gt.s32.totalorder %v1609, 0
        %v1611 = vsel %vm1610, %v1609, 0
        %v1612 = vshrl.u32 %v1611, 5
        %v1613 = vand.u32 %v1611, 31
        %v1614 = vsub.s32 32, %v1613
        %v1615 = vshrl.u32 683565275, %v1614
        %v1616 = vshll.u32 683565275, %v1613
        %v1617 = vshrl.u32 2475754826, %v1614
        %v1618 = vor.u32 %v1616, %v1617
        %v1619 = vshll.u32 2475754826, %v1613
        %v1620 = vshrl.u32 2131351028, %v1614
        %v1621 = vor.u32 %v1619, %v1620
        %v1622 = vshll.u32 2131351028, %v1613
        %v1623 = vshrl.u32 2102212464, %v1614
        %v1624 = vor.u32 %v1622, %v1623
        %v1625 = vshll.u32 2102212464, %v1613
        %v1626 = vshrl.u32 920167782, %v1614
        %v1627 = vor.u32 %v1625, %v1626
        %v1628 = vshll.u32 920167782, %v1613
        %v1629 = vshrl.u32 1326507024, %v1614
        %v1630 = vor.u32 %v1628, %v1629
        %vm1631 = vcmp.lt.s32.totalorder %v1612, 1
        %vm1632 = vcmp.lt.s32.totalorder %v1612, 2
        %vm1633 = vcmp.lt.s32.totalorder %v1612, 3
        %vm1634 = vcmp.lt.s32.totalorder %v1612, 4
        %v1635 = vsel %vm1631, %v1615, %v1618
        %v1636 = vsel %vm1634, %v1624, 2102212464
        %v1637 = vsel %vm1633, %v1621, %v1636
        %v1638 = vsel %vm1632, %v1635, %v1637
        %v1639 = vsel %vm1631, %v1618, %v1621
        %v1640 = vsel %vm1634, %v1627, 920167782
        %v1641 = vsel %vm1633, %v1624, %v1640
        %v1642 = vsel %vm1632, %v1639, %v1641
        %v1643 = vsel %vm1631, %v1621, %v1624
        %v1644 = vsel %vm1634, %v1630, 1326507024
        %v1645 = vsel %vm1633, %v1627, %v1644
        %v1646 = vsel %vm1632, %v1643, %v1645
        %v1647 = vshll.u32 %v1607, 8
        %v1648 = vmul.u32.u64.compose %v1647, %v1646
        %v1649 = vextract.low.u32 %v1648
        %v1650 = vextract.high.u32 %v1648
        %v1651 = vmul.u32.u64.compose %v1647, %v1642
        %v1652 = vextract.low.u32 %v1651
        %v1653 = vextract.high.u32 %v1651
        %v1654 = vmul.u32 %v1647, %v1638
        %v1655 = vadd.s32 %v1650, %v1652
        %vm1656 = vc.u32 %v1650, %v1652
        %v1657 = vadd.s32 %v1653, 1
        %v1658 = vsel %vm1656, %v1657, %v1653
        %v1659 = vadd.s32 %v1654, %v1658
        %v1660 = vadd.s32 %v1659, 536870912
        %v1661 = vshrl.u32 %v1660, 30
        %v1662 = vshll.u32 %v1661, 30
        %v1663 = vsub.s32 %v1659, %v1662
        %vm1664 = vcmp.lt.s32.totalorder %v1663, 0
        %v1665 = vsub.s32 0, %v1663
        %v1666 = vsel %vm1664, %v1665, %v1663
        %v1667 = vclz %v1666
        %v1668 = vsub.s32 %v1667, 2
        %vm1669 = vcmp.gt.s32.totalorder 0, %v1668
        %v1670 = vsel %vm1669, 0, %v1668
        %v1671 = vsub.s32 32, %v1670
        %v1672 = vshll.u32 %v1663, %v1670
        %v1673 = vshrl.u32 %v1655, %v1671
        %v1674 = vor.u32 %v1672, %v1673
        %v1675 = vsub.s32 4294967266, %v1670
        %v1676 = vadd.s32 %v1675, 127
        %v1677 = vshll.u32 %v1676, 23
        %v1678 = vor.u32 4788187, %v1677
        %v1679 = vand.u32 2147483647, %v1678
        %v1681 = vcvt.s32.f32 %v1674
        %v1682 = vmul.f32 %v1681, %v1679
        %v1683 = vxor.u32 %v1682, 2147483648
        %v1684 = vsel %vm1601, %v1683, %v1682
        %v1685 = vsub.s32 4, %v1661
        %v1686 = vsel %vm1601, %v1685, %v1661
        %v1687 = vsel %vm1600, %v347, %v1684
        %v1688 = vsel %vm1600, 0, %v1686
        %v1689 = vcosq.f32.pop %v1687
        %v1690 = vsinq.f32.pop %v1687
        %vm1691 = vweird.f32 %v347
        %v1692 = vadd.s32 %v1688, 3
        %v1693 = vand.u32 %v1692, 3
        %vm1694 = vcmp.lt.s32.totalorder %v1693, 2
        %vm1695 = vcmp.eq.s32.totalorder %v1693, 0
        %v1696 = vxor.u32 %v1690, 2147483648
        %v1697 = vsel %vm1695, %v1689, %v1696
        %vm1698 = vcmp.eq.s32.totalorder %v1693, 2
        %v1699 = vxor.u32 %v1689, 2147483648
        %v1700 = vsel %vm1698, %v1699, %v1690
        %v1701 = vsel %vm1694, %v1697, %v1700
        %v1702 = vsel %vm1691, nan, %v1701
        %v1703 = vand.u32 2147483647, %v348
        %vm1704 = vcmp.le.f32.partialorder %v1703, 0.7853982
        %vm1705 = vcmp.lt.s32.totalorder %v348, 0
        %v1706 = vand.u32 %v348, 2139095040
        %v1707 = vshrl.u32 %v1706, 23
        %v1708 = vsub.s32 %v1707, 127
        %v1709 = vand.u32 2147483647, %v348
        %v1710 = vand.u32 %v1709, 8388607
        %v1711 = vor.u32 %v1710, 8388608
        %v1712 = vsub.s32 0, %v1711
        %v1713 = vadd.s32 %v1708, 1
        %vm1714 = vcmp.gt.s32.totalorder %v1713, 0
        %v1715 = vsel %vm1714, %v1713, 0
        %v1716 = vshrl.u32 %v1715, 5
        %v1717 = vand.u32 %v1715, 31
        %v1718 = vsub.s32 32, %v1717
        %v1719 = vshrl.u32 683565275, %v1718
        %v1720 = vshll.u32 683565275, %v1717
        %v1721 = vshrl.u32 2475754826, %v1718
        %v1722 = vor.u32 %v1720, %v1721
        %v1723 = vshll.u32 2475754826, %v1717
        %v1724 = vshrl.u32 2131351028, %v1718
        %v1725 = vor.u32 %v1723, %v1724
        %v1726 = vshll.u32 2131351028, %v1717
        %v1727 = vshrl.u32 2102212464, %v1718
        %v1728 = vor.u32 %v1726, %v1727
        %v1729 = vshll.u32 2102212464, %v1717
        %v1730 = vshrl.u32 920167782, %v1718
        %v1731 = vor.u32 %v1729, %v1730
        %v1732 = vshll.u32 920167782, %v1717
        %v1733 = vshrl.u32 1326507024, %v1718
        %v1734 = vor.u32 %v1732, %v1733
        %vm1735 = vcmp.lt.s32.totalorder %v1716, 1
        %vm1736 = vcmp.lt.s32.totalorder %v1716, 2
        %vm1737 = vcmp.lt.s32.totalorder %v1716, 3
        %vm1738 = vcmp.lt.s32.totalorder %v1716, 4
        %v1739 = vsel %vm1735, %v1719, %v1722
        %v1740 = vsel %vm1738, %v1728, 2102212464
        %v1741 = vsel %vm1737, %v1725, %v1740
        %v1742 = vsel %vm1736, %v1739, %v1741
        %v1743 = vsel %vm1735, %v1722, %v1725
        %v1744 = vsel %vm1738, %v1731, 920167782
        %v1745 = vsel %vm1737, %v1728, %v1744
        %v1746 = vsel %vm1736, %v1743, %v1745
        %v1747 = vsel %vm1735, %v1725, %v1728
        %v1748 = vsel %vm1738, %v1734, 1326507024
        %v1749 = vsel %vm1737, %v1731, %v1748
        %v1750 = vsel %vm1736, %v1747, %v1749
        %v1751 = vshll.u32 %v1711, 8
        %v1752 = vmul.u32.u64.compose %v1751, %v1750
        %v1753 = vextract.low.u32 %v1752
        %v1754 = vextract.high.u32 %v1752
        %v1755 = vmul.u32.u64.compose %v1751, %v1746
        %v1756 = vextract.low.u32 %v1755
        %v1757 = vextract.high.u32 %v1755
        %v1758 = vmul.u32 %v1751, %v1742
        %v1759 = vadd.s32 %v1754, %v1756
        %vm1760 = vc.u32 %v1754, %v1756
        %v1761 = vadd.s32 %v1757, 1
        %v1762 = vsel %vm1760, %v1761, %v1757
        %v1763 = vadd.s32 %v1758, %v1762
        %v1764 = vadd.s32 %v1763, 536870912
        %v1765 = vshrl.u32 %v1764, 30
        %v1766 = vshll.u32 %v1765, 30
        %v1767 = vsub.s32 %v1763, %v1766
        %vm1768 = vcmp.lt.s32.totalorder %v1767, 0
        %v1769 = vsub.s32 0, %v1767
        %v1770 = vsel %vm1768, %v1769, %v1767
        %v1771 = vclz %v1770
        %v1772 = vsub.s32 %v1771, 2
        %vm1773 = vcmp.gt.s32.totalorder 0, %v1772
        %v1774 = vsel %vm1773, 0, %v1772
        %v1775 = vsub.s32 32, %v1774
        %v1776 = vshll.u32 %v1767, %v1774
        %v1777 = vshrl.u32 %v1759, %v1775
        %v1778 = vor.u32 %v1776, %v1777
        %v1779 = vsub.s32 4294967266, %v1774
        %v1780 = vadd.s32 %v1779, 127
        %v1781 = vshll.u32 %v1780, 23
        %v1782 = vor.u32 4788187, %v1781
        %v1783 = vand.u32 2147483647, %v1782
        %v1785 = vcvt.s32.f32 %v1778
        %v1786 = vmul.f32 %v1785, %v1783
        %v1787 = vxor.u32 %v1786, 2147483648
        %v1788 = vsel %vm1705, %v1787, %v1786
        %v1789 = vsub.s32 4, %v1765
        %v1790 = vsel %vm1705, %v1789, %v1765
        %v1791 = vsel %vm1704, %v348, %v1788
        %v1792 = vsel %vm1704, 0, %v1790
        %v1793 = vcosq.f32.pop %v1791
        %v1794 = vsinq.f32.pop %v1791
        %vm1795 = vweird.f32 %v348
        %v1796 = vadd.s32 %v1792, 3
        %v1797 = vand.u32 %v1796, 3
        %vm1798 = vcmp.lt.s32.totalorder %v1797, 2
        %vm1799 = vcmp.eq.s32.totalorder %v1797, 0
        %v1800 = vxor.u32 %v1794, 2147483648
        %v1801 = vsel %vm1799, %v1793, %v1800
        %vm1802 = vcmp.eq.s32.totalorder %v1797, 2
        %v1803 = vxor.u32 %v1793, 2147483648
        %v1804 = vsel %vm1802, %v1803, %v1794
        %v1805 = vsel %vm1798, %v1801, %v1804
        %v1806 = vsel %vm1795, nan, %v1805
        %v1807 = vand.u32 2147483647, %v349
        %vm1808 = vcmp.le.f32.partialorder %v1807, 0.7853982
        %vm1809 = vcmp.lt.s32.totalorder %v349, 0
        %v1810 = vand.u32 %v349, 2139095040
        %v1811 = vshrl.u32 %v1810, 23
        %v1812 = vsub.s32 %v1811, 127
        %v1813 = vand.u32 2147483647, %v349
        %v1814 = vand.u32 %v1813, 8388607
        %v1815 = vor.u32 %v1814, 8388608
        %v1816 = vsub.s32 0, %v1815
        %v1817 = vadd.s32 %v1812, 1
        %vm1818 = vcmp.gt.s32.totalorder %v1817, 0
        %v1819 = vsel %vm1818, %v1817, 0
        %v1820 = vshrl.u32 %v1819, 5
        %v1821 = vand.u32 %v1819, 31
        %v1822 = vsub.s32 32, %v1821
        %v1823 = vshrl.u32 683565275, %v1822
        %v1824 = vshll.u32 683565275, %v1821
        %v1825 = vshrl.u32 2475754826, %v1822
        %v1826 = vor.u32 %v1824, %v1825
        %v1827 = vshll.u32 2475754826, %v1821
        %v1828 = vshrl.u32 2131351028, %v1822
        %v1829 = vor.u32 %v1827, %v1828
        %v1830 = vshll.u32 2131351028, %v1821
        %v1831 = vshrl.u32 2102212464, %v1822
        %v1832 = vor.u32 %v1830, %v1831
        %v1833 = vshll.u32 2102212464, %v1821
        %v1834 = vshrl.u32 920167782, %v1822
        %v1835 = vor.u32 %v1833, %v1834
        %v1836 = vshll.u32 920167782, %v1821
        %v1837 = vshrl.u32 1326507024, %v1822
        %v1838 = vor.u32 %v1836, %v1837
        %vm1839 = vcmp.lt.s32.totalorder %v1820, 1
        %vm1840 = vcmp.lt.s32.totalorder %v1820, 2
        %vm1841 = vcmp.lt.s32.totalorder %v1820, 3
        %vm1842 = vcmp.lt.s32.totalorder %v1820, 4
        %v1843 = vsel %vm1839, %v1823, %v1826
        %v1844 = vsel %vm1842, %v1832, 2102212464
        %v1845 = vsel %vm1841, %v1829, %v1844
        %v1846 = vsel %vm1840, %v1843, %v1845
        %v1847 = vsel %vm1839, %v1826, %v1829
        %v1848 = vsel %vm1842, %v1835, 920167782
        %v1849 = vsel %vm1841, %v1832, %v1848
        %v1850 = vsel %vm1840, %v1847, %v1849
        %v1851 = vsel %vm1839, %v1829, %v1832
        %v1852 = vsel %vm1842, %v1838, 1326507024
        %v1853 = vsel %vm1841, %v1835, %v1852
        %v1854 = vsel %vm1840, %v1851, %v1853
        %v1855 = vshll.u32 %v1815, 8
        %v1856 = vmul.u32.u64.compose %v1855, %v1854
        %v1857 = vextract.low.u32 %v1856
        %v1858 = vextract.high.u32 %v1856
        %v1859 = vmul.u32.u64.compose %v1855, %v1850
        %v1860 = vextract.low.u32 %v1859
        %v1861 = vextract.high.u32 %v1859
        %v1862 = vmul.u32 %v1855, %v1846
        %v1863 = vadd.s32 %v1858, %v1860
        %vm1864 = vc.u32 %v1858, %v1860
        %v1865 = vadd.s32 %v1861, 1
        %v1866 = vsel %vm1864, %v1865, %v1861
        %v1867 = vadd.s32 %v1862, %v1866
        %v1868 = vadd.s32 %v1867, 536870912
        %v1869 = vshrl.u32 %v1868, 30
        %v1870 = vshll.u32 %v1869, 30
        %v1871 = vsub.s32 %v1867, %v1870
        %vm1872 = vcmp.lt.s32.totalorder %v1871, 0
        %v1873 = vsub.s32 0, %v1871
        %v1874 = vsel %vm1872, %v1873, %v1871
        %v1875 = vclz %v1874
        %v1876 = vsub.s32 %v1875, 2
        %vm1877 = vcmp.gt.s32.totalorder 0, %v1876
        %v1878 = vsel %vm1877, 0, %v1876
        %v1879 = vsub.s32 32, %v1878
        %v1880 = vshll.u32 %v1871, %v1878
        %v1881 = vshrl.u32 %v1863, %v1879
        %v1882 = vor.u32 %v1880, %v1881
        %v1883 = vsub.s32 4294967266, %v1878
        %v1884 = vadd.s32 %v1883, 127
        %v1885 = vshll.u32 %v1884, 23
        %v1886 = vor.u32 4788187, %v1885
        %v1887 = vand.u32 2147483647, %v1886
        %v1889 = vcvt.s32.f32 %v1882
        %v1890 = vmul.f32 %v1889, %v1887
        %v1891 = vxor.u32 %v1890, 2147483648
        %v1892 = vsel %vm1809, %v1891, %v1890
        %v1893 = vsub.s32 4, %v1869
        %v1894 = vsel %vm1809, %v1893, %v1869
        %v1895 = vsel %vm1808, %v349, %v1892
        %v1896 = vsel %vm1808, 0, %v1894
        %v1897 = vcosq.f32.pop %v1895
        %v1898 = vsinq.f32.pop %v1895
        %vm1899 = vweird.f32 %v349
        %v1900 = vadd.s32 %v1896, 3
        %v1901 = vand.u32 %v1900, 3
        %vm1902 = vcmp.lt.s32.totalorder %v1901, 2
        %vm1903 = vcmp.eq.s32.totalorder %v1901, 0
        %v1904 = vxor.u32 %v1898, 2147483648
        %v1905 = vsel %vm1903, %v1897, %v1904
        %vm1906 = vcmp.eq.s32.totalorder %v1901, 2
        %v1907 = vxor.u32 %v1897, 2147483648
        %v1908 = vsel %vm1906, %v1907, %v1898
        %v1909 = vsel %vm1902, %v1905, %v1908
        %v1910 = vsel %vm1899, nan, %v1909
        %v1911 = vand.u32 2147483647, %v350
        %vm1912 = vcmp.le.f32.partialorder %v1911, 0.7853982
        %vm1913 = vcmp.lt.s32.totalorder %v350, 0
        %v1914 = vand.u32 %v350, 2139095040
        %v1915 = vshrl.u32 %v1914, 23
        %v1916 = vsub.s32 %v1915, 127
        %v1917 = vand.u32 2147483647, %v350
        %v1918 = vand.u32 %v1917, 8388607
        %v1919 = vor.u32 %v1918, 8388608
        %v1920 = vsub.s32 0, %v1919
        %v1921 = vadd.s32 %v1916, 1
        %vm1922 = vcmp.gt.s32.totalorder %v1921, 0
        %v1923 = vsel %vm1922, %v1921, 0
        %v1924 = vshrl.u32 %v1923, 5
        %v1925 = vand.u32 %v1923, 31
        %v1926 = vsub.s32 32, %v1925
        %v1927 = vshrl.u32 683565275, %v1926
        %v1928 = vshll.u32 683565275, %v1925
        %v1929 = vshrl.u32 2475754826, %v1926
        %v1930 = vor.u32 %v1928, %v1929
        %v1931 = vshll.u32 2475754826, %v1925
        %v1932 = vshrl.u32 2131351028, %v1926
        %v1933 = vor.u32 %v1931, %v1932
        %v1934 = vshll.u32 2131351028, %v1925
        %v1935 = vshrl.u32 2102212464, %v1926
        %v1936 = vor.u32 %v1934, %v1935
        %v1937 = vshll.u32 2102212464, %v1925
        %v1938 = vshrl.u32 920167782, %v1926
        %v1939 = vor.u32 %v1937, %v1938
        %v1940 = vshll.u32 920167782, %v1925
        %v1941 = vshrl.u32 1326507024, %v1926
        %v1942 = vor.u32 %v1940, %v1941
        %vm1943 = vcmp.lt.s32.totalorder %v1924, 1
        %vm1944 = vcmp.lt.s32.totalorder %v1924, 2
        %vm1945 = vcmp.lt.s32.totalorder %v1924, 3
        %vm1946 = vcmp.lt.s32.totalorder %v1924, 4
        %v1947 = vsel %vm1943, %v1927, %v1930
        %v1948 = vsel %vm1946, %v1936, 2102212464
        %v1949 = vsel %vm1945, %v1933, %v1948
        %v1950 = vsel %vm1944, %v1947, %v1949
        %v1951 = vsel %vm1943, %v1930, %v1933
        %v1952 = vsel %vm1946, %v1939, 920167782
        %v1953 = vsel %vm1945, %v1936, %v1952
        %v1954 = vsel %vm1944, %v1951, %v1953
        %v1955 = vsel %vm1943, %v1933, %v1936
        %v1956 = vsel %vm1946, %v1942, 1326507024
        %v1957 = vsel %vm1945, %v1939, %v1956
        %v1958 = vsel %vm1944, %v1955, %v1957
        %v1959 = vshll.u32 %v1919, 8
        %v1960 = vmul.u32.u64.compose %v1959, %v1958
        %v1961 = vextract.low.u32 %v1960
        %v1962 = vextract.high.u32 %v1960
        %v1963 = vmul.u32.u64.compose %v1959, %v1954
        %v1964 = vextract.low.u32 %v1963
        %v1965 = vextract.high.u32 %v1963
        %v1966 = vmul.u32 %v1959, %v1950
        %v1967 = vadd.s32 %v1962, %v1964
        %vm1968 = vc.u32 %v1962, %v1964
        %v1969 = vadd.s32 %v1965, 1
        %v1970 = vsel %vm1968, %v1969, %v1965
        %v1971 = vadd.s32 %v1966, %v1970
        %v1972 = vadd.s32 %v1971, 536870912
        %v1973 = vshrl.u32 %v1972, 30
        %v1974 = vshll.u32 %v1973, 30
        %v1975 = vsub.s32 %v1971, %v1974
        %vm1976 = vcmp.lt.s32.totalorder %v1975, 0
        %v1977 = vsub.s32 0, %v1975
        %v1978 = vsel %vm1976, %v1977, %v1975
        %v1979 = vclz %v1978
        %v1980 = vsub.s32 %v1979, 2
        %vm1981 = vcmp.gt.s32.totalorder 0, %v1980
        %v1982 = vsel %vm1981, 0, %v1980
        %v1983 = vsub.s32 32, %v1982
        %v1984 = vshll.u32 %v1975, %v1982
        %v1985 = vshrl.u32 %v1967, %v1983
        %v1986 = vor.u32 %v1984, %v1985
        %v1987 = vsub.s32 4294967266, %v1982
        %v1988 = vadd.s32 %v1987, 127
        %v1989 = vshll.u32 %v1988, 23
        %v1990 = vor.u32 4788187, %v1989
        %v1991 = vand.u32 2147483647, %v1990
        %v1993 = vcvt.s32.f32 %v1986
        %v1994 = vmul.f32 %v1993, %v1991
        %v1995 = vxor.u32 %v1994, 2147483648
        %v1996 = vsel %vm1913, %v1995, %v1994
        %v1997 = vsub.s32 4, %v1973
        %v1998 = vsel %vm1913, %v1997, %v1973
        %v1999 = vsel %vm1912, %v350, %v1996
        %v2000 = vsel %vm1912, 0, %v1998
        %v2001 = vcosq.f32.pop %v1999
        %v2002 = vsinq.f32.pop %v1999
        %vm2003 = vweird.f32 %v350
        %v2004 = vadd.s32 %v2000, 3
        %v2005 = vand.u32 %v2004, 3
        %vm2006 = vcmp.lt.s32.totalorder %v2005, 2
        %vm2007 = vcmp.eq.s32.totalorder %v2005, 0
        %v2008 = vxor.u32 %v2002, 2147483648
        %v2009 = vsel %vm2007, %v2001, %v2008
        %vm2010 = vcmp.eq.s32.totalorder %v2005, 2
        %v2011 = vxor.u32 %v2001, 2147483648
        %v2012 = vsel %vm2010, %v2011, %v2002
        %v2013 = vsel %vm2006, %v2009, %v2012
        %v2014 = vsel %vm2003, nan, %v2013
        %v2016 = vlaneseq
        %v2017 = vshrl.u32 %v2016, 7
        %v2018 = vsub.s32 0, %v2017
        %v2019 = vrot.slane %v227, %v2018
        %v2020 = vlaneseq
        %v2021 = vshrl.u32 %v2020, 7
        %v2022 = vsub.s32 1, %v2021
        %v2023 = vrot.slane %v227, %v2022
        %v2026 = vmul.f32 %v2019, %v242
        %v2027 = vmul.f32 %v2023, %v242
        %v2028 = vmul.f32 %v2019, %v247
        %v2029 = vmul.f32 %v2023, %v247
        %v2030 = vmul.f32 %v2019, %v252
        %v2031 = vmul.f32 %v2023, %v252
        %v2032 = vmul.f32 %v2019, %v257
        %v2033 = vmul.f32 %v2023, %v257
        %v2034 = vmul.f32 %v2019, %v262
        %v2035 = vmul.f32 %v2023, %v262
        %v2036 = vmul.f32 %v2019, %v267
        %v2037 = vmul.f32 %v2023, %v267
        %v2038 = vmul.f32 %v2019, %v272
        %v2039 = vmul.f32 %v2023, %v272
        %v2040 = vmul.f32 %v2019, %v277
        %v2041 = vmul.f32 %v2023, %v277
        %v2042 = vadd.f32 %v2026, %v298
        %v2043 = vadd.f32 %v2027, %v298
        %v2044 = vadd.f32 %v2028, %v303
        %v2045 = vadd.f32 %v2029, %v303
        %v2046 = vadd.f32 %v2030, %v308
        %v2047 = vadd.f32 %v2031, %v308
        %v2048 = vadd.f32 %v2032, %v313
        %v2049 = vadd.f32 %v2033, %v313
        %v2050 = vadd.f32 %v2034, %v318
        %v2051 = vadd.f32 %v2035, %v318
        %v2052 = vadd.f32 %v2036, %v323
        %v2053 = vadd.f32 %v2037, %v323
        %v2054 = vadd.f32 %v2038, %v328
        %v2055 = vadd.f32 %v2039, %v328
        %v2056 = vadd.f32 %v2040, %v333
        %v2057 = vadd.f32 %v2041, %v333
        %v2058 = vand.u32 2147483647, %v2042
        %vm2059 = vcmp.le.f32.partialorder %v2058, 0.7853982
        %vm2060 = vcmp.lt.s32.totalorder %v2042, 0
        %v2061 = vand.u32 %v2042, 2139095040
        %v2062 = vshrl.u32 %v2061, 23
        %v2063 = vsub.s32 %v2062, 127
        %v2064 = vand.u32 2147483647, %v2042
        %v2065 = vand.u32 %v2064, 8388607
        %v2066 = vor.u32 %v2065, 8388608
        %v2067 = vsub.s32 0, %v2066
        %v2068 = vadd.s32 %v2063, 1
        %vm2069 = vcmp.gt.s32.totalorder %v2068, 0
        %v2070 = vsel %vm2069, %v2068, 0
        %v2071 = vshrl.u32 %v2070, 5
        %v2072 = vand.u32 %v2070, 31
        %v2073 = vsub.s32 32, %v2072
        %v2074 = vshrl.u32 683565275, %v2073
        %v2075 = vshll.u32 683565275, %v2072
        %v2076 = vshrl.u32 2475754826, %v2073
        %v2077 = vor.u32 %v2075, %v2076
        %v2078 = vshll.u32 2475754826, %v2072
        %v2079 = vshrl.u32 2131351028, %v2073
        %v2080 = vor.u32 %v2078, %v2079
        %v2081 = vshll.u32 2131351028, %v2072
        %v2082 = vshrl.u32 2102212464, %v2073
        %v2083 = vor.u32 %v2081, %v2082
        %v2084 = vshll.u32 2102212464, %v2072
        %v2085 = vshrl.u32 920167782, %v2073
        %v2086 = vor.u32 %v2084, %v2085
        %v2087 = vshll.u32 920167782, %v2072
        %v2088 = vshrl.u32 1326507024, %v2073
        %v2089 = vor.u32 %v2087, %v2088
        %vm2090 = vcmp.lt.s32.totalorder %v2071, 1
        %vm2091 = vcmp.lt.s32.totalorder %v2071, 2
        %vm2092 = vcmp.lt.s32.totalorder %v2071, 3
        %vm2093 = vcmp.lt.s32.totalorder %v2071, 4
        %v2094 = vsel %vm2090, %v2074, %v2077
        %v2095 = vsel %vm2093, %v2083, 2102212464
        %v2096 = vsel %vm2092, %v2080, %v2095
        %v2097 = vsel %vm2091, %v2094, %v2096
        %v2098 = vsel %vm2090, %v2077, %v2080
        %v2099 = vsel %vm2093, %v2086, 920167782
        %v2100 = vsel %vm2092, %v2083, %v2099
        %v2101 = vsel %vm2091, %v2098, %v2100
        %v2102 = vsel %vm2090, %v2080, %v2083
        %v2103 = vsel %vm2093, %v2089, 1326507024
        %v2104 = vsel %vm2092, %v2086, %v2103
        %v2105 = vsel %vm2091, %v2102, %v2104
        %v2106 = vshll.u32 %v2066, 8
        %v2107 = vmul.u32.u64.compose %v2106, %v2105
        %v2108 = vextract.low.u32 %v2107
        %v2109 = vextract.high.u32 %v2107
        %v2110 = vmul.u32.u64.compose %v2106, %v2101
        %v2111 = vextract.low.u32 %v2110
        %v2112 = vextract.high.u32 %v2110
        %v2113 = vmul.u32 %v2106, %v2097
        %v2114 = vadd.s32 %v2109, %v2111
        %vm2115 = vc.u32 %v2109, %v2111
        %v2116 = vadd.s32 %v2112, 1
        %v2117 = vsel %vm2115, %v2116, %v2112
        %v2118 = vadd.s32 %v2113, %v2117
        %v2119 = vadd.s32 %v2118, 536870912
        %v2120 = vshrl.u32 %v2119, 30
        %v2121 = vshll.u32 %v2120, 30
        %v2122 = vsub.s32 %v2118, %v2121
        %vm2123 = vcmp.lt.s32.totalorder %v2122, 0
        %v2124 = vsub.s32 0, %v2122
        %v2125 = vsel %vm2123, %v2124, %v2122
        %v2126 = vclz %v2125
        %v2127 = vsub.s32 %v2126, 2
        %vm2128 = vcmp.gt.s32.totalorder 0, %v2127
        %v2129 = vsel %vm2128, 0, %v2127
        %v2130 = vsub.s32 32, %v2129
        %v2131 = vshll.u32 %v2122, %v2129
        %v2132 = vshrl.u32 %v2114, %v2130
        %v2133 = vor.u32 %v2131, %v2132
        %v2134 = vsub.s32 4294967266, %v2129
        %v2135 = vadd.s32 %v2134, 127
        %v2136 = vshll.u32 %v2135, 23
        %v2137 = vor.u32 4788187, %v2136
        %v2138 = vand.u32 2147483647, %v2137
        %v2140 = vcvt.s32.f32 %v2133
        %v2141 = vmul.f32 %v2140, %v2138
        %v2142 = vxor.u32 %v2141, 2147483648
        %v2143 = vsel %vm2060, %v2142, %v2141
        %v2144 = vsub.s32 4, %v2120
        %v2145 = vsel %vm2060, %v2144, %v2120
        %v2146 = vsel %vm2059, %v2042, %v2143
        %v2147 = vsel %vm2059, 0, %v2145
        %v2148 = vcosq.f32.pop %v2146
        %v2149 = vsinq.f32.pop %v2146
        %vm2150 = vweird.f32 %v2042
        %v2151 = vadd.s32 %v2147, 3
        %v2152 = vand.u32 %v2151, 3
        %vm2153 = vcmp.lt.s32.totalorder %v2152, 2
        %vm2154 = vcmp.eq.s32.totalorder %v2152, 0
        %v2155 = vxor.u32 %v2149, 2147483648
        %v2156 = vsel %vm2154, %v2148, %v2155
        %vm2157 = vcmp.eq.s32.totalorder %v2152, 2
        %v2158 = vxor.u32 %v2148, 2147483648
        %v2159 = vsel %vm2157, %v2158, %v2149
        %v2160 = vsel %vm2153, %v2156, %v2159
        %v2161 = vsel %vm2150, nan, %v2160
        %v2162 = vand.u32 2147483647, %v2043
        %vm2163 = vcmp.le.f32.partialorder %v2162, 0.7853982
        %vm2164 = vcmp.lt.s32.totalorder %v2043, 0
        %v2165 = vand.u32 %v2043, 2139095040
        %v2166 = vshrl.u32 %v2165, 23
        %v2167 = vsub.s32 %v2166, 127
        %v2168 = vand.u32 2147483647, %v2043
        %v2169 = vand.u32 %v2168, 8388607
        %v2170 = vor.u32 %v2169, 8388608
        %v2171 = vsub.s32 0, %v2170
        %v2172 = vadd.s32 %v2167, 1
        %vm2173 = vcmp.gt.s32.totalorder %v2172, 0
        %v2174 = vsel %vm2173, %v2172, 0
        %v2175 = vshrl.u32 %v2174, 5
        %v2176 = vand.u32 %v2174, 31
        %v2177 = vsub.s32 32, %v2176
        %v2178 = vshrl.u32 683565275, %v2177
        %v2179 = vshll.u32 683565275, %v2176
        %v2180 = vshrl.u32 2475754826, %v2177
        %v2181 = vor.u32 %v2179, %v2180
        %v2182 = vshll.u32 2475754826, %v2176
        %v2183 = vshrl.u32 2131351028, %v2177
        %v2184 = vor.u32 %v2182, %v2183
        %v2185 = vshll.u32 2131351028, %v2176
        %v2186 = vshrl.u32 2102212464, %v2177
        %v2187 = vor.u32 %v2185, %v2186
        %v2188 = vshll.u32 2102212464, %v2176
        %v2189 = vshrl.u32 920167782, %v2177
        %v2190 = vor.u32 %v2188, %v2189
        %v2191 = vshll.u32 920167782, %v2176
        %v2192 = vshrl.u32 1326507024, %v2177
        %v2193 = vor.u32 %v2191, %v2192
        %vm2194 = vcmp.lt.s32.totalorder %v2175, 1
        %vm2195 = vcmp.lt.s32.totalorder %v2175, 2
        %vm2196 = vcmp.lt.s32.totalorder %v2175, 3
        %vm2197 = vcmp.lt.s32.totalorder %v2175, 4
        %v2198 = vsel %vm2194, %v2178, %v2181
        %v2199 = vsel %vm2197, %v2187, 2102212464
        %v2200 = vsel %vm2196, %v2184, %v2199
        %v2201 = vsel %vm2195, %v2198, %v2200
        %v2202 = vsel %vm2194, %v2181, %v2184
        %v2203 = vsel %vm2197, %v2190, 920167782
        %v2204 = vsel %vm2196, %v2187, %v2203
        %v2205 = vsel %vm2195, %v2202, %v2204
        %v2206 = vsel %vm2194, %v2184, %v2187
        %v2207 = vsel %vm2197, %v2193, 1326507024
        %v2208 = vsel %vm2196, %v2190, %v2207
        %v2209 = vsel %vm2195, %v2206, %v2208
        %v2210 = vshll.u32 %v2170, 8
        %v2211 = vmul.u32.u64.compose %v2210, %v2209
        %v2212 = vextract.low.u32 %v2211
        %v2213 = vextract.high.u32 %v2211
        %v2214 = vmul.u32.u64.compose %v2210, %v2205
        %v2215 = vextract.low.u32 %v2214
        %v2216 = vextract.high.u32 %v2214
        %v2217 = vmul.u32 %v2210, %v2201
        %v2218 = vadd.s32 %v2213, %v2215
        %vm2219 = vc.u32 %v2213, %v2215
        %v2220 = vadd.s32 %v2216, 1
        %v2221 = vsel %vm2219, %v2220, %v2216
        %v2222 = vadd.s32 %v2217, %v2221
        %v2223 = vadd.s32 %v2222, 536870912
        %v2224 = vshrl.u32 %v2223, 30
        %v2225 = vshll.u32 %v2224, 30
        %v2226 = vsub.s32 %v2222, %v2225
        %vm2227 = vcmp.lt.s32.totalorder %v2226, 0
        %v2228 = vsub.s32 0, %v2226
        %v2229 = vsel %vm2227, %v2228, %v2226
        %v2230 = vclz %v2229
        %v2231 = vsub.s32 %v2230, 2
        %vm2232 = vcmp.gt.s32.totalorder 0, %v2231
        %v2233 = vsel %vm2232, 0, %v2231
        %v2234 = vsub.s32 32, %v2233
        %v2235 = vshll.u32 %v2226, %v2233
        %v2236 = vshrl.u32 %v2218, %v2234
        %v2237 = vor.u32 %v2235, %v2236
        %v2238 = vsub.s32 4294967266, %v2233
        %v2239 = vadd.s32 %v2238, 127
        %v2240 = vshll.u32 %v2239, 23
        %v2241 = vor.u32 4788187, %v2240
        %v2242 = vand.u32 2147483647, %v2241
        %v2244 = vcvt.s32.f32 %v2237
        %v2245 = vmul.f32 %v2244, %v2242
        %v2246 = vxor.u32 %v2245, 2147483648
        %v2247 = vsel %vm2164, %v2246, %v2245
        %v2248 = vsub.s32 4, %v2224
        %v2249 = vsel %vm2164, %v2248, %v2224
        %v2250 = vsel %vm2163, %v2043, %v2247
        %v2251 = vsel %vm2163, 0, %v2249
        %v2252 = vcosq.f32.pop %v2250
        %v2253 = vsinq.f32.pop %v2250
        %vm2254 = vweird.f32 %v2043
        %v2255 = vadd.s32 %v2251, 3
        %v2256 = vand.u32 %v2255, 3
        %vm2257 = vcmp.lt.s32.totalorder %v2256, 2
        %vm2258 = vcmp.eq.s32.totalorder %v2256, 0
        %v2259 = vxor.u32 %v2253, 2147483648
        %v2260 = vsel %vm2258, %v2252, %v2259
        %vm2261 = vcmp.eq.s32.totalorder %v2256, 2
        %v2262 = vxor.u32 %v2252, 2147483648
        %v2263 = vsel %vm2261, %v2262, %v2253
        %v2264 = vsel %vm2257, %v2260, %v2263
        %v2265 = vsel %vm2254, nan, %v2264
        %v2266 = vand.u32 2147483647, %v2044
        %vm2267 = vcmp.le.f32.partialorder %v2266, 0.7853982
        %vm2268 = vcmp.lt.s32.totalorder %v2044, 0
        %v2269 = vand.u32 %v2044, 2139095040
        %v2270 = vshrl.u32 %v2269, 23
        %v2271 = vsub.s32 %v2270, 127
        %v2272 = vand.u32 2147483647, %v2044
        %v2273 = vand.u32 %v2272, 8388607
        %v2274 = vor.u32 %v2273, 8388608
        %v2275 = vsub.s32 0, %v2274
        %v2276 = vadd.s32 %v2271, 1
        %vm2277 = vcmp.gt.s32.totalorder %v2276, 0
        %v2278 = vsel %vm2277, %v2276, 0
        %v2279 = vshrl.u32 %v2278, 5
        %v2280 = vand.u32 %v2278, 31
        %v2281 = vsub.s32 32, %v2280
        %v2282 = vshrl.u32 683565275, %v2281
        %v2283 = vshll.u32 683565275, %v2280
        %v2284 = vshrl.u32 2475754826, %v2281
        %v2285 = vor.u32 %v2283, %v2284
        %v2286 = vshll.u32 2475754826, %v2280
        %v2287 = vshrl.u32 2131351028, %v2281
        %v2288 = vor.u32 %v2286, %v2287
        %v2289 = vshll.u32 2131351028, %v2280
        %v2290 = vshrl.u32 2102212464, %v2281
        %v2291 = vor.u32 %v2289, %v2290
        %v2292 = vshll.u32 2102212464, %v2280
        %v2293 = vshrl.u32 920167782, %v2281
        %v2294 = vor.u32 %v2292, %v2293
        %v2295 = vshll.u32 920167782, %v2280
        %v2296 = vshrl.u32 1326507024, %v2281
        %v2297 = vor.u32 %v2295, %v2296
        %vm2298 = vcmp.lt.s32.totalorder %v2279, 1
        %vm2299 = vcmp.lt.s32.totalorder %v2279, 2
        %vm2300 = vcmp.lt.s32.totalorder %v2279, 3
        %vm2301 = vcmp.lt.s32.totalorder %v2279, 4
        %v2302 = vsel %vm2298, %v2282, %v2285
        %v2303 = vsel %vm2301, %v2291, 2102212464
        %v2304 = vsel %vm2300, %v2288, %v2303
        %v2305 = vsel %vm2299, %v2302, %v2304
        %v2306 = vsel %vm2298, %v2285, %v2288
        %v2307 = vsel %vm2301, %v2294, 920167782
        %v2308 = vsel %vm2300, %v2291, %v2307
        %v2309 = vsel %vm2299, %v2306, %v2308
        %v2310 = vsel %vm2298, %v2288, %v2291
        %v2311 = vsel %vm2301, %v2297, 1326507024
        %v2312 = vsel %vm2300, %v2294, %v2311
        %v2313 = vsel %vm2299, %v2310, %v2312
        %v2314 = vshll.u32 %v2274, 8
        %v2315 = vmul.u32.u64.compose %v2314, %v2313
        %v2316 = vextract.low.u32 %v2315
        %v2317 = vextract.high.u32 %v2315
        %v2318 = vmul.u32.u64.compose %v2314, %v2309
        %v2319 = vextract.low.u32 %v2318
        %v2320 = vextract.high.u32 %v2318
        %v2321 = vmul.u32 %v2314, %v2305
        %v2322 = vadd.s32 %v2317, %v2319
        %vm2323 = vc.u32 %v2317, %v2319
        %v2324 = vadd.s32 %v2320, 1
        %v2325 = vsel %vm2323, %v2324, %v2320
        %v2326 = vadd.s32 %v2321, %v2325
        %v2327 = vadd.s32 %v2326, 536870912
        %v2328 = vshrl.u32 %v2327, 30
        %v2329 = vshll.u32 %v2328, 30
        %v2330 = vsub.s32 %v2326, %v2329
        %vm2331 = vcmp.lt.s32.totalorder %v2330, 0
        %v2332 = vsub.s32 0, %v2330
        %v2333 = vsel %vm2331, %v2332, %v2330
        %v2334 = vclz %v2333
        %v2335 = vsub.s32 %v2334, 2
        %vm2336 = vcmp.gt.s32.totalorder 0, %v2335
        %v2337 = vsel %vm2336, 0, %v2335
        %v2338 = vsub.s32 32, %v2337
        %v2339 = vshll.u32 %v2330, %v2337
        %v2340 = vshrl.u32 %v2322, %v2338
        %v2341 = vor.u32 %v2339, %v2340
        %v2342 = vsub.s32 4294967266, %v2337
        %v2343 = vadd.s32 %v2342, 127
        %v2344 = vshll.u32 %v2343, 23
        %v2345 = vor.u32 4788187, %v2344
        %v2346 = vand.u32 2147483647, %v2345
        %v2348 = vcvt.s32.f32 %v2341
        %v2349 = vmul.f32 %v2348, %v2346
        %v2350 = vxor.u32 %v2349, 2147483648
        %v2351 = vsel %vm2268, %v2350, %v2349
        %v2352 = vsub.s32 4, %v2328
        %v2353 = vsel %vm2268, %v2352, %v2328
        %v2354 = vsel %vm2267, %v2044, %v2351
        %v2355 = vsel %vm2267, 0, %v2353
        %v2356 = vcosq.f32.pop %v2354
        %v2357 = vsinq.f32.pop %v2354
        %vm2358 = vweird.f32 %v2044
        %v2359 = vadd.s32 %v2355, 3
        %v2360 = vand.u32 %v2359, 3
        %vm2361 = vcmp.lt.s32.totalorder %v2360, 2
        %vm2362 = vcmp.eq.s32.totalorder %v2360, 0
        %v2363 = vxor.u32 %v2357, 2147483648
        %v2364 = vsel %vm2362, %v2356, %v2363
        %vm2365 = vcmp.eq.s32.totalorder %v2360, 2
        %v2366 = vxor.u32 %v2356, 2147483648
        %v2367 = vsel %vm2365, %v2366, %v2357
        %v2368 = vsel %vm2361, %v2364, %v2367
        %v2369 = vsel %vm2358, nan, %v2368
        %v2370 = vand.u32 2147483647, %v2045
        %vm2371 = vcmp.le.f32.partialorder %v2370, 0.7853982
        %vm2372 = vcmp.lt.s32.totalorder %v2045, 0
        %v2373 = vand.u32 %v2045, 2139095040
        %v2374 = vshrl.u32 %v2373, 23
        %v2375 = vsub.s32 %v2374, 127
        %v2376 = vand.u32 2147483647, %v2045
        %v2377 = vand.u32 %v2376, 8388607
        %v2378 = vor.u32 %v2377, 8388608
        %v2379 = vsub.s32 0, %v2378
        %v2380 = vadd.s32 %v2375, 1
        %vm2381 = vcmp.gt.s32.totalorder %v2380, 0
        %v2382 = vsel %vm2381, %v2380, 0
        %v2383 = vshrl.u32 %v2382, 5
        %v2384 = vand.u32 %v2382, 31
        %v2385 = vsub.s32 32, %v2384
        %v2386 = vshrl.u32 683565275, %v2385
        %v2387 = vshll.u32 683565275, %v2384
        %v2388 = vshrl.u32 2475754826, %v2385
        %v2389 = vor.u32 %v2387, %v2388
        %v2390 = vshll.u32 2475754826, %v2384
        %v2391 = vshrl.u32 2131351028, %v2385
        %v2392 = vor.u32 %v2390, %v2391
        %v2393 = vshll.u32 2131351028, %v2384
        %v2394 = vshrl.u32 2102212464, %v2385
        %v2395 = vor.u32 %v2393, %v2394
        %v2396 = vshll.u32 2102212464, %v2384
        %v2397 = vshrl.u32 920167782, %v2385
        %v2398 = vor.u32 %v2396, %v2397
        %v2399 = vshll.u32 920167782, %v2384
        %v2400 = vshrl.u32 1326507024, %v2385
        %v2401 = vor.u32 %v2399, %v2400
        %vm2402 = vcmp.lt.s32.totalorder %v2383, 1
        %vm2403 = vcmp.lt.s32.totalorder %v2383, 2
        %vm2404 = vcmp.lt.s32.totalorder %v2383, 3
        %vm2405 = vcmp.lt.s32.totalorder %v2383, 4
        %v2406 = vsel %vm2402, %v2386, %v2389
        %v2407 = vsel %vm2405, %v2395, 2102212464
        %v2408 = vsel %vm2404, %v2392, %v2407
        %v2409 = vsel %vm2403, %v2406, %v2408
        %v2410 = vsel %vm2402, %v2389, %v2392
        %v2411 = vsel %vm2405, %v2398, 920167782
        %v2412 = vsel %vm2404, %v2395, %v2411
        %v2413 = vsel %vm2403, %v2410, %v2412
        %v2414 = vsel %vm2402, %v2392, %v2395
        %v2415 = vsel %vm2405, %v2401, 1326507024
        %v2416 = vsel %vm2404, %v2398, %v2415
        %v2417 = vsel %vm2403, %v2414, %v2416
        %v2418 = vshll.u32 %v2378, 8
        %v2419 = vmul.u32.u64.compose %v2418, %v2417
        %v2420 = vextract.low.u32 %v2419
        %v2421 = vextract.high.u32 %v2419
        %v2422 = vmul.u32.u64.compose %v2418, %v2413
        %v2423 = vextract.low.u32 %v2422
        %v2424 = vextract.high.u32 %v2422
        %v2425 = vmul.u32 %v2418, %v2409
        %v2426 = vadd.s32 %v2421, %v2423
        %vm2427 = vc.u32 %v2421, %v2423
        %v2428 = vadd.s32 %v2424, 1
        %v2429 = vsel %vm2427, %v2428, %v2424
        %v2430 = vadd.s32 %v2425, %v2429
        %v2431 = vadd.s32 %v2430, 536870912
        %v2432 = vshrl.u32 %v2431, 30
        %v2433 = vshll.u32 %v2432, 30
        %v2434 = vsub.s32 %v2430, %v2433
        %vm2435 = vcmp.lt.s32.totalorder %v2434, 0
        %v2436 = vsub.s32 0, %v2434
        %v2437 = vsel %vm2435, %v2436, %v2434
        %v2438 = vclz %v2437
        %v2439 = vsub.s32 %v2438, 2
        %vm2440 = vcmp.gt.s32.totalorder 0, %v2439
        %v2441 = vsel %vm2440, 0, %v2439
        %v2442 = vsub.s32 32, %v2441
        %v2443 = vshll.u32 %v2434, %v2441
        %v2444 = vshrl.u32 %v2426, %v2442
        %v2445 = vor.u32 %v2443, %v2444
        %v2446 = vsub.s32 4294967266, %v2441
        %v2447 = vadd.s32 %v2446, 127
        %v2448 = vshll.u32 %v2447, 23
        %v2449 = vor.u32 4788187, %v2448
        %v2450 = vand.u32 2147483647, %v2449
        %v2452 = vcvt.s32.f32 %v2445
        %v2453 = vmul.f32 %v2452, %v2450
        %v2454 = vxor.u32 %v2453, 2147483648
        %v2455 = vsel %vm2372, %v2454, %v2453
        %v2456 = vsub.s32 4, %v2432
        %v2457 = vsel %vm2372, %v2456, %v2432
        %v2458 = vsel %vm2371, %v2045, %v2455
        %v2459 = vsel %vm2371, 0, %v2457
        %v2460 = vcosq.f32.pop %v2458
        %v2461 = vsinq.f32.pop %v2458
        %vm2462 = vweird.f32 %v2045
        %v2463 = vadd.s32 %v2459, 3
        %v2464 = vand.u32 %v2463, 3
        %vm2465 = vcmp.lt.s32.totalorder %v2464, 2
        %vm2466 = vcmp.eq.s32.totalorder %v2464, 0
        %v2467 = vxor.u32 %v2461, 2147483648
        %v2468 = vsel %vm2466, %v2460, %v2467
        %vm2469 = vcmp.eq.s32.totalorder %v2464, 2
        %v2470 = vxor.u32 %v2460, 2147483648
        %v2471 = vsel %vm2469, %v2470, %v2461
        %v2472 = vsel %vm2465, %v2468, %v2471
        %v2473 = vsel %vm2462, nan, %v2472
        %v2474 = vand.u32 2147483647, %v2046
        %vm2475 = vcmp.le.f32.partialorder %v2474, 0.7853982
        %vm2476 = vcmp.lt.s32.totalorder %v2046, 0
        %v2477 = vand.u32 %v2046, 2139095040
        %v2478 = vshrl.u32 %v2477, 23
        %v2479 = vsub.s32 %v2478, 127
        %v2480 = vand.u32 2147483647, %v2046
        %v2481 = vand.u32 %v2480, 8388607
        %v2482 = vor.u32 %v2481, 8388608
        %v2483 = vsub.s32 0, %v2482
        %v2484 = vadd.s32 %v2479, 1
        %vm2485 = vcmp.gt.s32.totalorder %v2484, 0
        %v2486 = vsel %vm2485, %v2484, 0
        %v2487 = vshrl.u32 %v2486, 5
        %v2488 = vand.u32 %v2486, 31
        %v2489 = vsub.s32 32, %v2488
        %v2490 = vshrl.u32 683565275, %v2489
        %v2491 = vshll.u32 683565275, %v2488
        %v2492 = vshrl.u32 2475754826, %v2489
        %v2493 = vor.u32 %v2491, %v2492
        %v2494 = vshll.u32 2475754826, %v2488
        %v2495 = vshrl.u32 2131351028, %v2489
        %v2496 = vor.u32 %v2494, %v2495
        %v2497 = vshll.u32 2131351028, %v2488
        %v2498 = vshrl.u32 2102212464, %v2489
        %v2499 = vor.u32 %v2497, %v2498
        %v2500 = vshll.u32 2102212464, %v2488
        %v2501 = vshrl.u32 920167782, %v2489
        %v2502 = vor.u32 %v2500, %v2501
        %v2503 = vshll.u32 920167782, %v2488
        %v2504 = vshrl.u32 1326507024, %v2489
        %v2505 = vor.u32 %v2503, %v2504
        %vm2506 = vcmp.lt.s32.totalorder %v2487, 1
        %vm2507 = vcmp.lt.s32.totalorder %v2487, 2
        %vm2508 = vcmp.lt.s32.totalorder %v2487, 3
        %vm2509 = vcmp.lt.s32.totalorder %v2487, 4
        %v2510 = vsel %vm2506, %v2490, %v2493
        %v2511 = vsel %vm2509, %v2499, 2102212464
        %v2512 = vsel %vm2508, %v2496, %v2511
        %v2513 = vsel %vm2507, %v2510, %v2512
        %v2514 = vsel %vm2506, %v2493, %v2496
        %v2515 = vsel %vm2509, %v2502, 920167782
        %v2516 = vsel %vm2508, %v2499, %v2515
        %v2517 = vsel %vm2507, %v2514, %v2516
        %v2518 = vsel %vm2506, %v2496, %v2499
        %v2519 = vsel %vm2509, %v2505, 1326507024
        %v2520 = vsel %vm2508, %v2502, %v2519
        %v2521 = vsel %vm2507, %v2518, %v2520
        %v2522 = vshll.u32 %v2482, 8
        %v2523 = vmul.u32.u64.compose %v2522, %v2521
        %v2524 = vextract.low.u32 %v2523
        %v2525 = vextract.high.u32 %v2523
        %v2526 = vmul.u32.u64.compose %v2522, %v2517
        %v2527 = vextract.low.u32 %v2526
        %v2528 = vextract.high.u32 %v2526
        %v2529 = vmul.u32 %v2522, %v2513
        %v2530 = vadd.s32 %v2525, %v2527
        %vm2531 = vc.u32 %v2525, %v2527
        %v2532 = vadd.s32 %v2528, 1
        %v2533 = vsel %vm2531, %v2532, %v2528
        %v2534 = vadd.s32 %v2529, %v2533
        %v2535 = vadd.s32 %v2534, 536870912
        %v2536 = vshrl.u32 %v2535, 30
        %v2537 = vshll.u32 %v2536, 30
        %v2538 = vsub.s32 %v2534, %v2537
        %vm2539 = vcmp.lt.s32.totalorder %v2538, 0
        %v2540 = vsub.s32 0, %v2538
        %v2541 = vsel %vm2539, %v2540, %v2538
        %v2542 = vclz %v2541
        %v2543 = vsub.s32 %v2542, 2
        %vm2544 = vcmp.gt.s32.totalorder 0, %v2543
        %v2545 = vsel %vm2544, 0, %v2543
        %v2546 = vsub.s32 32, %v2545
        %v2547 = vshll.u32 %v2538, %v2545
        %v2548 = vshrl.u32 %v2530, %v2546
        %v2549 = vor.u32 %v2547, %v2548
        %v2550 = vsub.s32 4294967266, %v2545
        %v2551 = vadd.s32 %v2550, 127
        %v2552 = vshll.u32 %v2551, 23
        %v2553 = vor.u32 4788187, %v2552
        %v2554 = vand.u32 2147483647, %v2553
        %v2556 = vcvt.s32.f32 %v2549
        %v2557 = vmul.f32 %v2556, %v2554
        %v2558 = vxor.u32 %v2557, 2147483648
        %v2559 = vsel %vm2476, %v2558, %v2557
        %v2560 = vsub.s32 4, %v2536
        %v2561 = vsel %vm2476, %v2560, %v2536
        %v2562 = vsel %vm2475, %v2046, %v2559
        %v2563 = vsel %vm2475, 0, %v2561
        %v2564 = vcosq.f32.pop %v2562
        %v2565 = vsinq.f32.pop %v2562
        %vm2566 = vweird.f32 %v2046
        %v2567 = vadd.s32 %v2563, 3
        %v2568 = vand.u32 %v2567, 3
        %vm2569 = vcmp.lt.s32.totalorder %v2568, 2
        %vm2570 = vcmp.eq.s32.totalorder %v2568, 0
        %v2571 = vxor.u32 %v2565, 2147483648
        %v2572 = vsel %vm2570, %v2564, %v2571
        %vm2573 = vcmp.eq.s32.totalorder %v2568, 2
        %v2574 = vxor.u32 %v2564, 2147483648
        %v2575 = vsel %vm2573, %v2574, %v2565
        %v2576 = vsel %vm2569, %v2572, %v2575
        %v2577 = vsel %vm2566, nan, %v2576
        %v2578 = vand.u32 2147483647, %v2047
        %vm2579 = vcmp.le.f32.partialorder %v2578, 0.7853982
        %vm2580 = vcmp.lt.s32.totalorder %v2047, 0
        %v2581 = vand.u32 %v2047, 2139095040
        %v2582 = vshrl.u32 %v2581, 23
        %v2583 = vsub.s32 %v2582, 127
        %v2584 = vand.u32 2147483647, %v2047
        %v2585 = vand.u32 %v2584, 8388607
        %v2586 = vor.u32 %v2585, 8388608
        %v2587 = vsub.s32 0, %v2586
        %v2588 = vadd.s32 %v2583, 1
        %vm2589 = vcmp.gt.s32.totalorder %v2588, 0
        %v2590 = vsel %vm2589, %v2588, 0
        %v2591 = vshrl.u32 %v2590, 5
        %v2592 = vand.u32 %v2590, 31
        %v2593 = vsub.s32 32, %v2592
        %v2594 = vshrl.u32 683565275, %v2593
        %v2595 = vshll.u32 683565275, %v2592
        %v2596 = vshrl.u32 2475754826, %v2593
        %v2597 = vor.u32 %v2595, %v2596
        %v2598 = vshll.u32 2475754826, %v2592
        %v2599 = vshrl.u32 2131351028, %v2593
        %v2600 = vor.u32 %v2598, %v2599
        %v2601 = vshll.u32 2131351028, %v2592
        %v2602 = vshrl.u32 2102212464, %v2593
        %v2603 = vor.u32 %v2601, %v2602
        %v2604 = vshll.u32 2102212464, %v2592
        %v2605 = vshrl.u32 920167782, %v2593
        %v2606 = vor.u32 %v2604, %v2605
        %v2607 = vshll.u32 920167782, %v2592
        %v2608 = vshrl.u32 1326507024, %v2593
        %v2609 = vor.u32 %v2607, %v2608
        %vm2610 = vcmp.lt.s32.totalorder %v2591, 1
        %vm2611 = vcmp.lt.s32.totalorder %v2591, 2
        %vm2612 = vcmp.lt.s32.totalorder %v2591, 3
        %vm2613 = vcmp.lt.s32.totalorder %v2591, 4
        %v2614 = vsel %vm2610, %v2594, %v2597
        %v2615 = vsel %vm2613, %v2603, 2102212464
        %v2616 = vsel %vm2612, %v2600, %v2615
        %v2617 = vsel %vm2611, %v2614, %v2616
        %v2618 = vsel %vm2610, %v2597, %v2600
        %v2619 = vsel %vm2613, %v2606, 920167782
        %v2620 = vsel %vm2612, %v2603, %v2619
        %v2621 = vsel %vm2611, %v2618, %v2620
        %v2622 = vsel %vm2610, %v2600, %v2603
        %v2623 = vsel %vm2613, %v2609, 1326507024
        %v2624 = vsel %vm2612, %v2606, %v2623
        %v2625 = vsel %vm2611, %v2622, %v2624
        %v2626 = vshll.u32 %v2586, 8
        %v2627 = vmul.u32.u64.compose %v2626, %v2625
        %v2628 = vextract.low.u32 %v2627
        %v2629 = vextract.high.u32 %v2627
        %v2630 = vmul.u32.u64.compose %v2626, %v2621
        %v2631 = vextract.low.u32 %v2630
        %v2632 = vextract.high.u32 %v2630
        %v2633 = vmul.u32 %v2626, %v2617
        %v2634 = vadd.s32 %v2629, %v2631
        %vm2635 = vc.u32 %v2629, %v2631
        %v2636 = vadd.s32 %v2632, 1
        %v2637 = vsel %vm2635, %v2636, %v2632
        %v2638 = vadd.s32 %v2633, %v2637
        %v2639 = vadd.s32 %v2638, 536870912
        %v2640 = vshrl.u32 %v2639, 30
        %v2641 = vshll.u32 %v2640, 30
        %v2642 = vsub.s32 %v2638, %v2641
        %vm2643 = vcmp.lt.s32.totalorder %v2642, 0
        %v2644 = vsub.s32 0, %v2642
        %v2645 = vsel %vm2643, %v2644, %v2642
        %v2646 = vclz %v2645
        %v2647 = vsub.s32 %v2646, 2
        %vm2648 = vcmp.gt.s32.totalorder 0, %v2647
        %v2649 = vsel %vm2648, 0, %v2647
        %v2650 = vsub.s32 32, %v2649
        %v2651 = vshll.u32 %v2642, %v2649
        %v2652 = vshrl.u32 %v2634, %v2650
        %v2653 = vor.u32 %v2651, %v2652
        %v2654 = vsub.s32 4294967266, %v2649
        %v2655 = vadd.s32 %v2654, 127
        %v2656 = vshll.u32 %v2655, 23
        %v2657 = vor.u32 4788187, %v2656
        %v2658 = vand.u32 2147483647, %v2657
        %v2660 = vcvt.s32.f32 %v2653
        %v2661 = vmul.f32 %v2660, %v2658
        %v2662 = vxor.u32 %v2661, 2147483648
        %v2663 = vsel %vm2580, %v2662, %v2661
        %v2664 = vsub.s32 4, %v2640
        %v2665 = vsel %vm2580, %v2664, %v2640
        %v2666 = vsel %vm2579, %v2047, %v2663
        %v2667 = vsel %vm2579, 0, %v2665
        %v2668 = vcosq.f32.pop %v2666
        %v2669 = vsinq.f32.pop %v2666
        %vm2670 = vweird.f32 %v2047
        %v2671 = vadd.s32 %v2667, 3
        %v2672 = vand.u32 %v2671, 3
        %vm2673 = vcmp.lt.s32.totalorder %v2672, 2
        %vm2674 = vcmp.eq.s32.totalorder %v2672, 0
        %v2675 = vxor.u32 %v2669, 2147483648
        %v2676 = vsel %vm2674, %v2668, %v2675
        %vm2677 = vcmp.eq.s32.totalorder %v2672, 2
        %v2678 = vxor.u32 %v2668, 2147483648
        %v2679 = vsel %vm2677, %v2678, %v2669
        %v2680 = vsel %vm2673, %v2676, %v2679
        %v2681 = vsel %vm2670, nan, %v2680
        %v2682 = vand.u32 2147483647, %v2048
        %vm2683 = vcmp.le.f32.partialorder %v2682, 0.7853982
        %vm2684 = vcmp.lt.s32.totalorder %v2048, 0
        %v2685 = vand.u32 %v2048, 2139095040
        %v2686 = vshrl.u32 %v2685, 23
        %v2687 = vsub.s32 %v2686, 127
        %v2688 = vand.u32 2147483647, %v2048
        %v2689 = vand.u32 %v2688, 8388607
        %v2690 = vor.u32 %v2689, 8388608
        %v2691 = vsub.s32 0, %v2690
        %v2692 = vadd.s32 %v2687, 1
        %vm2693 = vcmp.gt.s32.totalorder %v2692, 0
        %v2694 = vsel %vm2693, %v2692, 0
        %v2695 = vshrl.u32 %v2694, 5
        %v2696 = vand.u32 %v2694, 31
        %v2697 = vsub.s32 32, %v2696
        %v2698 = vshrl.u32 683565275, %v2697
        %v2699 = vshll.u32 683565275, %v2696
        %v2700 = vshrl.u32 2475754826, %v2697
        %v2701 = vor.u32 %v2699, %v2700
        %v2702 = vshll.u32 2475754826, %v2696
        %v2703 = vshrl.u32 2131351028, %v2697
        %v2704 = vor.u32 %v2702, %v2703
        %v2705 = vshll.u32 2131351028, %v2696
        %v2706 = vshrl.u32 2102212464, %v2697
        %v2707 = vor.u32 %v2705, %v2706
        %v2708 = vshll.u32 2102212464, %v2696
        %v2709 = vshrl.u32 920167782, %v2697
        %v2710 = vor.u32 %v2708, %v2709
        %v2711 = vshll.u32 920167782, %v2696
        %v2712 = vshrl.u32 1326507024, %v2697
        %v2713 = vor.u32 %v2711, %v2712
        %vm2714 = vcmp.lt.s32.totalorder %v2695, 1
        %vm2715 = vcmp.lt.s32.totalorder %v2695, 2
        %vm2716 = vcmp.lt.s32.totalorder %v2695, 3
        %vm2717 = vcmp.lt.s32.totalorder %v2695, 4
        %v2718 = vsel %vm2714, %v2698, %v2701
        %v2719 = vsel %vm2717, %v2707, 2102212464
        %v2720 = vsel %vm2716, %v2704, %v2719
        %v2721 = vsel %vm2715, %v2718, %v2720
        %v2722 = vsel %vm2714, %v2701, %v2704
        %v2723 = vsel %vm2717, %v2710, 920167782
        %v2724 = vsel %vm2716, %v2707, %v2723
        %v2725 = vsel %vm2715, %v2722, %v2724
        %v2726 = vsel %vm2714, %v2704, %v2707
        %v2727 = vsel %vm2717, %v2713, 1326507024
        %v2728 = vsel %vm2716, %v2710, %v2727
        %v2729 = vsel %vm2715, %v2726, %v2728
        %v2730 = vshll.u32 %v2690, 8
        %v2731 = vmul.u32.u64.compose %v2730, %v2729
        %v2732 = vextract.low.u32 %v2731
        %v2733 = vextract.high.u32 %v2731
        %v2734 = vmul.u32.u64.compose %v2730, %v2725
        %v2735 = vextract.low.u32 %v2734
        %v2736 = vextract.high.u32 %v2734
        %v2737 = vmul.u32 %v2730, %v2721
        %v2738 = vadd.s32 %v2733, %v2735
        %vm2739 = vc.u32 %v2733, %v2735
        %v2740 = vadd.s32 %v2736, 1
        %v2741 = vsel %vm2739, %v2740, %v2736
        %v2742 = vadd.s32 %v2737, %v2741
        %v2743 = vadd.s32 %v2742, 536870912
        %v2744 = vshrl.u32 %v2743, 30
        %v2745 = vshll.u32 %v2744, 30
        %v2746 = vsub.s32 %v2742, %v2745
        %vm2747 = vcmp.lt.s32.totalorder %v2746, 0
        %v2748 = vsub.s32 0, %v2746
        %v2749 = vsel %vm2747, %v2748, %v2746
        %v2750 = vclz %v2749
        %v2751 = vsub.s32 %v2750, 2
        %vm2752 = vcmp.gt.s32.totalorder 0, %v2751
        %v2753 = vsel %vm2752, 0, %v2751
        %v2754 = vsub.s32 32, %v2753
        %v2755 = vshll.u32 %v2746, %v2753
        %v2756 = vshrl.u32 %v2738, %v2754
        %v2757 = vor.u32 %v2755, %v2756
        %v2758 = vsub.s32 4294967266, %v2753
        %v2759 = vadd.s32 %v2758, 127
        %v2760 = vshll.u32 %v2759, 23
        %v2761 = vor.u32 4788187, %v2760
        %v2762 = vand.u32 2147483647, %v2761
        %v2764 = vcvt.s32.f32 %v2757
        %v2765 = vmul.f32 %v2764, %v2762
        %v2766 = vxor.u32 %v2765, 2147483648
        %v2767 = vsel %vm2684, %v2766, %v2765
        %v2768 = vsub.s32 4, %v2744
        %v2769 = vsel %vm2684, %v2768, %v2744
        %v2770 = vsel %vm2683, %v2048, %v2767
        %v2771 = vsel %vm2683, 0, %v2769
        %v2772 = vcosq.f32.pop %v2770
        %v2773 = vsinq.f32.pop %v2770
        %vm2774 = vweird.f32 %v2048
        %v2775 = vadd.s32 %v2771, 3
        %v2776 = vand.u32 %v2775, 3
        %vm2777 = vcmp.lt.s32.totalorder %v2776, 2
        %vm2778 = vcmp.eq.s32.totalorder %v2776, 0
        %v2779 = vxor.u32 %v2773, 2147483648
        %v2780 = vsel %vm2778, %v2772, %v2779
        %vm2781 = vcmp.eq.s32.totalorder %v2776, 2
        %v2782 = vxor.u32 %v2772, 2147483648
        %v2783 = vsel %vm2781, %v2782, %v2773
        %v2784 = vsel %vm2777, %v2780, %v2783
        %v2785 = vsel %vm2774, nan, %v2784
        %v2786 = vand.u32 2147483647, %v2049
        %vm2787 = vcmp.le.f32.partialorder %v2786, 0.7853982
        %vm2788 = vcmp.lt.s32.totalorder %v2049, 0
        %v2789 = vand.u32 %v2049, 2139095040
        %v2790 = vshrl.u32 %v2789, 23
        %v2791 = vsub.s32 %v2790, 127
        %v2792 = vand.u32 2147483647, %v2049
        %v2793 = vand.u32 %v2792, 8388607
        %v2794 = vor.u32 %v2793, 8388608
        %v2795 = vsub.s32 0, %v2794
        %v2796 = vadd.s32 %v2791, 1
        %vm2797 = vcmp.gt.s32.totalorder %v2796, 0
        %v2798 = vsel %vm2797, %v2796, 0
        %v2799 = vshrl.u32 %v2798, 5
        %v2800 = vand.u32 %v2798, 31
        %v2801 = vsub.s32 32, %v2800
        %v2802 = vshrl.u32 683565275, %v2801
        %v2803 = vshll.u32 683565275, %v2800
        %v2804 = vshrl.u32 2475754826, %v2801
        %v2805 = vor.u32 %v2803, %v2804
        %v2806 = vshll.u32 2475754826, %v2800
        %v2807 = vshrl.u32 2131351028, %v2801
        %v2808 = vor.u32 %v2806, %v2807
        %v2809 = vshll.u32 2131351028, %v2800
        %v2810 = vshrl.u32 2102212464, %v2801
        %v2811 = vor.u32 %v2809, %v2810
        %v2812 = vshll.u32 2102212464, %v2800
        %v2813 = vshrl.u32 920167782, %v2801
        %v2814 = vor.u32 %v2812, %v2813
        %v2815 = vshll.u32 920167782, %v2800
        %v2816 = vshrl.u32 1326507024, %v2801
        %v2817 = vor.u32 %v2815, %v2816
        %vm2818 = vcmp.lt.s32.totalorder %v2799, 1
        %vm2819 = vcmp.lt.s32.totalorder %v2799, 2
        %vm2820 = vcmp.lt.s32.totalorder %v2799, 3
        %vm2821 = vcmp.lt.s32.totalorder %v2799, 4
        %v2822 = vsel %vm2818, %v2802, %v2805
        %v2823 = vsel %vm2821, %v2811, 2102212464
        %v2824 = vsel %vm2820, %v2808, %v2823
        %v2825 = vsel %vm2819, %v2822, %v2824
        %v2826 = vsel %vm2818, %v2805, %v2808
        %v2827 = vsel %vm2821, %v2814, 920167782
        %v2828 = vsel %vm2820, %v2811, %v2827
        %v2829 = vsel %vm2819, %v2826, %v2828
        %v2830 = vsel %vm2818, %v2808, %v2811
        %v2831 = vsel %vm2821, %v2817, 1326507024
        %v2832 = vsel %vm2820, %v2814, %v2831
        %v2833 = vsel %vm2819, %v2830, %v2832
        %v2834 = vshll.u32 %v2794, 8
        %v2835 = vmul.u32.u64.compose %v2834, %v2833
        %v2836 = vextract.low.u32 %v2835
        %v2837 = vextract.high.u32 %v2835
        %v2838 = vmul.u32.u64.compose %v2834, %v2829
        %v2839 = vextract.low.u32 %v2838
        %v2840 = vextract.high.u32 %v2838
        %v2841 = vmul.u32 %v2834, %v2825
        %v2842 = vadd.s32 %v2837, %v2839
        %vm2843 = vc.u32 %v2837, %v2839
        %v2844 = vadd.s32 %v2840, 1
        %v2845 = vsel %vm2843, %v2844, %v2840
        %v2846 = vadd.s32 %v2841, %v2845
        %v2847 = vadd.s32 %v2846, 536870912
        %v2848 = vshrl.u32 %v2847, 30
        %v2849 = vshll.u32 %v2848, 30
        %v2850 = vsub.s32 %v2846, %v2849
        %vm2851 = vcmp.lt.s32.totalorder %v2850, 0
        %v2852 = vsub.s32 0, %v2850
        %v2853 = vsel %vm2851, %v2852, %v2850
        %v2854 = vclz %v2853
        %v2855 = vsub.s32 %v2854, 2
        %vm2856 = vcmp.gt.s32.totalorder 0, %v2855
        %v2857 = vsel %vm2856, 0, %v2855
        %v2858 = vsub.s32 32, %v2857
        %v2859 = vshll.u32 %v2850, %v2857
        %v2860 = vshrl.u32 %v2842, %v2858
        %v2861 = vor.u32 %v2859, %v2860
        %v2862 = vsub.s32 4294967266, %v2857
        %v2863 = vadd.s32 %v2862, 127
        %v2864 = vshll.u32 %v2863, 23
        %v2865 = vor.u32 4788187, %v2864
        %v2866 = vand.u32 2147483647, %v2865
        %v2868 = vcvt.s32.f32 %v2861
        %v2869 = vmul.f32 %v2868, %v2866
        %v2870 = vxor.u32 %v2869, 2147483648
        %v2871 = vsel %vm2788, %v2870, %v2869
        %v2872 = vsub.s32 4, %v2848
        %v2873 = vsel %vm2788, %v2872, %v2848
        %v2874 = vsel %vm2787, %v2049, %v2871
        %v2875 = vsel %vm2787, 0, %v2873
        %v2876 = vcosq.f32.pop %v2874
        %v2877 = vsinq.f32.pop %v2874
        %vm2878 = vweird.f32 %v2049
        %v2879 = vadd.s32 %v2875, 3
        %v2880 = vand.u32 %v2879, 3
        %vm2881 = vcmp.lt.s32.totalorder %v2880, 2
        %vm2882 = vcmp.eq.s32.totalorder %v2880, 0
        %v2883 = vxor.u32 %v2877, 2147483648
        %v2884 = vsel %vm2882, %v2876, %v2883
        %vm2885 = vcmp.eq.s32.totalorder %v2880, 2
        %v2886 = vxor.u32 %v2876, 2147483648
        %v2887 = vsel %vm2885, %v2886, %v2877
        %v2888 = vsel %vm2881, %v2884, %v2887
        %v2889 = vsel %vm2878, nan, %v2888
        %v2890 = vand.u32 2147483647, %v2050
        %vm2891 = vcmp.le.f32.partialorder %v2890, 0.7853982
        %vm2892 = vcmp.lt.s32.totalorder %v2050, 0
        %v2893 = vand.u32 %v2050, 2139095040
        %v2894 = vshrl.u32 %v2893, 23
        %v2895 = vsub.s32 %v2894, 127
        %v2896 = vand.u32 2147483647, %v2050
        %v2897 = vand.u32 %v2896, 8388607
        %v2898 = vor.u32 %v2897, 8388608
        %v2899 = vsub.s32 0, %v2898
        %v2900 = vadd.s32 %v2895, 1
        %vm2901 = vcmp.gt.s32.totalorder %v2900, 0
        %v2902 = vsel %vm2901, %v2900, 0
        %v2903 = vshrl.u32 %v2902, 5
        %v2904 = vand.u32 %v2902, 31
        %v2905 = vsub.s32 32, %v2904
        %v2906 = vshrl.u32 683565275, %v2905
        %v2907 = vshll.u32 683565275, %v2904
        %v2908 = vshrl.u32 2475754826, %v2905
        %v2909 = vor.u32 %v2907, %v2908
        %v2910 = vshll.u32 2475754826, %v2904
        %v2911 = vshrl.u32 2131351028, %v2905
        %v2912 = vor.u32 %v2910, %v2911
        %v2913 = vshll.u32 2131351028, %v2904
        %v2914 = vshrl.u32 2102212464, %v2905
        %v2915 = vor.u32 %v2913, %v2914
        %v2916 = vshll.u32 2102212464, %v2904
        %v2917 = vshrl.u32 920167782, %v2905
        %v2918 = vor.u32 %v2916, %v2917
        %v2919 = vshll.u32 920167782, %v2904
        %v2920 = vshrl.u32 1326507024, %v2905
        %v2921 = vor.u32 %v2919, %v2920
        %vm2922 = vcmp.lt.s32.totalorder %v2903, 1
        %vm2923 = vcmp.lt.s32.totalorder %v2903, 2
        %vm2924 = vcmp.lt.s32.totalorder %v2903, 3
        %vm2925 = vcmp.lt.s32.totalorder %v2903, 4
        %v2926 = vsel %vm2922, %v2906, %v2909
        %v2927 = vsel %vm2925, %v2915, 2102212464
        %v2928 = vsel %vm2924, %v2912, %v2927
        %v2929 = vsel %vm2923, %v2926, %v2928
        %v2930 = vsel %vm2922, %v2909, %v2912
        %v2931 = vsel %vm2925, %v2918, 920167782
        %v2932 = vsel %vm2924, %v2915, %v2931
        %v2933 = vsel %vm2923, %v2930, %v2932
        %v2934 = vsel %vm2922, %v2912, %v2915
        %v2935 = vsel %vm2925, %v2921, 1326507024
        %v2936 = vsel %vm2924, %v2918, %v2935
        %v2937 = vsel %vm2923, %v2934, %v2936
        %v2938 = vshll.u32 %v2898, 8
        %v2939 = vmul.u32.u64.compose %v2938, %v2937
        %v2940 = vextract.low.u32 %v2939
        %v2941 = vextract.high.u32 %v2939
        %v2942 = vmul.u32.u64.compose %v2938, %v2933
        %v2943 = vextract.low.u32 %v2942
        %v2944 = vextract.high.u32 %v2942
        %v2945 = vmul.u32 %v2938, %v2929
        %v2946 = vadd.s32 %v2941, %v2943
        %vm2947 = vc.u32 %v2941, %v2943
        %v2948 = vadd.s32 %v2944, 1
        %v2949 = vsel %vm2947, %v2948, %v2944
        %v2950 = vadd.s32 %v2945, %v2949
        %v2951 = vadd.s32 %v2950, 536870912
        %v2952 = vshrl.u32 %v2951, 30
        %v2953 = vshll.u32 %v2952, 30
        %v2954 = vsub.s32 %v2950, %v2953
        %vm2955 = vcmp.lt.s32.totalorder %v2954, 0
        %v2956 = vsub.s32 0, %v2954
        %v2957 = vsel %vm2955, %v2956, %v2954
        %v2958 = vclz %v2957
        %v2959 = vsub.s32 %v2958, 2
        %vm2960 = vcmp.gt.s32.totalorder 0, %v2959
        %v2961 = vsel %vm2960, 0, %v2959
        %v2962 = vsub.s32 32, %v2961
        %v2963 = vshll.u32 %v2954, %v2961
        %v2964 = vshrl.u32 %v2946, %v2962
        %v2965 = vor.u32 %v2963, %v2964
        %v2966 = vsub.s32 4294967266, %v2961
        %v2967 = vadd.s32 %v2966, 127
        %v2968 = vshll.u32 %v2967, 23
        %v2969 = vor.u32 4788187, %v2968
        %v2970 = vand.u32 2147483647, %v2969
        %v2972 = vcvt.s32.f32 %v2965
        %v2973 = vmul.f32 %v2972, %v2970
        %v2974 = vxor.u32 %v2973, 2147483648
        %v2975 = vsel %vm2892, %v2974, %v2973
        %v2976 = vsub.s32 4, %v2952
        %v2977 = vsel %vm2892, %v2976, %v2952
        %v2978 = vsel %vm2891, %v2050, %v2975
        %v2979 = vsel %vm2891, 0, %v2977
        %v2980 = vcosq.f32.pop %v2978
        %v2981 = vsinq.f32.pop %v2978
        %vm2982 = vweird.f32 %v2050
        %v2983 = vadd.s32 %v2979, 3
        %v2984 = vand.u32 %v2983, 3
        %vm2985 = vcmp.lt.s32.totalorder %v2984, 2
        %vm2986 = vcmp.eq.s32.totalorder %v2984, 0
        %v2987 = vxor.u32 %v2981, 2147483648
        %v2988 = vsel %vm2986, %v2980, %v2987
        %vm2989 = vcmp.eq.s32.totalorder %v2984, 2
        %v2990 = vxor.u32 %v2980, 2147483648
        %v2991 = vsel %vm2989, %v2990, %v2981
        %v2992 = vsel %vm2985, %v2988, %v2991
        %v2993 = vsel %vm2982, nan, %v2992
        %v2994 = vand.u32 2147483647, %v2051
        %vm2995 = vcmp.le.f32.partialorder %v2994, 0.7853982
        %vm2996 = vcmp.lt.s32.totalorder %v2051, 0
        %v2997 = vand.u32 %v2051, 2139095040
        %v2998 = vshrl.u32 %v2997, 23
        %v2999 = vsub.s32 %v2998, 127
        %v3000 = vand.u32 2147483647, %v2051
        %v3001 = vand.u32 %v3000, 8388607
        %v3002 = vor.u32 %v3001, 8388608
        %v3003 = vsub.s32 0, %v3002
        %v3004 = vadd.s32 %v2999, 1
        %vm3005 = vcmp.gt.s32.totalorder %v3004, 0
        %v3006 = vsel %vm3005, %v3004, 0
        %v3007 = vshrl.u32 %v3006, 5
        %v3008 = vand.u32 %v3006, 31
        %v3009 = vsub.s32 32, %v3008
        %v3010 = vshrl.u32 683565275, %v3009
        %v3011 = vshll.u32 683565275, %v3008
        %v3012 = vshrl.u32 2475754826, %v3009
        %v3013 = vor.u32 %v3011, %v3012
        %v3014 = vshll.u32 2475754826, %v3008
        %v3015 = vshrl.u32 2131351028, %v3009
        %v3016 = vor.u32 %v3014, %v3015
        %v3017 = vshll.u32 2131351028, %v3008
        %v3018 = vshrl.u32 2102212464, %v3009
        %v3019 = vor.u32 %v3017, %v3018
        %v3020 = vshll.u32 2102212464, %v3008
        %v3021 = vshrl.u32 920167782, %v3009
        %v3022 = vor.u32 %v3020, %v3021
        %v3023 = vshll.u32 920167782, %v3008
        %v3024 = vshrl.u32 1326507024, %v3009
        %v3025 = vor.u32 %v3023, %v3024
        %vm3026 = vcmp.lt.s32.totalorder %v3007, 1
        %vm3027 = vcmp.lt.s32.totalorder %v3007, 2
        %vm3028 = vcmp.lt.s32.totalorder %v3007, 3
        %vm3029 = vcmp.lt.s32.totalorder %v3007, 4
        %v3030 = vsel %vm3026, %v3010, %v3013
        %v3031 = vsel %vm3029, %v3019, 2102212464
        %v3032 = vsel %vm3028, %v3016, %v3031
        %v3033 = vsel %vm3027, %v3030, %v3032
        %v3034 = vsel %vm3026, %v3013, %v3016
        %v3035 = vsel %vm3029, %v3022, 920167782
        %v3036 = vsel %vm3028, %v3019, %v3035
        %v3037 = vsel %vm3027, %v3034, %v3036
        %v3038 = vsel %vm3026, %v3016, %v3019
        %v3039 = vsel %vm3029, %v3025, 1326507024
        %v3040 = vsel %vm3028, %v3022, %v3039
        %v3041 = vsel %vm3027, %v3038, %v3040
        %v3042 = vshll.u32 %v3002, 8
        %v3043 = vmul.u32.u64.compose %v3042, %v3041
        %v3044 = vextract.low.u32 %v3043
        %v3045 = vextract.high.u32 %v3043
        %v3046 = vmul.u32.u64.compose %v3042, %v3037
        %v3047 = vextract.low.u32 %v3046
        %v3048 = vextract.high.u32 %v3046
        %v3049 = vmul.u32 %v3042, %v3033
        %v3050 = vadd.s32 %v3045, %v3047
        %vm3051 = vc.u32 %v3045, %v3047
        %v3052 = vadd.s32 %v3048, 1
        %v3053 = vsel %vm3051, %v3052, %v3048
        %v3054 = vadd.s32 %v3049, %v3053
        %v3055 = vadd.s32 %v3054, 536870912
        %v3056 = vshrl.u32 %v3055, 30
        %v3057 = vshll.u32 %v3056, 30
        %v3058 = vsub.s32 %v3054, %v3057
        %vm3059 = vcmp.lt.s32.totalorder %v3058, 0
        %v3060 = vsub.s32 0, %v3058
        %v3061 = vsel %vm3059, %v3060, %v3058
        %v3062 = vclz %v3061
        %v3063 = vsub.s32 %v3062, 2
        %vm3064 = vcmp.gt.s32.totalorder 0, %v3063
        %v3065 = vsel %vm3064, 0, %v3063
        %v3066 = vsub.s32 32, %v3065
        %v3067 = vshll.u32 %v3058, %v3065
        %v3068 = vshrl.u32 %v3050, %v3066
        %v3069 = vor.u32 %v3067, %v3068
        %v3070 = vsub.s32 4294967266, %v3065
        %v3071 = vadd.s32 %v3070, 127
        %v3072 = vshll.u32 %v3071, 23
        %v3073 = vor.u32 4788187, %v3072
        %v3074 = vand.u32 2147483647, %v3073
        %v3076 = vcvt.s32.f32 %v3069
        %v3077 = vmul.f32 %v3076, %v3074
        %v3078 = vxor.u32 %v3077, 2147483648
        %v3079 = vsel %vm2996, %v3078, %v3077
        %v3080 = vsub.s32 4, %v3056
        %v3081 = vsel %vm2996, %v3080, %v3056
        %v3082 = vsel %vm2995, %v2051, %v3079
        %v3083 = vsel %vm2995, 0, %v3081
        %v3084 = vcosq.f32.pop %v3082
        %v3085 = vsinq.f32.pop %v3082
        %vm3086 = vweird.f32 %v2051
        %v3087 = vadd.s32 %v3083, 3
        %v3088 = vand.u32 %v3087, 3
        %vm3089 = vcmp.lt.s32.totalorder %v3088, 2
        %vm3090 = vcmp.eq.s32.totalorder %v3088, 0
        %v3091 = vxor.u32 %v3085, 2147483648
        %v3092 = vsel %vm3090, %v3084, %v3091
        %vm3093 = vcmp.eq.s32.totalorder %v3088, 2
        %v3094 = vxor.u32 %v3084, 2147483648
        %v3095 = vsel %vm3093, %v3094, %v3085
        %v3096 = vsel %vm3089, %v3092, %v3095
        %v3097 = vsel %vm3086, nan, %v3096
        %v3098 = vand.u32 2147483647, %v2052
        %vm3099 = vcmp.le.f32.partialorder %v3098, 0.7853982
        %vm3100 = vcmp.lt.s32.totalorder %v2052, 0
        %v3101 = vand.u32 %v2052, 2139095040
        %v3102 = vshrl.u32 %v3101, 23
        %v3103 = vsub.s32 %v3102, 127
        %v3104 = vand.u32 2147483647, %v2052
        %v3105 = vand.u32 %v3104, 8388607
        %v3106 = vor.u32 %v3105, 8388608
        %v3107 = vsub.s32 0, %v3106
        %v3108 = vadd.s32 %v3103, 1
        %vm3109 = vcmp.gt.s32.totalorder %v3108, 0
        %v3110 = vsel %vm3109, %v3108, 0
        %v3111 = vshrl.u32 %v3110, 5
        %v3112 = vand.u32 %v3110, 31
        %v3113 = vsub.s32 32, %v3112
        %v3114 = vshrl.u32 683565275, %v3113
        %v3115 = vshll.u32 683565275, %v3112
        %v3116 = vshrl.u32 2475754826, %v3113
        %v3117 = vor.u32 %v3115, %v3116
        %v3118 = vshll.u32 2475754826, %v3112
        %v3119 = vshrl.u32 2131351028, %v3113
        %v3120 = vor.u32 %v3118, %v3119
        %v3121 = vshll.u32 2131351028, %v3112
        %v3122 = vshrl.u32 2102212464, %v3113
        %v3123 = vor.u32 %v3121, %v3122
        %v3124 = vshll.u32 2102212464, %v3112
        %v3125 = vshrl.u32 920167782, %v3113
        %v3126 = vor.u32 %v3124, %v3125
        %v3127 = vshll.u32 920167782, %v3112
        %v3128 = vshrl.u32 1326507024, %v3113
        %v3129 = vor.u32 %v3127, %v3128
        %vm3130 = vcmp.lt.s32.totalorder %v3111, 1
        %vm3131 = vcmp.lt.s32.totalorder %v3111, 2
        %vm3132 = vcmp.lt.s32.totalorder %v3111, 3
        %vm3133 = vcmp.lt.s32.totalorder %v3111, 4
        %v3134 = vsel %vm3130, %v3114, %v3117
        %v3135 = vsel %vm3133, %v3123, 2102212464
        %v3136 = vsel %vm3132, %v3120, %v3135
        %v3137 = vsel %vm3131, %v3134, %v3136
        %v3138 = vsel %vm3130, %v3117, %v3120
        %v3139 = vsel %vm3133, %v3126, 920167782
        %v3140 = vsel %vm3132, %v3123, %v3139
        %v3141 = vsel %vm3131, %v3138, %v3140
        %v3142 = vsel %vm3130, %v3120, %v3123
        %v3143 = vsel %vm3133, %v3129, 1326507024
        %v3144 = vsel %vm3132, %v3126, %v3143
        %v3145 = vsel %vm3131, %v3142, %v3144
        %v3146 = vshll.u32 %v3106, 8
        %v3147 = vmul.u32.u64.compose %v3146, %v3145
        %v3148 = vextract.low.u32 %v3147
        %v3149 = vextract.high.u32 %v3147
        %v3150 = vmul.u32.u64.compose %v3146, %v3141
        %v3151 = vextract.low.u32 %v3150
        %v3152 = vextract.high.u32 %v3150
        %v3153 = vmul.u32 %v3146, %v3137
        %v3154 = vadd.s32 %v3149, %v3151
        %vm3155 = vc.u32 %v3149, %v3151
        %v3156 = vadd.s32 %v3152, 1
        %v3157 = vsel %vm3155, %v3156, %v3152
        %v3158 = vadd.s32 %v3153, %v3157
        %v3159 = vadd.s32 %v3158, 536870912
        %v3160 = vshrl.u32 %v3159, 30
        %v3161 = vshll.u32 %v3160, 30
        %v3162 = vsub.s32 %v3158, %v3161
        %vm3163 = vcmp.lt.s32.totalorder %v3162, 0
        %v3164 = vsub.s32 0, %v3162
        %v3165 = vsel %vm3163, %v3164, %v3162
        %v3166 = vclz %v3165
        %v3167 = vsub.s32 %v3166, 2
        %vm3168 = vcmp.gt.s32.totalorder 0, %v3167
        %v3169 = vsel %vm3168, 0, %v3167
        %v3170 = vsub.s32 32, %v3169
        %v3171 = vshll.u32 %v3162, %v3169
        %v3172 = vshrl.u32 %v3154, %v3170
        %v3173 = vor.u32 %v3171, %v3172
        %v3174 = vsub.s32 4294967266, %v3169
        %v3175 = vadd.s32 %v3174, 127
        %v3176 = vshll.u32 %v3175, 23
        %v3177 = vor.u32 4788187, %v3176
        %v3178 = vand.u32 2147483647, %v3177
        %v3180 = vcvt.s32.f32 %v3173
        %v3181 = vmul.f32 %v3180, %v3178
        %v3182 = vxor.u32 %v3181, 2147483648
        %v3183 = vsel %vm3100, %v3182, %v3181
        %v3184 = vsub.s32 4, %v3160
        %v3185 = vsel %vm3100, %v3184, %v3160
        %v3186 = vsel %vm3099, %v2052, %v3183
        %v3187 = vsel %vm3099, 0, %v3185
        %v3188 = vcosq.f32.pop %v3186
        %v3189 = vsinq.f32.pop %v3186
        %vm3190 = vweird.f32 %v2052
        %v3191 = vadd.s32 %v3187, 3
        %v3192 = vand.u32 %v3191, 3
        %vm3193 = vcmp.lt.s32.totalorder %v3192, 2
        %vm3194 = vcmp.eq.s32.totalorder %v3192, 0
        %v3195 = vxor.u32 %v3189, 2147483648
        %v3196 = vsel %vm3194, %v3188, %v3195
        %vm3197 = vcmp.eq.s32.totalorder %v3192, 2
        %v3198 = vxor.u32 %v3188, 2147483648
        %v3199 = vsel %vm3197, %v3198, %v3189
        %v3200 = vsel %vm3193, %v3196, %v3199
        %v3201 = vsel %vm3190, nan, %v3200
        %v3202 = vand.u32 2147483647, %v2053
        %vm3203 = vcmp.le.f32.partialorder %v3202, 0.7853982
        %vm3204 = vcmp.lt.s32.totalorder %v2053, 0
        %v3205 = vand.u32 %v2053, 2139095040
        %v3206 = vshrl.u32 %v3205, 23
        %v3207 = vsub.s32 %v3206, 127
        %v3208 = vand.u32 2147483647, %v2053
        %v3209 = vand.u32 %v3208, 8388607
        %v3210 = vor.u32 %v3209, 8388608
        %v3211 = vsub.s32 0, %v3210
        %v3212 = vadd.s32 %v3207, 1
        %vm3213 = vcmp.gt.s32.totalorder %v3212, 0
        %v3214 = vsel %vm3213, %v3212, 0
        %v3215 = vshrl.u32 %v3214, 5
        %v3216 = vand.u32 %v3214, 31
        %v3217 = vsub.s32 32, %v3216
        %v3218 = vshrl.u32 683565275, %v3217
        %v3219 = vshll.u32 683565275, %v3216
        %v3220 = vshrl.u32 2475754826, %v3217
        %v3221 = vor.u32 %v3219, %v3220
        %v3222 = vshll.u32 2475754826, %v3216
        %v3223 = vshrl.u32 2131351028, %v3217
        %v3224 = vor.u32 %v3222, %v3223
        %v3225 = vshll.u32 2131351028, %v3216
        %v3226 = vshrl.u32 2102212464, %v3217
        %v3227 = vor.u32 %v3225, %v3226
        %v3228 = vshll.u32 2102212464, %v3216
        %v3229 = vshrl.u32 920167782, %v3217
        %v3230 = vor.u32 %v3228, %v3229
        %v3231 = vshll.u32 920167782, %v3216
        %v3232 = vshrl.u32 1326507024, %v3217
        %v3233 = vor.u32 %v3231, %v3232
        %vm3234 = vcmp.lt.s32.totalorder %v3215, 1
        %vm3235 = vcmp.lt.s32.totalorder %v3215, 2
        %vm3236 = vcmp.lt.s32.totalorder %v3215, 3
        %vm3237 = vcmp.lt.s32.totalorder %v3215, 4
        %v3238 = vsel %vm3234, %v3218, %v3221
        %v3239 = vsel %vm3237, %v3227, 2102212464
        %v3240 = vsel %vm3236, %v3224, %v3239
        %v3241 = vsel %vm3235, %v3238, %v3240
        %v3242 = vsel %vm3234, %v3221, %v3224
        %v3243 = vsel %vm3237, %v3230, 920167782
        %v3244 = vsel %vm3236, %v3227, %v3243
        %v3245 = vsel %vm3235, %v3242, %v3244
        %v3246 = vsel %vm3234, %v3224, %v3227
        %v3247 = vsel %vm3237, %v3233, 1326507024
        %v3248 = vsel %vm3236, %v3230, %v3247
        %v3249 = vsel %vm3235, %v3246, %v3248
        %v3250 = vshll.u32 %v3210, 8
        %v3251 = vmul.u32.u64.compose %v3250, %v3249
        %v3252 = vextract.low.u32 %v3251
        %v3253 = vextract.high.u32 %v3251
        %v3254 = vmul.u32.u64.compose %v3250, %v3245
        %v3255 = vextract.low.u32 %v3254
        %v3256 = vextract.high.u32 %v3254
        %v3257 = vmul.u32 %v3250, %v3241
        %v3258 = vadd.s32 %v3253, %v3255
        %vm3259 = vc.u32 %v3253, %v3255
        %v3260 = vadd.s32 %v3256, 1
        %v3261 = vsel %vm3259, %v3260, %v3256
        %v3262 = vadd.s32 %v3257, %v3261
        %v3263 = vadd.s32 %v3262, 536870912
        %v3264 = vshrl.u32 %v3263, 30
        %v3265 = vshll.u32 %v3264, 30
        %v3266 = vsub.s32 %v3262, %v3265
        %vm3267 = vcmp.lt.s32.totalorder %v3266, 0
        %v3268 = vsub.s32 0, %v3266
        %v3269 = vsel %vm3267, %v3268, %v3266
        %v3270 = vclz %v3269
        %v3271 = vsub.s32 %v3270, 2
        %vm3272 = vcmp.gt.s32.totalorder 0, %v3271
        %v3273 = vsel %vm3272, 0, %v3271
        %v3274 = vsub.s32 32, %v3273
        %v3275 = vshll.u32 %v3266, %v3273
        %v3276 = vshrl.u32 %v3258, %v3274
        %v3277 = vor.u32 %v3275, %v3276
        %v3278 = vsub.s32 4294967266, %v3273
        %v3279 = vadd.s32 %v3278, 127
        %v3280 = vshll.u32 %v3279, 23
        %v3281 = vor.u32 4788187, %v3280
        %v3282 = vand.u32 2147483647, %v3281
        %v3284 = vcvt.s32.f32 %v3277
        %v3285 = vmul.f32 %v3284, %v3282
        %v3286 = vxor.u32 %v3285, 2147483648
        %v3287 = vsel %vm3204, %v3286, %v3285
        %v3288 = vsub.s32 4, %v3264
        %v3289 = vsel %vm3204, %v3288, %v3264
        %v3290 = vsel %vm3203, %v2053, %v3287
        %v3291 = vsel %vm3203, 0, %v3289
        %v3292 = vcosq.f32.pop %v3290
        %v3293 = vsinq.f32.pop %v3290
        %vm3294 = vweird.f32 %v2053
        %v3295 = vadd.s32 %v3291, 3
        %v3296 = vand.u32 %v3295, 3
        %vm3297 = vcmp.lt.s32.totalorder %v3296, 2
        %vm3298 = vcmp.eq.s32.totalorder %v3296, 0
        %v3299 = vxor.u32 %v3293, 2147483648
        %v3300 = vsel %vm3298, %v3292, %v3299
        %vm3301 = vcmp.eq.s32.totalorder %v3296, 2
        %v3302 = vxor.u32 %v3292, 2147483648
        %v3303 = vsel %vm3301, %v3302, %v3293
        %v3304 = vsel %vm3297, %v3300, %v3303
        %v3305 = vsel %vm3294, nan, %v3304
        %v3306 = vand.u32 2147483647, %v2054
        %vm3307 = vcmp.le.f32.partialorder %v3306, 0.7853982
        %vm3308 = vcmp.lt.s32.totalorder %v2054, 0
        %v3309 = vand.u32 %v2054, 2139095040
        %v3310 = vshrl.u32 %v3309, 23
        %v3311 = vsub.s32 %v3310, 127
        %v3312 = vand.u32 2147483647, %v2054
        %v3313 = vand.u32 %v3312, 8388607
        %v3314 = vor.u32 %v3313, 8388608
        %v3315 = vsub.s32 0, %v3314
        %v3316 = vadd.s32 %v3311, 1
        %vm3317 = vcmp.gt.s32.totalorder %v3316, 0
        %v3318 = vsel %vm3317, %v3316, 0
        %v3319 = vshrl.u32 %v3318, 5
        %v3320 = vand.u32 %v3318, 31
        %v3321 = vsub.s32 32, %v3320
        %v3322 = vshrl.u32 683565275, %v3321
        %v3323 = vshll.u32 683565275, %v3320
        %v3324 = vshrl.u32 2475754826, %v3321
        %v3325 = vor.u32 %v3323, %v3324
        %v3326 = vshll.u32 2475754826, %v3320
        %v3327 = vshrl.u32 2131351028, %v3321
        %v3328 = vor.u32 %v3326, %v3327
        %v3329 = vshll.u32 2131351028, %v3320
        %v3330 = vshrl.u32 2102212464, %v3321
        %v3331 = vor.u32 %v3329, %v3330
        %v3332 = vshll.u32 2102212464, %v3320
        %v3333 = vshrl.u32 920167782, %v3321
        %v3334 = vor.u32 %v3332, %v3333
        %v3335 = vshll.u32 920167782, %v3320
        %v3336 = vshrl.u32 1326507024, %v3321
        %v3337 = vor.u32 %v3335, %v3336
        %vm3338 = vcmp.lt.s32.totalorder %v3319, 1
        %vm3339 = vcmp.lt.s32.totalorder %v3319, 2
        %vm3340 = vcmp.lt.s32.totalorder %v3319, 3
        %vm3341 = vcmp.lt.s32.totalorder %v3319, 4
        %v3342 = vsel %vm3338, %v3322, %v3325
        %v3343 = vsel %vm3341, %v3331, 2102212464
        %v3344 = vsel %vm3340, %v3328, %v3343
        %v3345 = vsel %vm3339, %v3342, %v3344
        %v3346 = vsel %vm3338, %v3325, %v3328
        %v3347 = vsel %vm3341, %v3334, 920167782
        %v3348 = vsel %vm3340, %v3331, %v3347
        %v3349 = vsel %vm3339, %v3346, %v3348
        %v3350 = vsel %vm3338, %v3328, %v3331
        %v3351 = vsel %vm3341, %v3337, 1326507024
        %v3352 = vsel %vm3340, %v3334, %v3351
        %v3353 = vsel %vm3339, %v3350, %v3352
        %v3354 = vshll.u32 %v3314, 8
        %v3355 = vmul.u32.u64.compose %v3354, %v3353
        %v3356 = vextract.low.u32 %v3355
        %v3357 = vextract.high.u32 %v3355
        %v3358 = vmul.u32.u64.compose %v3354, %v3349
        %v3359 = vextract.low.u32 %v3358
        %v3360 = vextract.high.u32 %v3358
        %v3361 = vmul.u32 %v3354, %v3345
        %v3362 = vadd.s32 %v3357, %v3359
        %vm3363 = vc.u32 %v3357, %v3359
        %v3364 = vadd.s32 %v3360, 1
        %v3365 = vsel %vm3363, %v3364, %v3360
        %v3366 = vadd.s32 %v3361, %v3365
        %v3367 = vadd.s32 %v3366, 536870912
        %v3368 = vshrl.u32 %v3367, 30
        %v3369 = vshll.u32 %v3368, 30
        %v3370 = vsub.s32 %v3366, %v3369
        %vm3371 = vcmp.lt.s32.totalorder %v3370, 0
        %v3372 = vsub.s32 0, %v3370
        %v3373 = vsel %vm3371, %v3372, %v3370
        %v3374 = vclz %v3373
        %v3375 = vsub.s32 %v3374, 2
        %vm3376 = vcmp.gt.s32.totalorder 0, %v3375
        %v3377 = vsel %vm3376, 0, %v3375
        %v3378 = vsub.s32 32, %v3377
        %v3379 = vshll.u32 %v3370, %v3377
        %v3380 = vshrl.u32 %v3362, %v3378
        %v3381 = vor.u32 %v3379, %v3380
        %v3382 = vsub.s32 4294967266, %v3377
        %v3383 = vadd.s32 %v3382, 127
        %v3384 = vshll.u32 %v3383, 23
        %v3385 = vor.u32 4788187, %v3384
        %v3386 = vand.u32 2147483647, %v3385
        %v3388 = vcvt.s32.f32 %v3381
        %v3389 = vmul.f32 %v3388, %v3386
        %v3390 = vxor.u32 %v3389, 2147483648
        %v3391 = vsel %vm3308, %v3390, %v3389
        %v3392 = vsub.s32 4, %v3368
        %v3393 = vsel %vm3308, %v3392, %v3368
        %v3394 = vsel %vm3307, %v2054, %v3391
        %v3395 = vsel %vm3307, 0, %v3393
        %v3396 = vcosq.f32.pop %v3394
        %v3397 = vsinq.f32.pop %v3394
        %vm3398 = vweird.f32 %v2054
        %v3399 = vadd.s32 %v3395, 3
        %v3400 = vand.u32 %v3399, 3
        %vm3401 = vcmp.lt.s32.totalorder %v3400, 2
        %vm3402 = vcmp.eq.s32.totalorder %v3400, 0
        %v3403 = vxor.u32 %v3397, 2147483648
        %v3404 = vsel %vm3402, %v3396, %v3403
        %vm3405 = vcmp.eq.s32.totalorder %v3400, 2
        %v3406 = vxor.u32 %v3396, 2147483648
        %v3407 = vsel %vm3405, %v3406, %v3397
        %v3408 = vsel %vm3401, %v3404, %v3407
        %v3409 = vsel %vm3398, nan, %v3408
        %v3410 = vand.u32 2147483647, %v2055
        %vm3411 = vcmp.le.f32.partialorder %v3410, 0.7853982
        %vm3412 = vcmp.lt.s32.totalorder %v2055, 0
        %v3413 = vand.u32 %v2055, 2139095040
        %v3414 = vshrl.u32 %v3413, 23
        %v3415 = vsub.s32 %v3414, 127
        %v3416 = vand.u32 2147483647, %v2055
        %v3417 = vand.u32 %v3416, 8388607
        %v3418 = vor.u32 %v3417, 8388608
        %v3419 = vsub.s32 0, %v3418
        %v3420 = vadd.s32 %v3415, 1
        %vm3421 = vcmp.gt.s32.totalorder %v3420, 0
        %v3422 = vsel %vm3421, %v3420, 0
        %v3423 = vshrl.u32 %v3422, 5
        %v3424 = vand.u32 %v3422, 31
        %v3425 = vsub.s32 32, %v3424
        %v3426 = vshrl.u32 683565275, %v3425
        %v3427 = vshll.u32 683565275, %v3424
        %v3428 = vshrl.u32 2475754826, %v3425
        %v3429 = vor.u32 %v3427, %v3428
        %v3430 = vshll.u32 2475754826, %v3424
        %v3431 = vshrl.u32 2131351028, %v3425
        %v3432 = vor.u32 %v3430, %v3431
        %v3433 = vshll.u32 2131351028, %v3424
        %v3434 = vshrl.u32 2102212464, %v3425
        %v3435 = vor.u32 %v3433, %v3434
        %v3436 = vshll.u32 2102212464, %v3424
        %v3437 = vshrl.u32 920167782, %v3425
        %v3438 = vor.u32 %v3436, %v3437
        %v3439 = vshll.u32 920167782, %v3424
        %v3440 = vshrl.u32 1326507024, %v3425
        %v3441 = vor.u32 %v3439, %v3440
        %vm3442 = vcmp.lt.s32.totalorder %v3423, 1
        %vm3443 = vcmp.lt.s32.totalorder %v3423, 2
        %vm3444 = vcmp.lt.s32.totalorder %v3423, 3
        %vm3445 = vcmp.lt.s32.totalorder %v3423, 4
        %v3446 = vsel %vm3442, %v3426, %v3429
        %v3447 = vsel %vm3445, %v3435, 2102212464
        %v3448 = vsel %vm3444, %v3432, %v3447
        %v3449 = vsel %vm3443, %v3446, %v3448
        %v3450 = vsel %vm3442, %v3429, %v3432
        %v3451 = vsel %vm3445, %v3438, 920167782
        %v3452 = vsel %vm3444, %v3435, %v3451
        %v3453 = vsel %vm3443, %v3450, %v3452
        %v3454 = vsel %vm3442, %v3432, %v3435
        %v3455 = vsel %vm3445, %v3441, 1326507024
        %v3456 = vsel %vm3444, %v3438, %v3455
        %v3457 = vsel %vm3443, %v3454, %v3456
        %v3458 = vshll.u32 %v3418, 8
        %v3459 = vmul.u32.u64.compose %v3458, %v3457
        %v3460 = vextract.low.u32 %v3459
        %v3461 = vextract.high.u32 %v3459
        %v3462 = vmul.u32.u64.compose %v3458, %v3453
        %v3463 = vextract.low.u32 %v3462
        %v3464 = vextract.high.u32 %v3462
        %v3465 = vmul.u32 %v3458, %v3449
        %v3466 = vadd.s32 %v3461, %v3463
        %vm3467 = vc.u32 %v3461, %v3463
        %v3468 = vadd.s32 %v3464, 1
        %v3469 = vsel %vm3467, %v3468, %v3464
        %v3470 = vadd.s32 %v3465, %v3469
        %v3471 = vadd.s32 %v3470, 536870912
        %v3472 = vshrl.u32 %v3471, 30
        %v3473 = vshll.u32 %v3472, 30
        %v3474 = vsub.s32 %v3470, %v3473
        %vm3475 = vcmp.lt.s32.totalorder %v3474, 0
        %v3476 = vsub.s32 0, %v3474
        %v3477 = vsel %vm3475, %v3476, %v3474
        %v3478 = vclz %v3477
        %v3479 = vsub.s32 %v3478, 2
        %vm3480 = vcmp.gt.s32.totalorder 0, %v3479
        %v3481 = vsel %vm3480, 0, %v3479
        %v3482 = vsub.s32 32, %v3481
        %v3483 = vshll.u32 %v3474, %v3481
        %v3484 = vshrl.u32 %v3466, %v3482
        %v3485 = vor.u32 %v3483, %v3484
        %v3486 = vsub.s32 4294967266, %v3481
        %v3487 = vadd.s32 %v3486, 127
        %v3488 = vshll.u32 %v3487, 23
        %v3489 = vor.u32 4788187, %v3488
        %v3490 = vand.u32 2147483647, %v3489
        %v3492 = vcvt.s32.f32 %v3485
        %v3493 = vmul.f32 %v3492, %v3490
        %v3494 = vxor.u32 %v3493, 2147483648
        %v3495 = vsel %vm3412, %v3494, %v3493
        %v3496 = vsub.s32 4, %v3472
        %v3497 = vsel %vm3412, %v3496, %v3472
        %v3498 = vsel %vm3411, %v2055, %v3495
        %v3499 = vsel %vm3411, 0, %v3497
        %v3500 = vcosq.f32.pop %v3498
        %v3501 = vsinq.f32.pop %v3498
        %vm3502 = vweird.f32 %v2055
        %v3503 = vadd.s32 %v3499, 3
        %v3504 = vand.u32 %v3503, 3
        %vm3505 = vcmp.lt.s32.totalorder %v3504, 2
        %vm3506 = vcmp.eq.s32.totalorder %v3504, 0
        %v3507 = vxor.u32 %v3501, 2147483648
        %v3508 = vsel %vm3506, %v3500, %v3507
        %vm3509 = vcmp.eq.s32.totalorder %v3504, 2
        %v3510 = vxor.u32 %v3500, 2147483648
        %v3511 = vsel %vm3509, %v3510, %v3501
        %v3512 = vsel %vm3505, %v3508, %v3511
        %v3513 = vsel %vm3502, nan, %v3512
        %v3514 = vand.u32 2147483647, %v2056
        %vm3515 = vcmp.le.f32.partialorder %v3514, 0.7853982
        %vm3516 = vcmp.lt.s32.totalorder %v2056, 0
        %v3517 = vand.u32 %v2056, 2139095040
        %v3518 = vshrl.u32 %v3517, 23
        %v3519 = vsub.s32 %v3518, 127
        %v3520 = vand.u32 2147483647, %v2056
        %v3521 = vand.u32 %v3520, 8388607
        %v3522 = vor.u32 %v3521, 8388608
        %v3523 = vsub.s32 0, %v3522
        %v3524 = vadd.s32 %v3519, 1
        %vm3525 = vcmp.gt.s32.totalorder %v3524, 0
        %v3526 = vsel %vm3525, %v3524, 0
        %v3527 = vshrl.u32 %v3526, 5
        %v3528 = vand.u32 %v3526, 31
        %v3529 = vsub.s32 32, %v3528
        %v3530 = vshrl.u32 683565275, %v3529
        %v3531 = vshll.u32 683565275, %v3528
        %v3532 = vshrl.u32 2475754826, %v3529
        %v3533 = vor.u32 %v3531, %v3532
        %v3534 = vshll.u32 2475754826, %v3528
        %v3535 = vshrl.u32 2131351028, %v3529
        %v3536 = vor.u32 %v3534, %v3535
        %v3537 = vshll.u32 2131351028, %v3528
        %v3538 = vshrl.u32 2102212464, %v3529
        %v3539 = vor.u32 %v3537, %v3538
        %v3540 = vshll.u32 2102212464, %v3528
        %v3541 = vshrl.u32 920167782, %v3529
        %v3542 = vor.u32 %v3540, %v3541
        %v3543 = vshll.u32 920167782, %v3528
        %v3544 = vshrl.u32 1326507024, %v3529
        %v3545 = vor.u32 %v3543, %v3544
        %vm3546 = vcmp.lt.s32.totalorder %v3527, 1
        %vm3547 = vcmp.lt.s32.totalorder %v3527, 2
        %vm3548 = vcmp.lt.s32.totalorder %v3527, 3
        %vm3549 = vcmp.lt.s32.totalorder %v3527, 4
        %v3550 = vsel %vm3546, %v3530, %v3533
        %v3551 = vsel %vm3549, %v3539, 2102212464
        %v3552 = vsel %vm3548, %v3536, %v3551
        %v3553 = vsel %vm3547, %v3550, %v3552
        %v3554 = vsel %vm3546, %v3533, %v3536
        %v3555 = vsel %vm3549, %v3542, 920167782
        %v3556 = vsel %vm3548, %v3539, %v3555
        %v3557 = vsel %vm3547, %v3554, %v3556
        %v3558 = vsel %vm3546, %v3536, %v3539
        %v3559 = vsel %vm3549, %v3545, 1326507024
        %v3560 = vsel %vm3548, %v3542, %v3559
        %v3561 = vsel %vm3547, %v3558, %v3560
        %v3562 = vshll.u32 %v3522, 8
        %v3563 = vmul.u32.u64.compose %v3562, %v3561
        %v3564 = vextract.low.u32 %v3563
        %v3565 = vextract.high.u32 %v3563
        %v3566 = vmul.u32.u64.compose %v3562, %v3557
        %v3567 = vextract.low.u32 %v3566
        %v3568 = vextract.high.u32 %v3566
        %v3569 = vmul.u32 %v3562, %v3553
        %v3570 = vadd.s32 %v3565, %v3567
        %vm3571 = vc.u32 %v3565, %v3567
        %v3572 = vadd.s32 %v3568, 1
        %v3573 = vsel %vm3571, %v3572, %v3568
        %v3574 = vadd.s32 %v3569, %v3573
        %v3575 = vadd.s32 %v3574, 536870912
        %v3576 = vshrl.u32 %v3575, 30
        %v3577 = vshll.u32 %v3576, 30
        %v3578 = vsub.s32 %v3574, %v3577
        %vm3579 = vcmp.lt.s32.totalorder %v3578, 0
        %v3580 = vsub.s32 0, %v3578
        %v3581 = vsel %vm3579, %v3580, %v3578
        %v3582 = vclz %v3581
        %v3583 = vsub.s32 %v3582, 2
        %vm3584 = vcmp.gt.s32.totalorder 0, %v3583
        %v3585 = vsel %vm3584, 0, %v3583
        %v3586 = vsub.s32 32, %v3585
        %v3587 = vshll.u32 %v3578, %v3585
        %v3588 = vshrl.u32 %v3570, %v3586
        %v3589 = vor.u32 %v3587, %v3588
        %v3590 = vsub.s32 4294967266, %v3585
        %v3591 = vadd.s32 %v3590, 127
        %v3592 = vshll.u32 %v3591, 23
        %v3593 = vor.u32 4788187, %v3592
        %v3594 = vand.u32 2147483647, %v3593
        %v3596 = vcvt.s32.f32 %v3589
        %v3597 = vmul.f32 %v3596, %v3594
        %v3598 = vxor.u32 %v3597, 2147483648
        %v3599 = vsel %vm3516, %v3598, %v3597
        %v3600 = vsub.s32 4, %v3576
        %v3601 = vsel %vm3516, %v3600, %v3576
        %v3602 = vsel %vm3515, %v2056, %v3599
        %v3603 = vsel %vm3515, 0, %v3601
        %v3604 = vcosq.f32.pop %v3602
        %v3605 = vsinq.f32.pop %v3602
        %vm3606 = vweird.f32 %v2056
        %v3607 = vadd.s32 %v3603, 3
        %v3608 = vand.u32 %v3607, 3
        %vm3609 = vcmp.lt.s32.totalorder %v3608, 2
        %vm3610 = vcmp.eq.s32.totalorder %v3608, 0
        %v3611 = vxor.u32 %v3605, 2147483648
        %v3612 = vsel %vm3610, %v3604, %v3611
        %vm3613 = vcmp.eq.s32.totalorder %v3608, 2
        %v3614 = vxor.u32 %v3604, 2147483648
        %v3615 = vsel %vm3613, %v3614, %v3605
        %v3616 = vsel %vm3609, %v3612, %v3615
        %v3617 = vsel %vm3606, nan, %v3616
        %v3618 = vand.u32 2147483647, %v2057
        %vm3619 = vcmp.le.f32.partialorder %v3618, 0.7853982
        %vm3620 = vcmp.lt.s32.totalorder %v2057, 0
        %v3621 = vand.u32 %v2057, 2139095040
        %v3622 = vshrl.u32 %v3621, 23
        %v3623 = vsub.s32 %v3622, 127
        %v3624 = vand.u32 2147483647, %v2057
        %v3625 = vand.u32 %v3624, 8388607
        %v3626 = vor.u32 %v3625, 8388608
        %v3627 = vsub.s32 0, %v3626
        %v3628 = vadd.s32 %v3623, 1
        %vm3629 = vcmp.gt.s32.totalorder %v3628, 0
        %v3630 = vsel %vm3629, %v3628, 0
        %v3631 = vshrl.u32 %v3630, 5
        %v3632 = vand.u32 %v3630, 31
        %v3633 = vsub.s32 32, %v3632
        %v3634 = vshrl.u32 683565275, %v3633
        %v3635 = vshll.u32 683565275, %v3632
        %v3636 = vshrl.u32 2475754826, %v3633
        %v3637 = vor.u32 %v3635, %v3636
        %v3638 = vshll.u32 2475754826, %v3632
        %v3639 = vshrl.u32 2131351028, %v3633
        %v3640 = vor.u32 %v3638, %v3639
        %v3641 = vshll.u32 2131351028, %v3632
        %v3642 = vshrl.u32 2102212464, %v3633
        %v3643 = vor.u32 %v3641, %v3642
        %v3644 = vshll.u32 2102212464, %v3632
        %v3645 = vshrl.u32 920167782, %v3633
        %v3646 = vor.u32 %v3644, %v3645
        %v3647 = vshll.u32 920167782, %v3632
        %v3648 = vshrl.u32 1326507024, %v3633
        %v3649 = vor.u32 %v3647, %v3648
        %vm3650 = vcmp.lt.s32.totalorder %v3631, 1
        %vm3651 = vcmp.lt.s32.totalorder %v3631, 2
        %vm3652 = vcmp.lt.s32.totalorder %v3631, 3
        %vm3653 = vcmp.lt.s32.totalorder %v3631, 4
        %v3654 = vsel %vm3650, %v3634, %v3637
        %v3655 = vsel %vm3653, %v3643, 2102212464
        %v3656 = vsel %vm3652, %v3640, %v3655
        %v3657 = vsel %vm3651, %v3654, %v3656
        %v3658 = vsel %vm3650, %v3637, %v3640
        %v3659 = vsel %vm3653, %v3646, 920167782
        %v3660 = vsel %vm3652, %v3643, %v3659
        %v3661 = vsel %vm3651, %v3658, %v3660
        %v3662 = vsel %vm3650, %v3640, %v3643
        %v3663 = vsel %vm3653, %v3649, 1326507024
        %v3664 = vsel %vm3652, %v3646, %v3663
        %v3665 = vsel %vm3651, %v3662, %v3664
        %v3666 = vshll.u32 %v3626, 8
        %v3667 = vmul.u32.u64.compose %v3666, %v3665
        %v3668 = vextract.low.u32 %v3667
        %v3669 = vextract.high.u32 %v3667
        %v3670 = vmul.u32.u64.compose %v3666, %v3661
        %v3671 = vextract.low.u32 %v3670
        %v3672 = vextract.high.u32 %v3670
        %v3673 = vmul.u32 %v3666, %v3657
        %v3674 = vadd.s32 %v3669, %v3671
        %vm3675 = vc.u32 %v3669, %v3671
        %v3676 = vadd.s32 %v3672, 1
        %v3677 = vsel %vm3675, %v3676, %v3672
        %v3678 = vadd.s32 %v3673, %v3677
        %v3679 = vadd.s32 %v3678, 536870912
        %v3680 = vshrl.u32 %v3679, 30
        %v3681 = vshll.u32 %v3680, 30
        %v3682 = vsub.s32 %v3678, %v3681
        %vm3683 = vcmp.lt.s32.totalorder %v3682, 0
        %v3684 = vsub.s32 0, %v3682
        %v3685 = vsel %vm3683, %v3684, %v3682
        %v3686 = vclz %v3685
        %v3687 = vsub.s32 %v3686, 2
        %vm3688 = vcmp.gt.s32.totalorder 0, %v3687
        %v3689 = vsel %vm3688, 0, %v3687
        %v3690 = vsub.s32 32, %v3689
        %v3691 = vshll.u32 %v3682, %v3689
        %v3692 = vshrl.u32 %v3674, %v3690
        %v3693 = vor.u32 %v3691, %v3692
        %v3694 = vsub.s32 4294967266, %v3689
        %v3695 = vadd.s32 %v3694, 127
        %v3696 = vshll.u32 %v3695, 23
        %v3697 = vor.u32 4788187, %v3696
        %v3698 = vand.u32 2147483647, %v3697
        %v3700 = vcvt.s32.f32 %v3693
        %v3701 = vmul.f32 %v3700, %v3698
        %v3702 = vxor.u32 %v3701, 2147483648
        %v3703 = vsel %vm3620, %v3702, %v3701
        %v3704 = vsub.s32 4, %v3680
        %v3705 = vsel %vm3620, %v3704, %v3680
        %v3706 = vsel %vm3619, %v2057, %v3703
        %v3707 = vsel %vm3619, 0, %v3705
        %v3708 = vcosq.f32.pop %v3706
        %v3709 = vsinq.f32.pop %v3706
        %vm3710 = vweird.f32 %v2057
        %v3711 = vadd.s32 %v3707, 3
        %v3712 = vand.u32 %v3711, 3
        %vm3713 = vcmp.lt.s32.totalorder %v3712, 2
        %vm3714 = vcmp.eq.s32.totalorder %v3712, 0
        %v3715 = vxor.u32 %v3709, 2147483648
        %v3716 = vsel %vm3714, %v3708, %v3715
        %vm3717 = vcmp.eq.s32.totalorder %v3712, 2
        %v3718 = vxor.u32 %v3708, 2147483648
        %v3719 = vsel %vm3717, %v3718, %v3709
        %v3720 = vsel %vm3713, %v3716, %v3719
        %v3721 = vsel %vm3710, nan, %v3720
        %3722 = vst [vmem:[%s201] sm:$0xff] %v454
        %3723 = vst [vmem:[%s201 + $0x8] sm:$0xff] %v558
        %3724 = vst [vmem:[%s201 + $0x10] sm:$0xff] %v662
        %3725 = vst [vmem:[%s201 + $0x18] sm:$0xff] %v766
        %3726 = vst [vmem:[%s201 + $0x20] sm:$0xff] %v870
        %3727 = vst [vmem:[%s201 + $0x28] sm:$0xff] %v974
        %3728 = vst [vmem:[%s201 + $0x30] sm:$0xff] %v1078
        %3729 = vst [vmem:[%s201 + $0x38] sm:$0xff] %v1182
        %3730 = vst [vmem:[%s201 + $0x40] sm:$0xff] %v1286
        %3731 = vst [vmem:[%s201 + $0x48] sm:$0xff] %v1390
        %3732 = vst [vmem:[%s201 + $0x50] sm:$0xff] %v1494
        %3733 = vst [vmem:[%s201 + $0x58] sm:$0xff] %v1598
        %3734 = vst [vmem:[%s201 + $0x60] sm:$0xff] %v1702
        %3735 = vst [vmem:[%s201 + $0x68] sm:$0xff] %v1806
        %3736 = vst [vmem:[%s201 + $0x70] sm:$0xff] %v1910
        %3737 = vst [vmem:[%s201 + $0x78] sm:$0xff] %v2014
        %3738 = vst [vmem:[%s201 + $0x80] sm:$0xff] %v2161
        %3739 = vst [vmem:[%s201 + $0x88] sm:$0xff] %v2265
        %3740 = vst [vmem:[%s201 + $0x90] sm:$0xff] %v2369
        %3741 = vst [vmem:[%s201 + $0x98] sm:$0xff] %v2473
        %3742 = vst [vmem:[%s201 + $0xa0] sm:$0xff] %v2577
        %3743 = vst [vmem:[%s201 + $0xa8] sm:$0xff] %v2681
        %3744 = vst [vmem:[%s201 + $0xb0] sm:$0xff] %v2785
        %3745 = vst [vmem:[%s201 + $0xb8] sm:$0xff] %v2889
        %3746 = vst [vmem:[%s201 + $0xc0] sm:$0xff] %v2993
        %3747 = vst [vmem:[%s201 + $0xc8] sm:$0xff] %v3097
        %3748 = vst [vmem:[%s201 + $0xd0] sm:$0xff] %v3201
        %3749 = vst [vmem:[%s201 + $0xd8] sm:$0xff] %v3305
        %3750 = vst [vmem:[%s201 + $0xe0] sm:$0xff] %v3409
        %3751 = vst [vmem:[%s201 + $0xe8] sm:$0xff] %v3513
        %3752 = vst [vmem:[%s201 + $0xf0] sm:$0xff] %v3617
        %3753 = vst [vmem:[%s201 + $0xf8] sm:$0xff] %v3721
        %s3754 = sand.u32 %s120, 1
        %s3755 = scalar_lea.sflag [#allocation3], %s3754
        %s3756 = sand.u32 %s120, 1
        %s3757 = smul.addr %s3756, 256
        %s3758 = scalar_lea.vmem [#allocation2], %s3757
        // Predicated region
        $region37: #{tpu_custom_call.1} parent=35 // pred_check
          %p3759 = pneg %p130
        $region38: #{tpu_custom_call.1} parent=35 // pred_check_branch
          %3761 = sbr.rel (%p3759) target = $region40
        $region39: #{tpu_custom_call.1} parent=35 // pred_region
          %s3763 = ssub.s32 4096, 4096
          %3764 = vsyncadd %s3755, %s3763
          %s3765 = smul.addr %s18, 32
          %s3766 = smul.addr %s3765, 128
          %s3767 = scalar_lea.hbm %s4, %s3766
          %s3768 = sshll.u32 %s3758, 4
          %s3769 = int_to_ptr.vmem [resolvable:$true] %s3768
          %3774 = dma.vmem_to_hbm [thread:$0]  %s3769, 4096, %s3767, %s3755, 256, 256, 16
        $region40: #{tpu_custom_call.1} parent=35 // pred_fallthru
          _
      $region36: #{tpu_custom_call.1} parent=5 // pred_fallthru
        _
      %p3775 = scmp.le.s32.totalorder 2, %s13
      // Predicated region
      $region41: #{tpu_custom_call.1} parent=5 // pred_check
        %p3776 = pneg %p3775
      $region42: #{tpu_custom_call.1} parent=5 // pred_check_branch
        %3778 = sbr.rel (%p3776) target = $region44
      $region43: #{tpu_custom_call.1} parent=5 // pred_region
        %s3779 = ssub.s32 %s13, 2
        // Predicated region
        $region45: #{tpu_custom_call.1} parent=43 // pred_check
          %p3780 = pneg %p136
        $region46: #{tpu_custom_call.1} parent=43 // pred_check_branch
          %3782 = sbr.rel (%p3780) target = $region48
        $region47: #{tpu_custom_call.1} parent=43 // pred_region
          %s3783 = sand.u32 %s121, 1
          %s3784 = scalar_lea.sflag [#allocation3], %s3783
          %s3785 = sand.u32 %s121, 1
          %s3786 = smul.addr %s3785, 256
          %s3787 = scalar_lea.vmem [#allocation2], %s3786
          %3788 = dma.done %s3784, 4096
        $region48: #{tpu_custom_call.1} parent=43 // pred_fallthru
          _
      $region44: #{tpu_custom_call.1} parent=5 // pred_fallthru
        _
    $region6: #{tpu_custom_call.1} parent=1 // loop_footer
      %s17 = sadd.s32 1, %s13
    $region7: #{tpu_custom_call.1} parent=1 // loop_footer_branch
      %12 = sbr.rel target = $region3
    $region8: #{tpu_custom_call.1} parent=1 // loop_exit
      _
    %3789 = vsyncpa [#allocation3], 1
    %s3790 = scalar_lea.sflag [#allocation3], 1
    %3791 = vsyncpa %s3790, 1

</llo_original>
